<compile_context>
chip_gen: v6e
topology: v6e:2x2x1
jax: 0.10.0
libtpu: 0.0.40
codegen_flags: <defaults>
</compile_context>

<pallas_src>
import jax
import jax.numpy as jnp
from jax.experimental import pallas as pl
from jax.experimental.pallas import tpu as pltpu

LANE = 128


def _round_up(x, m):
    return (x + m - 1) // m * m


# ----------------------------- Pallas kernels ------------------------------

def _conv_relu_pool_kernel(x_ref, w_ref, b_ref, o_ref):
    """Fused conv-as-matmul + bias + ReLU + 2x2/2 max-pool.

    x_ref: (4*T, Kp) bf16 im2col patches, rows ordered (pool_member, pooled_pixel)
           for this grid chunk.
    w_ref: (Kp, 128) bf16.   b_ref: (1, 128) f32.
    o_ref: (T, 128) f32 pooled activations for this chunk.
    """
    t = o_ref.shape[0]
    y = jnp.dot(x_ref[...], w_ref[...], preferred_element_type=jnp.float32)
    # 4 pool members are contiguous, sublane-aligned row blocks of the accumulator.
    m = jnp.maximum(jnp.maximum(y[0 * t:1 * t, :], y[1 * t:2 * t, :]),
                    jnp.maximum(y[2 * t:3 * t, :], y[3 * t:4 * t, :]))
    # per-channel bias commutes with the max; ReLU is monotonic.
    o_ref[...] = jnp.maximum(m + b_ref[...], 0.0)


def _conv_relu_fc_kernel(x_ref, w3_ref, b3_ref, wfc_ref, bfc_ref, o_ref):
    """Fused conv3 (as matmul) + bias + ReLU + final Linear.

    x_ref:   (R*NP, Kp) bf16 im2col patches, rows ordered (spatial r, padded batch n).
    w3_ref:  (Kp, 128) bf16.   b3_ref: (1, 128) f32.
    wfc_ref: (R*128, 128) bf16; block r holds the FC weight columns for spatial
             position r (PyTorch NCHW x.view(N,-1) flatten order).
    o_ref:   (NP, 128) f32 logits (rows >= real batch / lanes >= 10 are padding).
    """
    np_ = o_ref.shape[0]
    r_spatial = x_ref.shape[0] // np_
    y = jnp.dot(x_ref[...], w3_ref[...], preferred_element_type=jnp.float32)
    y = jnp.maximum(y + b3_ref[...], 0.0)
    acc = jnp.zeros(o_ref.shape, jnp.float32)
    for r in range(r_spatial):
        y_r = y[r * np_:(r + 1) * np_, :].astype(jnp.bfloat16)
        acc = acc + jnp.dot(y_r, wfc_ref[pl.ds(r * LANE, LANE), :],
                            preferred_element_type=jnp.float32)
    o_ref[...] = acc + bfc_ref[...]


# ----------------------------- wrappers -------------------------------------

def _im2col(x, k, pad):
    """x: (N,H,W,C) -> (N,H,W,C*k*k); K ordered (C, kh, kw) to match the
    PyTorch (Cout, Cin, kh, kw) weight flatten."""
    N, H, W, C = x.shape
    xp = jnp.pad(x, ((0, 0), (pad, pad), (pad, pad), (0, 0)))
    patches = [xp[:, i:i + H, j:j + W, :] for i in range(k) for j in range(k)]
    p = jnp.stack(patches, axis=3)            # (N, H, W, k*k, C)
    p = jnp.transpose(p, (0, 1, 2, 4, 3))     # (N, H, W, C, k*k)
    return p.reshape(N, H, W, C * k * k)


def _pad2d(a, rows, cols, dtype):
    r, c = a.shape
    return jnp.pad(a, ((0, rows - r), (0, cols - c))).astype(dtype)


def conv_relu_pool(x, w, b):
    """x: (N,H,W,C) NHWC; w: (Cout,Cin,5,5); b: (Cout,).
    Conv(stride=1, pad=2) + ReLU + 2x2/2 max-pool, fused in one pallas_call.
    Returns (N*Ho*Wo, 128) f32; rows ordered (n, ho, wo); lanes [0:Cout] valid."""
    N, H, W, C = x.shape
    Cout = w.shape[0]
    K = C * 25
    Kp = _round_up(K, LANE)
    Ho, Wo = H // 2, W // 2
    q = N * Ho * Wo
    nchunk = 2 if q % 16 == 0 else 1          # parallel chunks (2nd TC on v7x)
    tile = q // nchunk

    # im2col, then regroup rows as (chunk, pool_member, pooled_pixel_in_chunk).
    p = _im2col(x, 5, 2)                                    # (N, H, W, K)
    p = p.reshape(N, Ho, 2, Wo, 2, K)
    p = jnp.transpose(p, (0, 1, 3, 2, 4, 5))                # (N, Ho, Wo, hi, wi, K)
    p = p.reshape(nchunk, tile, 4, K)
    p = jnp.transpose(p, (0, 2, 1, 3)).reshape(nchunk * 4 * tile, K)
    cols = _pad2d(p, nchunk * 4 * tile, Kp, jnp.bfloat16)

    wm = _pad2d(jnp.transpose(w.reshape(Cout, K)), Kp, LANE, jnp.bfloat16)
    bm = _pad2d(b.reshape(1, Cout), 1, LANE, jnp.float32)

    return pl.pallas_call(
        _conv_relu_pool_kernel,
        out_shape=jax.ShapeDtypeStruct((q, LANE), jnp.float32),
        grid=(nchunk,),
        in_specs=[
            pl.BlockSpec((4 * tile, Kp), lambda c: (c, 0)),
            pl.BlockSpec((Kp, LANE), lambda c: (0, 0)),
            pl.BlockSpec((1, LANE), lambda c: (0, 0)),
        ],
        out_specs=pl.BlockSpec((tile, LANE), lambda c: (c, 0)),
        compiler_params=pltpu.CompilerParams(
            dimension_semantics=("parallel",)),
    )(cols, wm, bm)


def conv_relu_fc(x, w3, b3, wfc, bfc):
    """x: (N,H,W,C) NHWC. Fused conv3(5x5, pad=2) + ReLU + final Linear
    (PyTorch NCHW x.view(N,-1) flatten order). Returns (N, 10) f32 logits."""
    N, H, W, C = x.shape
    NP = _round_up(max(N, 8), 8)              # pad batch rows to full sublanes
    R = H * W
    Cout, Fout = w3.shape[0], wfc.shape[0]
    K = C * 25
    Kp = _round_up(K, LANE)

    xpad = jnp.pad(x, ((0, NP - N), (0, 0), (0, 0), (0, 0)))
    p = _im2col(xpad, 5, 2)                                  # (NP, H, W, K)
    p = jnp.transpose(p, (1, 2, 0, 3)).reshape(R * NP, K)    # rows (r, n)
    cols = _pad2d(p, R * NP, Kp, jnp.bfloat16)

    w3m = _pad2d(jnp.transpose(w3.reshape(Cout, K)), Kp, LANE, jnp.bfloat16)
    b3m = _pad2d(b3.reshape(1, Cout), 1, LANE, jnp.float32)

    # FC weight regrouped per spatial position r (NCHW flatten: column = c*R + r).
    wr = jnp.transpose(wfc.reshape(Fout, Cout, R), (2, 1, 0))    # (r, c, o)
    wr = jnp.pad(wr, ((0, 0), (0, LANE - Cout), (0, LANE - Fout)))
    wfcm = wr.reshape(R * LANE, LANE).astype(jnp.bfloat16)
    bfcm = _pad2d(bfc.reshape(1, Fout), 1, LANE, jnp.float32)

    out = pl.pallas_call(
        _conv_relu_fc_kernel,
        out_shape=jax.ShapeDtypeStruct((NP, LANE), jnp.float32),
        grid=(1,),
        in_specs=[
            pl.BlockSpec((R * NP, Kp), lambda i: (0, 0)),
            pl.BlockSpec((Kp, LANE), lambda i: (0, 0)),
            pl.BlockSpec((1, LANE), lambda i: (0, 0)),
            pl.BlockSpec((R * LANE, LANE), lambda i: (0, 0)),
            pl.BlockSpec((1, LANE), lambda i: (0, 0)),
        ],
        out_specs=pl.BlockSpec((NP, LANE), lambda i: (0, 0)),
        compiler_params=pltpu.CompilerParams(
            dimension_semantics=("arbitrary",)),
    )(cols, w3m, b3m, wfcm, bfcm)
    return out[:N, :Fout]


def cnn_forward(x_nchw, params):
    """Matches CNN.forward: (conv-relu-pool) x2, conv-relu, NCHW flatten, fc."""
    w1, b1, w2, b2, w3, b3, wfc, bfc = params
    N, _, H, W = x_nchw.shape
    x = jnp.transpose(x_nchw, (0, 2, 3, 1))   # NCHW -> NHWC

    a = conv_relu_pool(x, w1, b1)
    h, wd = H // 2, W // 2
    a = a[:, :w1.shape[0]].reshape(N, h, wd, w1.shape[0])

    a = conv_relu_pool(a, w2, b2)
    h, wd = h // 2, wd // 2
    a = a[:, :w2.shape[0]].reshape(N, h, wd, w2.shape[0])

    return conv_relu_fc(a, w3, b3, wfc, bfc)


def init_params(key, input_size):
    """Deterministic synthetic parameters with the same shapes as the module."""
    c_in, H, W = input_size
    ks = jax.random.split(key, 8)

    def u(k, shape, fan_in):
        bound = 1.0 / jnp.sqrt(fan_in)
        return jax.random.uniform(k, shape, jnp.float32, -bound, bound)

    w1 = u(ks[0], (16, c_in, 5, 5), c_in * 25)
    b1 = u(ks[1], (16,), c_in * 25)
    w2 = u(ks[2], (20, 16, 5, 5), 16 * 25)
    b2 = u(ks[3], (20,), 16 * 25)
    w3 = u(ks[4], (20, 20, 5, 5), 20 * 25)
    b3 = u(ks[5], (20,), 20 * 25)
    fc_in = H * W // 16 * 20
    wfc = u(ks[6], (10, fc_in), fc_in)
    bfc = u(ks[7], (10,), fc_in)
    return (w1, b1, w2, b2, w3, b3, wfc, bfc)


if __name__ == "__main__":
    input_size = (4, 16, 16)   # (C, H, W)
    batch = 2

    key = jax.random.PRNGKey(0)
    k_x, k_p = jax.random.split(key)
    x = jax.random.normal(k_x, (batch, *input_size), jnp.float32)  # NCHW
    params = init_params(k_p, input_size)

    out = jax.jit(cnn_forward)(x, params)
    out = jax.block_until_ready(out)
    assert out.shape == (batch, 10), out.shape
    assert bool(jnp.all(jnp.isfinite(out))), "non-finite output"
    print("KERNEL_OK")
</pallas_src>

<mosaic_0001>
module attributes {stable_mosaic.version = 11 : i64} {
  func.func @_conv_relu_pool_kernel(%arg0: i32, %arg1: memref<256x128xbf16, #tpu.memory_space<vmem>>, %arg2: memref<128x128xbf16, #tpu.memory_space<vmem>>, %arg3: memref<1x128xf32, #tpu.memory_space<vmem>>, %arg4: memref<64x128xf32, #tpu.memory_space<vmem>>) attributes {dimension_semantics = [#tpu.dimension_semantics<parallel>], iteration_bounds = array<i64: 2>, scalar_prefetch = 0 : i64, scratch_operands = 0 : i64, tpu.core_type = #tpu.core_type<tc>, window_params = [{transform_indices = @transform_0, window_bounds = array<i64: 256, 128>}, {pipeline_mode = #tpu.pipeline_mode<synchronous>, transform_indices = @transform_1, window_bounds = array<i64: 128, 128>}, {pipeline_mode = #tpu.pipeline_mode<synchronous>, transform_indices = @transform_2, window_bounds = array<i64: 1, 128>}, {transform_indices = @transform_3, window_bounds = array<i64: 64, 128>}]} {
    %c0 = arith.constant 0 : index
    %c0_0 = arith.constant 0 : index
    %0 = vector.load %arg1[%c0, %c0_0] : memref<256x128xbf16, #tpu.memory_space<vmem>>, vector<256x128xbf16>
    %c0_1 = arith.constant 0 : index
    %c0_2 = arith.constant 0 : index
    %1 = vector.load %arg2[%c0_1, %c0_2] : memref<128x128xbf16, #tpu.memory_space<vmem>>, vector<128x128xbf16>
    %cst = arith.constant dense<0.000000e+00> : vector<256x128xf32>
    %2 = tpu.matmul %0, %1, %cst {dimension_numbers = #tpu.dot_dimension_numbers<[1], [0], [0], [1], [0, 0, 1, 1], [], []>} : vector<256x128xbf16>, vector<128x128xbf16>, vector<256x128xf32> -> vector<256x128xf32>
    %3 = vector.extract_strided_slice %2 {offsets = [0, 0], sizes = [64, 128], strides = [1, 1]} : vector<256x128xf32> to vector<64x128xf32>
    %4 = vector.extract_strided_slice %2 {offsets = [64, 0], sizes = [64, 128], strides = [1, 1]} : vector<256x128xf32> to vector<64x128xf32>
    %5 = arith.maximumf %3, %4 : vector<64x128xf32>
    %6 = vector.extract_strided_slice %2 {offsets = [128, 0], sizes = [64, 128], strides = [1, 1]} : vector<256x128xf32> to vector<64x128xf32>
    %7 = vector.extract_strided_slice %2 {offsets = [192, 0], sizes = [64, 128], strides = [1, 1]} : vector<256x128xf32> to vector<64x128xf32>
    %8 = arith.maximumf %6, %7 : vector<64x128xf32>
    %9 = arith.maximumf %5, %8 : vector<64x128xf32>
    %c0_3 = arith.constant 0 : index
    %c0_4 = arith.constant 0 : index
    %10 = vector.load %arg3[%c0_3, %c0_4] : memref<1x128xf32, #tpu.memory_space<vmem>>, vector<1x128xf32>
    %11 = vector.broadcast %10 : vector<1x128xf32> to vector<64x128xf32>
    %12 = arith.addf %9, %11 : vector<64x128xf32>
    %cst_5 = arith.constant 0.000000e+00 : f32
    %13 = vector.broadcast %cst_5 : f32 to vector<64x128xf32>
    %14 = arith.maximumf %12, %13 : vector<64x128xf32>
    %c0_6 = arith.constant 0 : index
    %c0_7 = arith.constant 0 : index
    %15 = vector.load %arg4[%c0_6, %c0_7] : memref<64x128xf32, #tpu.memory_space<vmem>>, vector<64x128xf32>
    tpu.vector_store %arg4[%c0_6, %c0_7], %14 {strides = array<i32>} : memref<64x128xf32, #tpu.memory_space<vmem>>, vector<64x128xf32>,
    return
  }
  func.func @transform_0(%arg0: i32) -> (i32, i32) {
    %c0_i32 = arith.constant 0 : i32
    %c0_i32_0 = arith.constant 0 : i32
    return %arg0, %c0_i32 : i32, i32
  }
  func.func @transform_1(%arg0: i32) -> (i32, i32) {
    %c0_i32 = arith.constant 0 : i32
    %c0_i32_0 = arith.constant 0 : i32
    %c0_i32_1 = arith.constant 0 : i32
    return %c0_i32, %c0_i32_0 : i32, i32
  }
  func.func @transform_2(%arg0: i32) -> (i32, i32) {
    %c0_i32 = arith.constant 0 : i32
    %c0_i32_0 = arith.constant 0 : i32
    %c0_i32_1 = arith.constant 0 : i32
    return %c0_i32, %c0_i32_0 : i32, i32
  }
  func.func @transform_3(%arg0: i32) -> (i32, i32) {
    %c0_i32 = arith.constant 0 : i32
    %c0_i32_0 = arith.constant 0 : i32
    return %arg0, %c0_i32 : i32, i32
  }
}

module attributes {stable_mosaic.version = 11 : i64} {
  func.func @_conv_relu_pool_kernel(%arg0: i32, %arg1: memref<64x512xbf16, #tpu.memory_space<vmem>>, %arg2: memref<512x128xbf16, #tpu.memory_space<vmem>>, %arg3: memref<1x128xf32, #tpu.memory_space<vmem>>, %arg4: memref<16x128xf32, #tpu.memory_space<vmem>>) attributes {dimension_semantics = [#tpu.dimension_semantics<parallel>], iteration_bounds = array<i64: 2>, scalar_prefetch = 0 : i64, scratch_operands = 0 : i64, tpu.core_type = #tpu.core_type<tc>, window_params = [{transform_indices = @transform_0, window_bounds = array<i64: 64, 512>}, {pipeline_mode = #tpu.pipeline_mode<synchronous>, transform_indices = @transform_1, window_bounds = array<i64: 512, 128>}, {pipeline_mode = #tpu.pipeline_mode<synchronous>, transform_indices = @transform_2, window_bounds = array<i64: 1, 128>}, {transform_indices = @transform_3, window_bounds = array<i64: 16, 128>}]} {
    %c0 = arith.constant 0 : index
    %c0_0 = arith.constant 0 : index
    %0 = vector.load %arg1[%c0, %c0_0] : memref<64x512xbf16, #tpu.memory_space<vmem>>, vector<64x512xbf16>
    %c0_1 = arith.constant 0 : index
    %c0_2 = arith.constant 0 : index
    %1 = vector.load %arg2[%c0_1, %c0_2] : memref<512x128xbf16, #tpu.memory_space<vmem>>, vector<512x128xbf16>
    %cst = arith.constant dense<0.000000e+00> : vector<64x128xf32>
    %2 = tpu.matmul %0, %1, %cst {dimension_numbers = #tpu.dot_dimension_numbers<[1], [0], [0], [1], [0, 0, 1, 1], [], []>} : vector<64x512xbf16>, vector<512x128xbf16>, vector<64x128xf32> -> vector<64x128xf32>
    %3 = vector.extract_strided_slice %2 {offsets = [0, 0], sizes = [16, 128], strides = [1, 1]} : vector<64x128xf32> to vector<16x128xf32>
    %4 = vector.extract_strided_slice %2 {offsets = [16, 0], sizes = [16, 128], strides = [1, 1]} : vector<64x128xf32> to vector<16x128xf32>
    %5 = arith.maximumf %3, %4 : vector<16x128xf32>
    %6 = vector.extract_strided_slice %2 {offsets = [32, 0], sizes = [16, 128], strides = [1, 1]} : vector<64x128xf32> to vector<16x128xf32>
    %7 = vector.extract_strided_slice %2 {offsets = [48, 0], sizes = [16, 128], strides = [1, 1]} : vector<64x128xf32> to vector<16x128xf32>
    %8 = arith.maximumf %6, %7 : vector<16x128xf32>
    %9 = arith.maximumf %5, %8 : vector<16x128xf32>
    %c0_3 = arith.constant 0 : index
    %c0_4 = arith.constant 0 : index
    %10 = vector.load %arg3[%c0_3, %c0_4] : memref<1x128xf32, #tpu.memory_space<vmem>>, vector<1x128xf32>
    %11 = vector.broadcast %10 : vector<1x128xf32> to vector<16x128xf32>
    %12 = arith.addf %9, %11 : vector<16x128xf32>
    %cst_5 = arith.constant 0.000000e+00 : f32
    %13 = vector.broadcast %cst_5 : f32 to vector<16x128xf32>
    %14 = arith.maximumf %12, %13 : vector<16x128xf32>
    %c0_6 = arith.constant 0 : index
    %c0_7 = arith.constant 0 : index
    %15 = vector.load %arg4[%c0_6, %c0_7] : memref<16x128xf32, #tpu.memory_space<vmem>>, vector<16x128xf32>
    tpu.vector_store %arg4[%c0_6, %c0_7], %14 {strides = array<i32>} : memref<16x128xf32, #tpu.memory_space<vmem>>, vector<16x128xf32>,
    return
  }
  func.func @transform_0(%arg0: i32) -> (i32, i32) {
    %c0_i32 = arith.constant 0 : i32
    %c0_i32_0 = arith.constant 0 : i32
    return %arg0, %c0_i32 : i32, i32
  }
  func.func @transform_1(%arg0: i32) -> (i32, i32) {
    %c0_i32 = arith.constant 0 : i32
    %c0_i32_0 = arith.constant 0 : i32
    %c0_i32_1 = arith.constant 0 : i32
    return %c0_i32, %c0_i32_0 : i32, i32
  }
  func.func @transform_2(%arg0: i32) -> (i32, i32) {
    %c0_i32 = arith.constant 0 : i32
    %c0_i32_0 = arith.constant 0 : i32
    %c0_i32_1 = arith.constant 0 : i32
    return %c0_i32, %c0_i32_0 : i32, i32
  }
  func.func @transform_3(%arg0: i32) -> (i32, i32) {
    %c0_i32 = arith.constant 0 : i32
    %c0_i32_0 = arith.constant 0 : i32
    return %arg0, %c0_i32 : i32, i32
  }
}

module attributes {stable_mosaic.version = 11 : i64} {
  func.func @_conv_relu_fc_kernel(%arg0: i32, %arg1: memref<128x512xbf16, #tpu.memory_space<vmem>>, %arg2: memref<512x128xbf16, #tpu.memory_space<vmem>>, %arg3: memref<1x128xf32, #tpu.memory_space<vmem>>, %arg4: memref<2048x128xbf16, #tpu.memory_space<vmem>>, %arg5: memref<1x128xf32, #tpu.memory_space<vmem>>, %arg6: memref<8x128xf32, #tpu.memory_space<vmem>>) attributes {dimension_semantics = [#tpu.dimension_semantics<arbitrary>], iteration_bounds = array<i64: 1>, scalar_prefetch = 0 : i64, scratch_operands = 0 : i64, tpu.core_type = #tpu.core_type<tc>, window_params = [{pipeline_mode = #tpu.pipeline_mode<synchronous>, transform_indices = @transform_0, window_bounds = array<i64: 128, 512>}, {pipeline_mode = #tpu.pipeline_mode<synchronous>, transform_indices = @transform_1, window_bounds = array<i64: 512, 128>}, {pipeline_mode = #tpu.pipeline_mode<synchronous>, transform_indices = @transform_2, window_bounds = array<i64: 1, 128>}, {pipeline_mode = #tpu.pipeline_mode<synchronous>, transform_indices = @transform_3, window_bounds = array<i64: 2048, 128>}, {pipeline_mode = #tpu.pipeline_mode<synchronous>, transform_indices = @transform_4, window_bounds = array<i64: 1, 128>}, {pipeline_mode = #tpu.pipeline_mode<synchronous>, transform_indices = @transform_5, window_bounds = array<i64: 8, 128>}]} {
    %c0 = arith.constant 0 : index
    %c0_0 = arith.constant 0 : index
    %0 = vector.load %arg1[%c0, %c0_0] : memref<128x512xbf16, #tpu.memory_space<vmem>>, vector<128x512xbf16>
    %c0_1 = arith.constant 0 : index
    %c0_2 = arith.constant 0 : index
    %1 = vector.load %arg2[%c0_1, %c0_2] : memref<512x128xbf16, #tpu.memory_space<vmem>>, vector<512x128xbf16>
    %cst = arith.constant dense<0.000000e+00> : vector<128x128xf32>
    %2 = tpu.matmul %0, %1, %cst {dimension_numbers = #tpu.dot_dimension_numbers<[1], [0], [0], [1], [0, 0, 1, 1], [], []>} : vector<128x512xbf16>, vector<512x128xbf16>, vector<128x128xf32> -> vector<128x128xf32>
    %c0_3 = arith.constant 0 : index
    %c0_4 = arith.constant 0 : index
    %3 = vector.load %arg3[%c0_3, %c0_4] : memref<1x128xf32, #tpu.memory_space<vmem>>, vector<1x128xf32>
    %4 = vector.broadcast %3 : vector<1x128xf32> to vector<128x128xf32>
    %5 = arith.addf %2, %4 : vector<128x128xf32>
    %cst_5 = arith.constant 0.000000e+00 : f32
    %6 = vector.broadcast %cst_5 : f32 to vector<128x128xf32>
    %7 = arith.maximumf %5, %6 : vector<128x128xf32>
    %cst_6 = arith.constant 0.000000e+00 : f32
    %8 = vector.broadcast %cst_6 : f32 to vector<8x128xf32>
    %9 = vector.extract_strided_slice %7 {offsets = [0, 0], sizes = [8, 128], strides = [1, 1]} : vector<128x128xf32> to vector<8x128xf32>
    %10 = arith.truncf %9 : vector<8x128xf32> to vector<8x128xbf16>
    %c0_7 = arith.constant 0 : index
    %c0_8 = arith.constant 0 : index
    %11 = vector.load %arg4[%c0_7, %c0_8] : memref<2048x128xbf16, #tpu.memory_space<vmem>>, vector<128x128xbf16>
    %cst_9 = arith.constant dense<0.000000e+00> : vector<8x128xf32>
    %12 = tpu.matmul %10, %11, %cst_9 {dimension_numbers = #tpu.dot_dimension_numbers<[1], [0], [0], [1], [0, 0, 1, 1], [], []>} : vector<8x128xbf16>, vector<128x128xbf16>, vector<8x128xf32> -> vector<8x128xf32>
    %13 = arith.addf %8, %12 : vector<8x128xf32>
    %14 = vector.extract_strided_slice %7 {offsets = [8, 0], sizes = [8, 128], strides = [1, 1]} : vector<128x128xf32> to vector<8x128xf32>
    %15 = arith.truncf %14 : vector<8x128xf32> to vector<8x128xbf16>
    %c128 = arith.constant 128 : index
    %c0_10 = arith.constant 0 : index
    %16 = vector.load %arg4[%c128, %c0_10] : memref<2048x128xbf16, #tpu.memory_space<vmem>>, vector<128x128xbf16>
    %cst_11 = arith.constant dense<0.000000e+00> : vector<8x128xf32>
    %17 = tpu.matmul %15, %16, %cst_11 {dimension_numbers = #tpu.dot_dimension_numbers<[1], [0], [0], [1], [0, 0, 1, 1], [], []>} : vector<8x128xbf16>, vector<128x128xbf16>, vector<8x128xf32> -> vector<8x128xf32>
    %18 = arith.addf %13, %17 : vector<8x128xf32>
    %19 = vector.extract_strided_slice %7 {offsets = [16, 0], sizes = [8, 128], strides = [1, 1]} : vector<128x128xf32> to vector<8x128xf32>
    %20 = arith.truncf %19 : vector<8x128xf32> to vector<8x128xbf16>
    %c256 = arith.constant 256 : index
    %c0_12 = arith.constant 0 : index
    %21 = vector.load %arg4[%c256, %c0_12] : memref<2048x128xbf16, #tpu.memory_space<vmem>>, vector<128x128xbf16>
    %cst_13 = arith.constant dense<0.000000e+00> : vector<8x128xf32>
    %22 = tpu.matmul %20, %21, %cst_13 {dimension_numbers = #tpu.dot_dimension_numbers<[1], [0], [0], [1], [0, 0, 1, 1], [], []>} : vector<8x128xbf16>, vector<128x128xbf16>, vector<8x128xf32> -> vector<8x128xf32>
    %23 = arith.addf %18, %22 : vector<8x128xf32>
    %24 = vector.extract_strided_slice %7 {offsets = [24, 0], sizes = [8, 128], strides = [1, 1]} : vector<128x128xf32> to vector<8x128xf32>
    %25 = arith.truncf %24 : vector<8x128xf32> to vector<8x128xbf16>
    %c384 = arith.constant 384 : index
    %c0_14 = arith.constant 0 : index
    %26 = vector.load %arg4[%c384, %c0_14] : memref<2048x128xbf16, #tpu.memory_space<vmem>>, vector<128x128xbf16>
    %cst_15 = arith.constant dense<0.000000e+00> : vector<8x128xf32>
    %27 = tpu.matmul %25, %26, %cst_15 {dimension_numbers = #tpu.dot_dimension_numbers<[1], [0], [0], [1], [0, 0, 1, 1], [], []>} : vector<8x128xbf16>, vector<128x128xbf16>, vector<8x128xf32> -> vector<8x128xf32>
    %28 = arith.addf %23, %27 : vector<8x128xf32>
    %29 = vector.extract_strided_slice %7 {offsets = [32, 0], sizes = [8, 128], strides = [1, 1]} : vector<128x128xf32> to vector<8x128xf32>
    %30 = arith.truncf %29 : vector<8x128xf32> to vector<8x128xbf16>
    %c512 = arith.constant 512 : index
    %c0_16 = arith.constant 0 : index
    %31 = vector.load %arg4[%c512, %c0_16] : memref<2048x128xbf16, #tpu.memory_space<vmem>>, vector<128x128xbf16>
    %cst_17 = arith.constant dense<0.000000e+00> : vector<8x128xf32>
    %32 = tpu.matmul %30, %31, %cst_17 {dimension_numbers = #tpu.dot_dimension_numbers<[1], [0], [0], [1], [0, 0, 1, 1], [], []>} : vector<8x128xbf16>, vector<128x128xbf16>, vector<8x128xf32> -> vector<8x128xf32>
    %33 = arith.addf %28, %32 : vector<8x128xf32>
    %34 = vector.extract_strided_slice %7 {offsets = [40, 0], sizes = [8, 128], strides = [1, 1]} : vector<128x128xf32> to vector<8x128xf32>
    %35 = arith.truncf %34 : vector<8x128xf32> to vector<8x128xbf16>
    %c640 = arith.constant 640 : index
    %c0_18 = arith.constant 0 : index
    %36 = vector.load %arg4[%c640, %c0_18] : memref<2048x128xbf16, #tpu.memory_space<vmem>>, vector<128x128xbf16>
    %cst_19 = arith.constant dense<0.000000e+00> : vector<8x128xf32>
    %37 = tpu.matmul %35, %36, %cst_19 {dimension_numbers = #tpu.dot_dimension_numbers<[1], [0], [0], [1], [0, 0, 1, 1], [], []>} : vector<8x128xbf16>, vector<128x128xbf16>, vector<8x128xf32> -> vector<8x128xf32>
    %38 = arith.addf %33, %37 : vector<8x128xf32>
    %39 = vector.extract_strided_slice %7 {offsets = [48, 0], sizes = [8, 128], strides = [1, 1]} : vector<128x128xf32> to vector<8x128xf32>
    %40 = arith.truncf %39 : vector<8x128xf32> to vector<8x128xbf16>
    %c768 = arith.constant 768 : index
    %c0_20 = arith.constant 0 : index
    %41 = vector.load %arg4[%c768, %c0_20] : memref<2048x128xbf16, #tpu.memory_space<vmem>>, vector<128x128xbf16>
    %cst_21 = arith.constant dense<0.000000e+00> : vector<8x128xf32>
    %42 = tpu.matmul %40, %41, %cst_21 {dimension_numbers = #tpu.dot_dimension_numbers<[1], [0], [0], [1], [0, 0, 1, 1], [], []>} : vector<8x128xbf16>, vector<128x128xbf16>, vector<8x128xf32> -> vector<8x128xf32>
    %43 = arith.addf %38, %42 : vector<8x128xf32>
    %44 = vector.extract_strided_slice %7 {offsets = [56, 0], sizes = [8, 128], strides = [1, 1]} : vector<128x128xf32> to vector<8x128xf32>
    %45 = arith.truncf %44 : vector<8x128xf32> to vector<8x128xbf16>
    %c896 = arith.constant 896 : index
    %c0_22 = arith.constant 0 : index
    %46 = vector.load %arg4[%c896, %c0_22] : memref<2048x128xbf16, #tpu.memory_space<vmem>>, vector<128x128xbf16>
    %cst_23 = arith.constant dense<0.000000e+00> : vector<8x128xf32>
    %47 = tpu.matmul %45, %46, %cst_23 {dimension_numbers = #tpu.dot_dimension_numbers<[1], [0], [0], [1], [0, 0, 1, 1], [], []>} : vector<8x128xbf16>, vector<128x128xbf16>, vector<8x128xf32> -> vector<8x128xf32>
    %48 = arith.addf %43, %47 : vector<8x128xf32>
    %49 = vector.extract_strided_slice %7 {offsets = [64, 0], sizes = [8, 128], strides = [1, 1]} : vector<128x128xf32> to vector<8x128xf32>
    %50 = arith.truncf %49 : vector<8x128xf32> to vector<8x128xbf16>
    %c1024 = arith.constant 1024 : index
    %c0_24 = arith.constant 0 : index
    %51 = vector.load %arg4[%c1024, %c0_24] : memref<2048x128xbf16, #tpu.memory_space<vmem>>, vector<128x128xbf16>
    %cst_25 = arith.constant dense<0.000000e+00> : vector<8x128xf32>
    %52 = tpu.matmul %50, %51, %cst_25 {dimension_numbers = #tpu.dot_dimension_numbers<[1], [0], [0], [1], [0, 0, 1, 1], [], []>} : vector<8x128xbf16>, vector<128x128xbf16>, vector<8x128xf32> -> vector<8x128xf32>
    %53 = arith.addf %48, %52 : vector<8x128xf32>
    %54 = vector.extract_strided_slice %7 {offsets = [72, 0], sizes = [8, 128], strides = [1, 1]} : vector<128x128xf32> to vector<8x128xf32>
    %55 = arith.truncf %54 : vector<8x128xf32> to vector<8x128xbf16>
    %c1152 = arith.constant 1152 : index
    %c0_26 = arith.constant 0 : index
    %56 = vector.load %arg4[%c1152, %c0_26] : memref<2048x128xbf16, #tpu.memory_space<vmem>>, vector<128x128xbf16>
    %cst_27 = arith.constant dense<0.000000e+00> : vector<8x128xf32>
    %57 = tpu.matmul %55, %56, %cst_27 {dimension_numbers = #tpu.dot_dimension_numbers<[1], [0], [0], [1], [0, 0, 1, 1], [], []>} : vector<8x128xbf16>, vector<128x128xbf16>, vector<8x128xf32> -> vector<8x128xf32>
    %58 = arith.addf %53, %57 : vector<8x128xf32>
    %59 = vector.extract_strided_slice %7 {offsets = [80, 0], sizes = [8, 128], strides = [1, 1]} : vector<128x128xf32> to vector<8x128xf32>
    %60 = arith.truncf %59 : vector<8x128xf32> to vector<8x128xbf16>
    %c1280 = arith.constant 1280 : index
    %c0_28 = arith.constant 0 : index
    %61 = vector.load %arg4[%c1280, %c0_28] : memref<2048x128xbf16, #tpu.memory_space<vmem>>, vector<128x128xbf16>
    %cst_29 = arith.constant dense<0.000000e+00> : vector<8x128xf32>
    %62 = tpu.matmul %60, %61, %cst_29 {dimension_numbers = #tpu.dot_dimension_numbers<[1], [0], [0], [1], [0, 0, 1, 1], [], []>} : vector<8x128xbf16>, vector<128x128xbf16>, vector<8x128xf32> -> vector<8x128xf32>
    %63 = arith.addf %58, %62 : vector<8x128xf32>
    %64 = vector.extract_strided_slice %7 {offsets = [88, 0], sizes = [8, 128], strides = [1, 1]} : vector<128x128xf32> to vector<8x128xf32>
    %65 = arith.truncf %64 : vector<8x128xf32> to vector<8x128xbf16>
    %c1408 = arith.constant 1408 : index
    %c0_30 = arith.constant 0 : index
    %66 = vector.load %arg4[%c1408, %c0_30] : memref<2048x128xbf16, #tpu.memory_space<vmem>>, vector<128x128xbf16>
    %cst_31 = arith.constant dense<0.000000e+00> : vector<8x128xf32>
    %67 = tpu.matmul %65, %66, %cst_31 {dimension_numbers = #tpu.dot_dimension_numbers<[1], [0], [0], [1], [0, 0, 1, 1], [], []>} : vector<8x128xbf16>, vector<128x128xbf16>, vector<8x128xf32> -> vector<8x128xf32>
    %68 = arith.addf %63, %67 : vector<8x128xf32>
    %69 = vector.extract_strided_slice %7 {offsets = [96, 0], sizes = [8, 128], strides = [1, 1]} : vector<128x128xf32> to vector<8x128xf32>
    %70 = arith.truncf %69 : vector<8x128xf32> to vector<8x128xbf16>
    %c1536 = arith.constant 1536 : index
    %c0_32 = arith.constant 0 : index
    %71 = vector.load %arg4[%c1536, %c0_32] : memref<2048x128xbf16, #tpu.memory_space<vmem>>, vector<128x128xbf16>
    %cst_33 = arith.constant dense<0.000000e+00> : vector<8x128xf32>
    %72 = tpu.matmul %70, %71, %cst_33 {dimension_numbers = #tpu.dot_dimension_numbers<[1], [0], [0], [1], [0, 0, 1, 1], [], []>} : vector<8x128xbf16>, vector<128x128xbf16>, vector<8x128xf32> -> vector<8x128xf32>
    %73 = arith.addf %68, %72 : vector<8x128xf32>
    %74 = vector.extract_strided_slice %7 {offsets = [104, 0], sizes = [8, 128], strides = [1, 1]} : vector<128x128xf32> to vector<8x128xf32>
    %75 = arith.truncf %74 : vector<8x128xf32> to vector<8x128xbf16>
    %c1664 = arith.constant 1664 : index
    %c0_34 = arith.constant 0 : index
    %76 = vector.load %arg4[%c1664, %c0_34] : memref<2048x128xbf16, #tpu.memory_space<vmem>>, vector<128x128xbf16>
    %cst_35 = arith.constant dense<0.000000e+00> : vector<8x128xf32>
    %77 = tpu.matmul %75, %76, %cst_35 {dimension_numbers = #tpu.dot_dimension_numbers<[1], [0], [0], [1], [0, 0, 1, 1], [], []>} : vector<8x128xbf16>, vector<128x128xbf16>, vector<8x128xf32> -> vector<8x128xf32>
    %78 = arith.addf %73, %77 : vector<8x128xf32>
    %79 = vector.extract_strided_slice %7 {offsets = [112, 0], sizes = [8, 128], strides = [1, 1]} : vector<128x128xf32> to vector<8x128xf32>
    %80 = arith.truncf %79 : vector<8x128xf32> to vector<8x128xbf16>
    %c1792 = arith.constant 1792 : index
    %c0_36 = arith.constant 0 : index
    %81 = vector.load %arg4[%c1792, %c0_36] : memref<2048x128xbf16, #tpu.memory_space<vmem>>, vector<128x128xbf16>
    %cst_37 = arith.constant dense<0.000000e+00> : vector<8x128xf32>
    %82 = tpu.matmul %80, %81, %cst_37 {dimension_numbers = #tpu.dot_dimension_numbers<[1], [0], [0], [1], [0, 0, 1, 1], [], []>} : vector<8x128xbf16>, vector<128x128xbf16>, vector<8x128xf32> -> vector<8x128xf32>
    %83 = arith.addf %78, %82 : vector<8x128xf32>
    %84 = vector.extract_strided_slice %7 {offsets = [120, 0], sizes = [8, 128], strides = [1, 1]} : vector<128x128xf32> to vector<8x128xf32>
    %85 = arith.truncf %84 : vector<8x128xf32> to vector<8x128xbf16>
    %c1920 = arith.constant 1920 : index
    %c0_38 = arith.constant 0 : index
    %86 = vector.load %arg4[%c1920, %c0_38] : memref<2048x128xbf16, #tpu.memory_space<vmem>>, vector<128x128xbf16>
    %cst_39 = arith.constant dense<0.000000e+00> : vector<8x128xf32>
    %87 = tpu.matmul %85, %86, %cst_39 {dimension_numbers = #tpu.dot_dimension_numbers<[1], [0], [0], [1], [0, 0, 1, 1], [], []>} : vector<8x128xbf16>, vector<128x128xbf16>, vector<8x128xf32> -> vector<8x128xf32>
    %88 = arith.addf %83, %87 : vector<8x128xf32>
    %c0_40 = arith.constant 0 : index
    %c0_41 = arith.constant 0 : index
    %89 = vector.load %arg5[%c0_40, %c0_41] : memref<1x128xf32, #tpu.memory_space<vmem>>, vector<1x128xf32>
    %90 = vector.broadcast %89 : vector<1x128xf32> to vector<8x128xf32>
    %91 = arith.addf %88, %90 : vector<8x128xf32>
    %c0_42 = arith.constant 0 : index
    %c0_43 = arith.constant 0 : index
    %92 = vector.load %arg6[%c0_42, %c0_43] : memref<8x128xf32, #tpu.memory_space<vmem>>, vector<8x128xf32>
    tpu.vector_store %arg6[%c0_42, %c0_43], %91 {strides = array<i32>} : memref<8x128xf32, #tpu.memory_space<vmem>>, vector<8x128xf32>,
    return
  }
  func.func @transform_0(%arg0: i32) -> (i32, i32) {
    %c0_i32 = arith.constant 0 : i32
    %c0_i32_0 = arith.constant 0 : i32
    %c0_i32_1 = arith.constant 0 : i32
    return %c0_i32, %c0_i32_0 : i32, i32
  }
  func.func @transform_1(%arg0: i32) -> (i32, i32) {
    %c0_i32 = arith.constant 0 : i32
    %c0_i32_0 = arith.constant 0 : i32
    %c0_i32_1 = arith.constant 0 : i32
    return %c0_i32, %c0_i32_0 : i32, i32
  }
  func.func @transform_2(%arg0: i32) -> (i32, i32) {
    %c0_i32 = arith.constant 0 : i32
    %c0_i32_0 = arith.constant 0 : i32
    %c0_i32_1 = arith.constant 0 : i32
    return %c0_i32, %c0_i32_0 : i32, i32
  }
  func.func @transform_3(%arg0: i32) -> (i32, i32) {
    %c0_i32 = arith.constant 0 : i32
    %c0_i32_0 = arith.constant 0 : i32
    %c0_i32_1 = arith.constant 0 : i32
    return %c0_i32, %c0_i32_0 : i32, i32
  }
  func.func @transform_4(%arg0: i32) -> (i32, i32) {
    %c0_i32 = arith.constant 0 : i32
    %c0_i32_0 = arith.constant 0 : i32
    %c0_i32_1 = arith.constant 0 : i32
    return %c0_i32, %c0_i32_0 : i32, i32
  }
  func.func @transform_5(%arg0: i32) -> (i32, i32) {
    %c0_i32 = arith.constant 0 : i32
    %c0_i32_0 = arith.constant 0 : i32
    %c0_i32_1 = arith.constant 0 : i32
    return %c0_i32, %c0_i32_0 : i32, i32
  }
}

</mosaic_0001>

<llo_original>
// kernel: cnn_forward.3
$region0: #{cnn_forward.3}
  #allocation0 [shape = 'u32[]', space=smem, size = 0x4, offset = 0x4, fixed_abs, tag = 'smem constant byte address 0x4 - core index']
  #allocation1 [shape = 'u32[144,128]{1,0:T(1,128)}', space=vmem, size = 0x12000, scoped, tag = 'internal scratch']
  %s0 = inlined_call_operand.vmem [shape: bf16[512,128], index: 0, kind: input, shape index: {}]
  %s1 = inlined_call_operand.vmem [shape: bf16[128,128], index: 1, kind: input, shape index: {}]
  %s2 = inlined_call_operand.vmem [shape: f32[1,128], index: 2, kind: input, shape index: {}]
  %s3 = inlined_call_operand.vmem [shape: f32[128,128], index: 3, kind: output, shape index: {}]
  %s4 = sld [smem:[#allocation0]]
  $region45: #{cnn_forward.3} parent=0
    _
  %s6 = ssub.s32 1, %s4
  %s7 = scalar_select 0, %s6, %s4
  loop: start=0, step=1, limit=4
  $region2: #{cnn_forward.3} parent=0 // loop_pre_header
    _
  $region3: #{cnn_forward.3} parent=0 // loop_header
    %s9 = sphi 0, %s13
    %p10 = scmp.ge.s32.totalorder %s9, 4
    %s19 = sphi 0, %s21
    %s22 = sphi 0, %s19
    %s23 = sphi 0, %s22
    %s39 = sphi 0, %s23
    %s43 = sphi 0, %s43
    %s45 = sphi 0, %s43
    %s46 = sphi 0, %s45
    %s60 = sphi 0, %s46
    %s64 = sphi 0, %s64
    %s66 = sphi 0, %s64
    %s67 = sphi 0, %s66
    %s81 = sphi 0, %s67
    %s87 = sphi 0, %s89
    %s90 = sphi 0, %s87
    %s91 = sphi 0, %s90
    %s107 = sphi 0, %s91
  $region4: #{cnn_forward.3} parent=0 // loop_header_branch
    %12 = sbr.rel (%p10) target = $region8
  $region5: #{cnn_forward.3} parent=0 // loop_body
    %s14 = ssub.s32 %s9, 1
    %s15 = ssub.s32 %s9, 2
    %s16 = sadd.s32 %s9, 1
    %s17 = ssub.s32 %s9, %s16
    %p18 = scmp.eq.s32.totalorder %s17, 0
    %s20 = sadd.s32 %s19, 1
    %s21 = scalar_select %p18, %s19, %s20
    %p24 = pneg %p18
    %p25 = scmp.eq.s32.totalorder %s9, 1
    %p26 = por %p24, %p25
    %p27 = scmp.ne.s32.totalorder %s19, %s22
    %p28 = scmp.eq.s32.totalorder %s9, 0
    %p29 = por %p27, %p28
    %p30 = scmp.ne.s32.totalorder %s19, %s22
    %p31 = scmp.eq.s32.totalorder %s14, 1
    %p32 = por %p30, %p31
    %p33 = scmp.ne.s32.totalorder %s22, %s23
    %p34 = scmp.eq.s32.totalorder %s14, 0
    %p35 = por %p33, %p34
    %p36 = scmp.ne.s32.totalorder %s22, %s23
    %p37 = scmp.eq.s32.totalorder %s15, 1
    %p38 = por %p36, %p37
    %p40 = scmp.ne.s32.totalorder %s23, %s39
    %p41 = scmp.eq.s32.totalorder %s15, 0
    %p42 = por %p40, %p41
    %s44 = sadd.s32 %s43, 1
    %p47 = scmp.eq.s32.totalorder %s9, 1
    %p48 = scmp.ne.s32.totalorder %s43, %s45
    %p49 = scmp.eq.s32.totalorder %s9, 0
    %p50 = por %p48, %p49
    %p51 = scmp.ne.s32.totalorder %s43, %s45
    %p52 = scmp.eq.s32.totalorder %s14, 1
    %p53 = por %p51, %p52
    %p54 = scmp.ne.s32.totalorder %s45, %s46
    %p55 = scmp.eq.s32.totalorder %s14, 0
    %p56 = por %p54, %p55
    %p57 = scmp.ne.s32.totalorder %s45, %s46
    %p58 = scmp.eq.s32.totalorder %s15, 1
    %p59 = por %p57, %p58
    %p61 = scmp.ne.s32.totalorder %s46, %s60
    %p62 = scmp.eq.s32.totalorder %s15, 0
    %p63 = por %p61, %p62
    %s65 = sadd.s32 %s64, 1
    %p68 = scmp.eq.s32.totalorder %s9, 1
    %p69 = scmp.ne.s32.totalorder %s64, %s66
    %p70 = scmp.eq.s32.totalorder %s9, 0
    %p71 = por %p69, %p70
    %p72 = scmp.ne.s32.totalorder %s64, %s66
    %p73 = scmp.eq.s32.totalorder %s14, 1
    %p74 = por %p72, %p73
    %p75 = scmp.ne.s32.totalorder %s66, %s67
    %p76 = scmp.eq.s32.totalorder %s14, 0
    %p77 = por %p75, %p76
    %p78 = scmp.ne.s32.totalorder %s66, %s67
    %p79 = scmp.eq.s32.totalorder %s15, 1
    %p80 = por %p78, %p79
    %p82 = scmp.ne.s32.totalorder %s67, %s81
    %p83 = scmp.eq.s32.totalorder %s15, 0
    %p84 = por %p82, %p83
    %s85 = ssub.s32 %s9, %s16
    %p86 = scmp.eq.s32.totalorder %s85, 0
    %s88 = sadd.s32 %s87, 1
    %s89 = scalar_select %p86, %s87, %s88
    %p92 = pneg %p86
    %p93 = scmp.eq.s32.totalorder %s9, 1
    %p94 = por %p92, %p93
    %p95 = scmp.ne.s32.totalorder %s87, %s90
    %p96 = scmp.eq.s32.totalorder %s9, 0
    %p97 = por %p95, %p96
    %p98 = scmp.ne.s32.totalorder %s87, %s90
    %p99 = scmp.eq.s32.totalorder %s14, 1
    %p100 = por %p98, %p99
    %p101 = scmp.ne.s32.totalorder %s90, %s91
    %p102 = scmp.eq.s32.totalorder %s14, 0
    %p103 = por %p101, %p102
    %p104 = scmp.ne.s32.totalorder %s90, %s91
    %p105 = scmp.eq.s32.totalorder %s15, 1
    %p106 = por %p104, %p105
    %p108 = scmp.ne.s32.totalorder %s91, %s107
    %p109 = scmp.eq.s32.totalorder %s15, 0
    %p110 = por %p108, %p109
    %p111 = scmp.le.s32.totalorder 1, %s9
    %p112 = scmp.lt.s32.totalorder %s9, 3
    %p113 = pnand %p111, %p112
    %p114 = pneg %p113
    // Predicated region
    $region9: #{cnn_forward.3} parent=5 // pred_check
      _
    $region10: #{cnn_forward.3} parent=5 // pred_check_branch
      %116 = sbr.rel (%p113) target = $region12
    $region11: #{cnn_forward.3} parent=5 // pred_region
      %s117 = ssub.s32 %s9, 1
      // Predicated region
      $region13: #{cnn_forward.3} parent=11 // pred_check
        %p118 = pneg %p56
      $region14: #{cnn_forward.3} parent=11 // pred_check_branch
        %120 = sbr.rel (%p118) target = $region16
      $region15: #{cnn_forward.3} parent=11 // pred_region
        _
      $region16: #{cnn_forward.3} parent=11 // pred_fallthru
        _
      // Predicated region
      $region17: #{cnn_forward.3} parent=11 // pred_check
        %p121 = pneg %p77
      $region18: #{cnn_forward.3} parent=11 // pred_check_branch
        %123 = sbr.rel (%p121) target = $region20
      $region19: #{cnn_forward.3} parent=11 // pred_region
        _
      $region20: #{cnn_forward.3} parent=11 // pred_fallthru
        _
    $region12: #{cnn_forward.3} parent=5 // pred_fallthru
      _
    %p124 = scmp.lt.s32.totalorder %s9, 2
    // Predicated region
    $region21: #{cnn_forward.3} parent=5 // pred_check
      %p125 = pneg %p124
    $region22: #{cnn_forward.3} parent=5 // pred_check_branch
      %127 = sbr.rel (%p125) target = $region24
    $region23: #{cnn_forward.3} parent=5 // pred_region
      // Predicated region
      $region25: #{cnn_forward.3} parent=23 // pred_check
        %p128 = pneg %p29
      $region26: #{cnn_forward.3} parent=23 // pred_check_branch
        %130 = sbr.rel (%p128) target = $region28
      $region27: #{cnn_forward.3} parent=23 // pred_region
        %s131 = smul.u32 32, %s9
        %p132 = scmp.lt.s32.totalorder %s131, 63
        %s133 = scalar_select %p132, %s131, 63
        %s134 = smul.addr %s133, 4
        %s135 = scalar_lea.vmem %s0, %s134
        %s136 = smul.u32 32, %s9
      $region28: #{cnn_forward.3} parent=23 // pred_fallthru
        _
    $region24: #{cnn_forward.3} parent=5 // pred_fallthru
      _
    %p137 = scmp.le.s32.totalorder 1, %s9
    %p138 = scmp.lt.s32.totalorder %s9, 3
    %p139 = pnand %p137, %p138
    %p140 = pneg %p139
    // Predicated region
    $region29: #{cnn_forward.3} parent=5 // pred_check
      _
    $region30: #{cnn_forward.3} parent=5 // pred_check_branch
      %142 = sbr.rel (%p139) target = $region32
    $region31: #{cnn_forward.3} parent=5 // pred_region
      %s143 = ssub.s32 %s9, 1
      %s144 = smul.u32 32, %s14
      %p145 = scmp.lt.s32.totalorder %s144, 63
      %s146 = scalar_select %p145, %s144, 63
      %s147 = smul.addr %s146, 4
      %s148 = scalar_lea.vmem %s0, %s147
      %p149 = pneg %p35
      %p150 = pneg %p32
      %p151 = pneg %p56
      %p152 = pneg %p53
      %p153 = pneg %p77
      %p154 = pneg %p74
      %p155 = pneg %p103
      %p156 = pneg %p100
      %s157 = smul.u32 8, %s14
      %p158 = scmp.lt.s32.totalorder %s157, 15
      %s159 = scalar_select %p158, %s157, 15
      %s160 = smul.addr %s159, 8
      %s161 = scalar_lea.vmem %s3, %s160
      %s162 = smul.u32 32, %s14
      %p163 = scmp.lt.s32.totalorder %s162, 63
      %s164 = scalar_select %p163, %s162, 63
      %s165 = smul.addr %s164, 4
      %s166 = scalar_lea.vmem %s0, %s165
      %s167 = smul.u32 32, %s14
      %s168 = smul.u32 8, %s14
      %p169 = scmp.lt.s32.totalorder %s168, 15
      %s170 = scalar_select %p169, %s168, 15
      %s171 = smul.addr %s170, 8
      %s172 = scalar_lea.vmem %s3, %s171
      %s173 = smul.u32 8, %s14
      %v175 = vld [vmem:[%s166] sm:$0xf]
      %v176 = vld [vmem:[%s166 + $0x4] sm:$0xf]
      %v177 = vld [vmem:[%s166 + $0x8] sm:$0xf]
      %v178 = vld [vmem:[%s166 + $0xc] sm:$0xf]
      %v179 = vld [vmem:[%s166 + $0x10] sm:$0xf]
      %v180 = vld [vmem:[%s166 + $0x14] sm:$0xf]
      %v181 = vld [vmem:[%s166 + $0x18] sm:$0xf]
      %v182 = vld [vmem:[%s166 + $0x1c] sm:$0xf]
      %v183 = vld [vmem:[%s166 + $0x20] sm:$0xf]
      %v184 = vld [vmem:[%s166 + $0x24] sm:$0xf]
      %v185 = vld [vmem:[%s166 + $0x28] sm:$0xf]
      %v186 = vld [vmem:[%s166 + $0x2c] sm:$0xf]
      %v187 = vld [vmem:[%s166 + $0x30] sm:$0xf]
      %v188 = vld [vmem:[%s166 + $0x34] sm:$0xf]
      %v189 = vld [vmem:[%s166 + $0x38] sm:$0xf]
      %v190 = vld [vmem:[%s166 + $0x3c] sm:$0xf]
      %v191 = vld [vmem:[%s166 + $0x40] sm:$0xf]
      %v192 = vld [vmem:[%s166 + $0x44] sm:$0xf]
      %v193 = vld [vmem:[%s166 + $0x48] sm:$0xf]
      %v194 = vld [vmem:[%s166 + $0x4c] sm:$0xf]
      %v195 = vld [vmem:[%s166 + $0x50] sm:$0xf]
      %v196 = vld [vmem:[%s166 + $0x54] sm:$0xf]
      %v197 = vld [vmem:[%s166 + $0x58] sm:$0xf]
      %v198 = vld [vmem:[%s166 + $0x5c] sm:$0xf]
      %v199 = vld [vmem:[%s166 + $0x60] sm:$0xf]
      %v200 = vld [vmem:[%s166 + $0x64] sm:$0xf]
      %v201 = vld [vmem:[%s166 + $0x68] sm:$0xf]
      %v202 = vld [vmem:[%s166 + $0x6c] sm:$0xf]
      %v203 = vld [vmem:[%s166 + $0x70] sm:$0xf]
      %v204 = vld [vmem:[%s166 + $0x74] sm:$0xf]
      %v205 = vld [vmem:[%s166 + $0x78] sm:$0xf]
      %v206 = vld [vmem:[%s166 + $0x7c] sm:$0xf]
      %v207 = vld [vmem:[%s1] sm:$0xf]
      %v208 = vld [vmem:[%s1 + $0x4] sm:$0xf]
      %v209 = vld [vmem:[%s1 + $0x8] sm:$0xf]
      %v210 = vld [vmem:[%s1 + $0xc] sm:$0xf]
      %v211 = vld [vmem:[%s1 + $0x10] sm:$0xf]
      %v212 = vld [vmem:[%s1 + $0x14] sm:$0xf]
      %v213 = vld [vmem:[%s1 + $0x18] sm:$0xf]
      %v214 = vld [vmem:[%s1 + $0x1c] sm:$0xf]
      %v215 = vld [vmem:[%s1 + $0x20] sm:$0xf]
      %v216 = vld [vmem:[%s1 + $0x24] sm:$0xf]
      %v217 = vld [vmem:[%s1 + $0x28] sm:$0xf]
      %v218 = vld [vmem:[%s1 + $0x2c] sm:$0xf]
      %v219 = vld [vmem:[%s1 + $0x30] sm:$0xf]
      %v220 = vld [vmem:[%s1 + $0x34] sm:$0xf]
      %v221 = vld [vmem:[%s1 + $0x38] sm:$0xf]
      %v222 = vld [vmem:[%s1 + $0x3c] sm:$0xf]
      %v255 = vunpack.c.l.b16 %v175
      %v256 = vunpack.c.l.b16 %v176
      %v257 = vunpack.c.l.b16 %v177
      %v258 = vunpack.c.l.b16 %v178
      %v259 = vunpack.c.l.b16 %v179
      %v260 = vunpack.c.l.b16 %v180
      %v261 = vunpack.c.l.b16 %v181
      %v262 = vunpack.c.l.b16 %v182
      %v263 = vunpack.c.l.b16 %v183
      %v264 = vunpack.c.l.b16 %v184
      %v265 = vunpack.c.l.b16 %v185
      %v266 = vunpack.c.l.b16 %v186
      %v267 = vunpack.c.l.b16 %v187
      %v268 = vunpack.c.l.b16 %v188
      %v269 = vunpack.c.l.b16 %v189
      %v270 = vunpack.c.l.b16 %v190
      %v271 = vunpack.c.l.b16 %v191
      %v272 = vunpack.c.l.b16 %v192
      %v273 = vunpack.c.l.b16 %v193
      %v274 = vunpack.c.l.b16 %v194
      %v275 = vunpack.c.l.b16 %v195
      %v276 = vunpack.c.l.b16 %v196
      %v277 = vunpack.c.l.b16 %v197
      %v278 = vunpack.c.l.b16 %v198
      %v279 = vunpack.c.l.b16 %v199
      %v280 = vunpack.c.l.b16 %v200
      %v281 = vunpack.c.l.b16 %v201
      %v282 = vunpack.c.l.b16 %v202
      %v283 = vunpack.c.l.b16 %v203
      %v284 = vunpack.c.l.b16 %v204
      %v285 = vunpack.c.l.b16 %v205
      %v286 = vunpack.c.l.b16 %v206
      %v287 = vpack.c.b16 %v256, %v255
      %v288 = vpack.c.b16 %v258, %v257
      %v289 = vpack.c.b16 %v260, %v259
      %v290 = vpack.c.b16 %v262, %v261
      %v291 = vpack.c.b16 %v264, %v263
      %v292 = vpack.c.b16 %v266, %v265
      %v293 = vpack.c.b16 %v268, %v267
      %v294 = vpack.c.b16 %v270, %v269
      %v295 = vpack.c.b16 %v272, %v271
      %v296 = vpack.c.b16 %v274, %v273
      %v297 = vpack.c.b16 %v276, %v275
      %v298 = vpack.c.b16 %v278, %v277
      %v299 = vpack.c.b16 %v280, %v279
      %v300 = vpack.c.b16 %v282, %v281
      %v301 = vpack.c.b16 %v284, %v283
      %v302 = vpack.c.b16 %v286, %v285
      %v335 = vunpack.c.l.b16 %v207
      %v336 = vunpack.c.l.b16 %v208
      %v337 = vunpack.c.l.b16 %v209
      %v338 = vunpack.c.l.b16 %v210
      %v339 = vunpack.c.l.b16 %v211
      %v340 = vunpack.c.l.b16 %v212
      %v341 = vunpack.c.l.b16 %v213
      %v342 = vunpack.c.l.b16 %v214
      %v343 = vunpack.c.l.b16 %v215
      %v344 = vunpack.c.l.b16 %v216
      %v345 = vunpack.c.l.b16 %v217
      %v346 = vunpack.c.l.b16 %v218
      %v347 = vunpack.c.l.b16 %v219
      %v348 = vunpack.c.l.b16 %v220
      %v349 = vunpack.c.l.b16 %v221
      %v350 = vunpack.c.l.b16 %v222
      %v351 = vpack.c.b16 %v336, %v335
      %v352 = vpack.c.b16 %v338, %v337
      %v353 = vpack.c.b16 %v340, %v339
      %v354 = vpack.c.b16 %v342, %v341
      %v355 = vpack.c.b16 %v344, %v343
      %v356 = vpack.c.b16 %v346, %v345
      %v357 = vpack.c.b16 %v348, %v347
      %v358 = vpack.c.b16 %v350, %v349
      %367 = vmatprep.subr.bf16.mxu0 0
      %368 = vmatpush1.bf16.msra.mxu0 %v358
      %369 = vmatprep.subr.bf16.mxu0 0
      %370 = vmatpush1.bf16.msra.mxu0 %v357
      %371 = vmatprep.subr.bf16.mxu0 0
      %372 = vmatpush1.bf16.msra.mxu0 %v356
      %373 = vmatprep.subr.bf16.mxu0 0
      %374 = vmatpush1.bf16.msra.mxu0 %v355
      %375 = vmatprep.subr.bf16.mxu0 0
      %376 = vmatpush1.bf16.msra.mxu0 %v354
      %377 = vmatprep.subr.bf16.mxu0 0
      %378 = vmatpush1.bf16.msra.mxu0 %v353
      %379 = vmatprep.subr.bf16.mxu0 0
      %380 = vmatpush1.bf16.msra.mxu0 %v352
      %381 = vmatprep.subr.bf16.mxu0 0
      %382 = vmatpush1.bf16.msra.mxu0 %v351
      %383 = vmatprep.subr.bf16.mxu0 0
      %384 = vmatpush2.bf16.msra.mxu0 0
      %385 = vmatprep.subr.bf16.mxu0 0
      %386 = vmatpush2.bf16.msra.mxu0 0
      %387 = vmatprep.subr.bf16.mxu0 0
      %388 = vmatpush2.bf16.msra.mxu0 0
      %389 = vmatprep.subr.bf16.mxu0 0
      %390 = vmatpush2.bf16.msra.mxu0 0
      %391 = vmatprep.subr.bf16.mxu0 0
      %392 = vmatpush2.bf16.msra.mxu0 0
      %393 = vmatprep.subr.bf16.mxu0 0
      %394 = vmatpush2.bf16.msra.mxu0 0
      %395 = vmatprep.subr.bf16.mxu0 0
      %396 = vmatpush2.bf16.msra.mxu0 0
      %397 = vmatprep.subr.bf16.mxu0 0
      %398 = vmatpush2.bf16.msra.mxu0 0
      %399 = vmatprep.mubr.bf16.mxu0 0
      %400 = vmatmul.mubr.bf16.gmra.mxu0 %v287
      %v401 = vpop.f32.mrf.mxu0
      %v402 = vadd.f32 0.0, %v401
      %v403 = vpop.f32.mrf.mxu0
      %v404 = vpop.f32.mrf.mxu0
      %v405 = vadd.f32 0.0, %v404
      %v406 = vpop.f32.mrf.mxu0
      %407 = vmatprep.mubr.bf16.mxu0 0
      %408 = vmatmul.mubr.bf16.gmra.mxu0 %v288
      %v409 = vpop.f32.mrf.mxu0
      %v410 = vadd.f32 0.0, %v409
      %v411 = vpop.f32.mrf.mxu0
      %v412 = vpop.f32.mrf.mxu0
      %v413 = vadd.f32 0.0, %v412
      %v414 = vpop.f32.mrf.mxu0
      %415 = vmatprep.mubr.bf16.mxu0 0
      %416 = vmatmul.mubr.bf16.gmra.mxu0 %v289
      %v417 = vpop.f32.mrf.mxu0
      %v418 = vadd.f32 0.0, %v417
      %v419 = vpop.f32.mrf.mxu0
      %v420 = vpop.f32.mrf.mxu0
      %v421 = vadd.f32 0.0, %v420
      %v422 = vpop.f32.mrf.mxu0
      %423 = vmatprep.mubr.bf16.mxu0 0
      %424 = vmatmul.mubr.bf16.gmra.mxu0 %v290
      %v425 = vpop.f32.mrf.mxu0
      %v426 = vadd.f32 0.0, %v425
      %v427 = vpop.f32.mrf.mxu0
      %v428 = vpop.f32.mrf.mxu0
      %v429 = vadd.f32 0.0, %v428
      %v430 = vpop.f32.mrf.mxu0
      %431 = vmatprep.mubr.bf16.mxu0 0
      %432 = vmatmul.mubr.bf16.gmra.mxu0 %v291
      %v433 = vpop.f32.mrf.mxu0
      %v434 = vadd.f32 0.0, %v433
      %v435 = vpop.f32.mrf.mxu0
      %v436 = vpop.f32.mrf.mxu0
      %v437 = vadd.f32 0.0, %v436
      %v438 = vpop.f32.mrf.mxu0
      %439 = vmatprep.mubr.bf16.mxu0 0
      %440 = vmatmul.mubr.bf16.gmra.mxu0 %v292
      %v441 = vpop.f32.mrf.mxu0
      %v442 = vadd.f32 0.0, %v441
      %v443 = vpop.f32.mrf.mxu0
      %v444 = vpop.f32.mrf.mxu0
      %v445 = vadd.f32 0.0, %v444
      %v446 = vpop.f32.mrf.mxu0
      %447 = vmatprep.mubr.bf16.mxu0 0
      %448 = vmatmul.mubr.bf16.gmra.mxu0 %v293
      %v449 = vpop.f32.mrf.mxu0
      %v450 = vadd.f32 0.0, %v449
      %v451 = vpop.f32.mrf.mxu0
      %v452 = vpop.f32.mrf.mxu0
      %v453 = vadd.f32 0.0, %v452
      %v454 = vpop.f32.mrf.mxu0
      %455 = vmatprep.mubr.bf16.mxu0 0
      %456 = vmatmul.mubr.bf16.gmra.mxu0 %v294
      %v457 = vpop.f32.mrf.mxu0
      %v458 = vadd.f32 0.0, %v457
      %v459 = vpop.f32.mrf.mxu0
      %v460 = vpop.f32.mrf.mxu0
      %v461 = vadd.f32 0.0, %v460
      %v462 = vpop.f32.mrf.mxu0
      %463 = vmatprep.mubr.bf16.mxu0 0
      %464 = vmatmul.mubr.bf16.gmra.mxu0 %v295
      %v465 = vpop.f32.mrf.mxu0
      %v466 = vadd.f32 0.0, %v465
      %v467 = vpop.f32.mrf.mxu0
      %v468 = vpop.f32.mrf.mxu0
      %v469 = vadd.f32 0.0, %v468
      %v470 = vpop.f32.mrf.mxu0
      %471 = vmatprep.mubr.bf16.mxu0 0
      %472 = vmatmul.mubr.bf16.gmra.mxu0 %v296
      %v473 = vpop.f32.mrf.mxu0
      %v474 = vadd.f32 0.0, %v473
      %v475 = vpop.f32.mrf.mxu0
      %v476 = vpop.f32.mrf.mxu0
      %v477 = vadd.f32 0.0, %v476
      %v478 = vpop.f32.mrf.mxu0
      %479 = vmatprep.mubr.bf16.mxu0 0
      %480 = vmatmul.mubr.bf16.gmra.mxu0 %v297
      %v481 = vpop.f32.mrf.mxu0
      %v482 = vadd.f32 0.0, %v481
      %v483 = vpop.f32.mrf.mxu0
      %v484 = vpop.f32.mrf.mxu0
      %v485 = vadd.f32 0.0, %v484
      %v486 = vpop.f32.mrf.mxu0
      %487 = vmatprep.mubr.bf16.mxu0 0
      %488 = vmatmul.mubr.bf16.gmra.mxu0 %v298
      %v489 = vpop.f32.mrf.mxu0
      %v490 = vadd.f32 0.0, %v489
      %v491 = vpop.f32.mrf.mxu0
      %v492 = vpop.f32.mrf.mxu0
      %v493 = vadd.f32 0.0, %v492
      %v494 = vpop.f32.mrf.mxu0
      %495 = vmatprep.mubr.bf16.mxu0 0
      %496 = vmatmul.mubr.bf16.gmra.mxu0 %v299
      %v497 = vpop.f32.mrf.mxu0
      %v498 = vadd.f32 0.0, %v497
      %v499 = vpop.f32.mrf.mxu0
      %v500 = vpop.f32.mrf.mxu0
      %v501 = vadd.f32 0.0, %v500
      %v502 = vpop.f32.mrf.mxu0
      %503 = vmatprep.mubr.bf16.mxu0 0
      %504 = vmatmul.mubr.bf16.gmra.mxu0 %v300
      %v505 = vpop.f32.mrf.mxu0
      %v506 = vadd.f32 0.0, %v505
      %v507 = vpop.f32.mrf.mxu0
      %v508 = vpop.f32.mrf.mxu0
      %v509 = vadd.f32 0.0, %v508
      %v510 = vpop.f32.mrf.mxu0
      %511 = vmatprep.mubr.bf16.mxu0 0
      %512 = vmatmul.mubr.bf16.gmra.mxu0 %v301
      %v513 = vpop.f32.mrf.mxu0
      %v514 = vadd.f32 0.0, %v513
      %v515 = vpop.f32.mrf.mxu0
      %v516 = vpop.f32.mrf.mxu0
      %v517 = vadd.f32 0.0, %v516
      %v518 = vpop.f32.mrf.mxu0
      %519 = vmatprep.mubr.bf16.mxu0 0
      %520 = vmatmul.mubr.bf16.gmra.mxu0 %v302
      %v521 = vpop.f32.mrf.mxu0
      %v522 = vadd.f32 0.0, %v521
      %v523 = vpop.f32.mrf.mxu0
      %v524 = vpop.f32.mrf.mxu0
      %v525 = vadd.f32 0.0, %v524
      %v526 = vpop.f32.mrf.mxu0
      %527 = vdwg.mxu0
      %v528 = vmax.f32 %v402, %v434
      %v529 = vmax.f32 %v405, %v437
      %v530 = vmax.f32 %v410, %v442
      %v531 = vmax.f32 %v413, %v445
      %v532 = vmax.f32 %v418, %v450
      %v533 = vmax.f32 %v421, %v453
      %v534 = vmax.f32 %v426, %v458
      %v535 = vmax.f32 %v429, %v461
      %v536 = vmax.f32 %v466, %v498
      %v537 = vmax.f32 %v469, %v501
      %v538 = vmax.f32 %v474, %v506
      %v539 = vmax.f32 %v477, %v509
      %v540 = vmax.f32 %v482, %v514
      %v541 = vmax.f32 %v485, %v517
      %v542 = vmax.f32 %v490, %v522
      %v543 = vmax.f32 %v493, %v525
      %v544 = vmax.f32 %v528, %v536
      %v545 = vmax.f32 %v529, %v537
      %v546 = vmax.f32 %v530, %v538
      %v547 = vmax.f32 %v531, %v539
      %v548 = vmax.f32 %v532, %v540
      %v549 = vmax.f32 %v533, %v541
      %v550 = vmax.f32 %v534, %v542
      %v551 = vmax.f32 %v535, %v543
      %v552 = vld [vmem:[%s2] sm:$0x1]
      %v554 = vlaneseq
      %v555 = vshrl.u32 %v554, 7
      %v556 = vsub.s32 0, %v555
      %v557 = vrot.slane %v552, %v556
      %v559 = vadd.f32 %v544, %v557
      %v560 = vadd.f32 %v545, %v557
      %v561 = vadd.f32 %v546, %v557
      %v562 = vadd.f32 %v547, %v557
      %v563 = vadd.f32 %v548, %v557
      %v564 = vadd.f32 %v549, %v557
      %v565 = vadd.f32 %v550, %v557
      %v566 = vadd.f32 %v551, %v557
      %v567 = vmax.f32 %v559, 0.0
      %v568 = vmax.f32 %v560, 0.0
      %v569 = vmax.f32 %v561, 0.0
      %v570 = vmax.f32 %v562, 0.0
      %v571 = vmax.f32 %v563, 0.0
      %v572 = vmax.f32 %v564, 0.0
      %v573 = vmax.f32 %v565, 0.0
      %v574 = vmax.f32 %v566, 0.0
      %575 = vst [vmem:[%s172] sm:$0xff] %v567
      %576 = vst [vmem:[%s172 + $0x8] sm:$0xff] %v568
      %577 = vst [vmem:[%s172 + $0x10] sm:$0xff] %v569
      %578 = vst [vmem:[%s172 + $0x18] sm:$0xff] %v570
      %579 = vst [vmem:[%s172 + $0x20] sm:$0xff] %v571
      %580 = vst [vmem:[%s172 + $0x28] sm:$0xff] %v572
      %581 = vst [vmem:[%s172 + $0x30] sm:$0xff] %v573
      %582 = vst [vmem:[%s172 + $0x38] sm:$0xff] %v574
      %s583 = smul.u32 8, %s14
      %p584 = scmp.lt.s32.totalorder %s583, 15
      %s585 = scalar_select %p584, %s583, 15
      %s586 = smul.addr %s585, 8
      %s587 = scalar_lea.vmem %s3, %s586
      // Predicated region
      $region33: #{cnn_forward.3} parent=31 // pred_check
        %p588 = pneg %p100
      $region34: #{cnn_forward.3} parent=31 // pred_check_branch
        %590 = sbr.rel (%p588) target = $region36
      $region35: #{cnn_forward.3} parent=31 // pred_region
        %s591 = smul.u32 8, %s14
      $region36: #{cnn_forward.3} parent=31 // pred_fallthru
        _
    $region32: #{cnn_forward.3} parent=5 // pred_fallthru
      _
    %p592 = scmp.le.s32.totalorder 2, %s9
    // Predicated region
    $region37: #{cnn_forward.3} parent=5 // pred_check
      %p593 = pneg %p592
    $region38: #{cnn_forward.3} parent=5 // pred_check_branch
      %595 = sbr.rel (%p593) target = $region40
    $region39: #{cnn_forward.3} parent=5 // pred_region
      %s596 = ssub.s32 %s9, 2
      // Predicated region
      $region41: #{cnn_forward.3} parent=39 // pred_check
        %p597 = pneg %p106
      $region42: #{cnn_forward.3} parent=39 // pred_check_branch
        %599 = sbr.rel (%p597) target = $region44
      $region43: #{cnn_forward.3} parent=39 // pred_region
        %s600 = smul.u32 8, %s15
        %p601 = scmp.lt.s32.totalorder %s600, 15
        %s602 = scalar_select %p601, %s600, 15
        %s603 = smul.addr %s602, 8
        %s604 = scalar_lea.vmem %s3, %s603
      $region44: #{cnn_forward.3} parent=39 // pred_fallthru
        _
    $region40: #{cnn_forward.3} parent=5 // pred_fallthru
      _
  $region6: #{cnn_forward.3} parent=0 // loop_footer
    %s13 = sadd.s32 1, %s9
  $region7: #{cnn_forward.3} parent=0 // loop_footer_branch
    %8 = sbr.rel target = $region3
  $region8: #{cnn_forward.3} parent=0 // loop_exit
    _

// kernel: cnn_forward.4
$region0: #{cnn_forward.4}
  #allocation0 [shape = 'u32[]', space=smem, size = 0x4, offset = 0x4, fixed_abs, tag = 'smem constant byte address 0x4 - core index']
  #allocation1 [shape = 'u32[144,128]{1,0:T(1,128)}', space=vmem, size = 0x12000, scoped, tag = 'internal scratch']
  %s0 = inlined_call_operand.vmem [shape: bf16[128,512], index: 0, kind: input, shape index: {}]
  %s1 = inlined_call_operand.vmem [shape: bf16[512,128], index: 1, kind: input, shape index: {}]
  %s2 = inlined_call_operand.vmem [shape: f32[1,128], index: 2, kind: input, shape index: {}]
  %s3 = inlined_call_operand.vmem [shape: f32[32,128], index: 3, kind: output, shape index: {}]
  %s4 = sld [smem:[#allocation0]]
  $region45: #{cnn_forward.4} parent=0
    _
  %s6 = ssub.s32 1, %s4
  %s7 = scalar_select 0, %s6, %s4
  loop: start=0, step=1, limit=4
  $region2: #{cnn_forward.4} parent=0 // loop_pre_header
    _
  $region3: #{cnn_forward.4} parent=0 // loop_header
    %s9 = sphi 0, %s13
    %p10 = scmp.ge.s32.totalorder %s9, 4
    %s19 = sphi 0, %s21
    %s22 = sphi 0, %s19
    %s23 = sphi 0, %s22
    %s39 = sphi 0, %s23
    %s43 = sphi 0, %s43
    %s45 = sphi 0, %s43
    %s46 = sphi 0, %s45
    %s60 = sphi 0, %s46
    %s64 = sphi 0, %s64
    %s66 = sphi 0, %s64
    %s67 = sphi 0, %s66
    %s81 = sphi 0, %s67
    %s87 = sphi 0, %s89
    %s90 = sphi 0, %s87
    %s91 = sphi 0, %s90
    %s107 = sphi 0, %s91
  $region4: #{cnn_forward.4} parent=0 // loop_header_branch
    %12 = sbr.rel (%p10) target = $region8
  $region5: #{cnn_forward.4} parent=0 // loop_body
    %s14 = ssub.s32 %s9, 1
    %s15 = ssub.s32 %s9, 2
    %s16 = sadd.s32 %s9, 1
    %s17 = ssub.s32 %s9, %s16
    %p18 = scmp.eq.s32.totalorder %s17, 0
    %s20 = sadd.s32 %s19, 1
    %s21 = scalar_select %p18, %s19, %s20
    %p24 = pneg %p18
    %p25 = scmp.eq.s32.totalorder %s9, 1
    %p26 = por %p24, %p25
    %p27 = scmp.ne.s32.totalorder %s19, %s22
    %p28 = scmp.eq.s32.totalorder %s9, 0
    %p29 = por %p27, %p28
    %p30 = scmp.ne.s32.totalorder %s19, %s22
    %p31 = scmp.eq.s32.totalorder %s14, 1
    %p32 = por %p30, %p31
    %p33 = scmp.ne.s32.totalorder %s22, %s23
    %p34 = scmp.eq.s32.totalorder %s14, 0
    %p35 = por %p33, %p34
    %p36 = scmp.ne.s32.totalorder %s22, %s23
    %p37 = scmp.eq.s32.totalorder %s15, 1
    %p38 = por %p36, %p37
    %p40 = scmp.ne.s32.totalorder %s23, %s39
    %p41 = scmp.eq.s32.totalorder %s15, 0
    %p42 = por %p40, %p41
    %s44 = sadd.s32 %s43, 1
    %p47 = scmp.eq.s32.totalorder %s9, 1
    %p48 = scmp.ne.s32.totalorder %s43, %s45
    %p49 = scmp.eq.s32.totalorder %s9, 0
    %p50 = por %p48, %p49
    %p51 = scmp.ne.s32.totalorder %s43, %s45
    %p52 = scmp.eq.s32.totalorder %s14, 1
    %p53 = por %p51, %p52
    %p54 = scmp.ne.s32.totalorder %s45, %s46
    %p55 = scmp.eq.s32.totalorder %s14, 0
    %p56 = por %p54, %p55
    %p57 = scmp.ne.s32.totalorder %s45, %s46
    %p58 = scmp.eq.s32.totalorder %s15, 1
    %p59 = por %p57, %p58
    %p61 = scmp.ne.s32.totalorder %s46, %s60
    %p62 = scmp.eq.s32.totalorder %s15, 0
    %p63 = por %p61, %p62
    %s65 = sadd.s32 %s64, 1
    %p68 = scmp.eq.s32.totalorder %s9, 1
    %p69 = scmp.ne.s32.totalorder %s64, %s66
    %p70 = scmp.eq.s32.totalorder %s9, 0
    %p71 = por %p69, %p70
    %p72 = scmp.ne.s32.totalorder %s64, %s66
    %p73 = scmp.eq.s32.totalorder %s14, 1
    %p74 = por %p72, %p73
    %p75 = scmp.ne.s32.totalorder %s66, %s67
    %p76 = scmp.eq.s32.totalorder %s14, 0
    %p77 = por %p75, %p76
    %p78 = scmp.ne.s32.totalorder %s66, %s67
    %p79 = scmp.eq.s32.totalorder %s15, 1
    %p80 = por %p78, %p79
    %p82 = scmp.ne.s32.totalorder %s67, %s81
    %p83 = scmp.eq.s32.totalorder %s15, 0
    %p84 = por %p82, %p83
    %s85 = ssub.s32 %s9, %s16
    %p86 = scmp.eq.s32.totalorder %s85, 0
    %s88 = sadd.s32 %s87, 1
    %s89 = scalar_select %p86, %s87, %s88
    %p92 = pneg %p86
    %p93 = scmp.eq.s32.totalorder %s9, 1
    %p94 = por %p92, %p93
    %p95 = scmp.ne.s32.totalorder %s87, %s90
    %p96 = scmp.eq.s32.totalorder %s9, 0
    %p97 = por %p95, %p96
    %p98 = scmp.ne.s32.totalorder %s87, %s90
    %p99 = scmp.eq.s32.totalorder %s14, 1
    %p100 = por %p98, %p99
    %p101 = scmp.ne.s32.totalorder %s90, %s91
    %p102 = scmp.eq.s32.totalorder %s14, 0
    %p103 = por %p101, %p102
    %p104 = scmp.ne.s32.totalorder %s90, %s91
    %p105 = scmp.eq.s32.totalorder %s15, 1
    %p106 = por %p104, %p105
    %p108 = scmp.ne.s32.totalorder %s91, %s107
    %p109 = scmp.eq.s32.totalorder %s15, 0
    %p110 = por %p108, %p109
    %p111 = scmp.le.s32.totalorder 1, %s9
    %p112 = scmp.lt.s32.totalorder %s9, 3
    %p113 = pnand %p111, %p112
    %p114 = pneg %p113
    // Predicated region
    $region9: #{cnn_forward.4} parent=5 // pred_check
      _
    $region10: #{cnn_forward.4} parent=5 // pred_check_branch
      %116 = sbr.rel (%p113) target = $region12
    $region11: #{cnn_forward.4} parent=5 // pred_region
      %s117 = ssub.s32 %s9, 1
      // Predicated region
      $region13: #{cnn_forward.4} parent=11 // pred_check
        %p118 = pneg %p56
      $region14: #{cnn_forward.4} parent=11 // pred_check_branch
        %120 = sbr.rel (%p118) target = $region16
      $region15: #{cnn_forward.4} parent=11 // pred_region
        _
      $region16: #{cnn_forward.4} parent=11 // pred_fallthru
        _
      // Predicated region
      $region17: #{cnn_forward.4} parent=11 // pred_check
        %p121 = pneg %p77
      $region18: #{cnn_forward.4} parent=11 // pred_check_branch
        %123 = sbr.rel (%p121) target = $region20
      $region19: #{cnn_forward.4} parent=11 // pred_region
        _
      $region20: #{cnn_forward.4} parent=11 // pred_fallthru
        _
    $region12: #{cnn_forward.4} parent=5 // pred_fallthru
      _
    %p124 = scmp.lt.s32.totalorder %s9, 2
    // Predicated region
    $region21: #{cnn_forward.4} parent=5 // pred_check
      %p125 = pneg %p124
    $region22: #{cnn_forward.4} parent=5 // pred_check_branch
      %127 = sbr.rel (%p125) target = $region24
    $region23: #{cnn_forward.4} parent=5 // pred_region
      // Predicated region
      $region25: #{cnn_forward.4} parent=23 // pred_check
        %p128 = pneg %p29
      $region26: #{cnn_forward.4} parent=23 // pred_check_branch
        %130 = sbr.rel (%p128) target = $region28
      $region27: #{cnn_forward.4} parent=23 // pred_region
        %s131 = smul.u32 8, %s9
        %p132 = scmp.lt.s32.totalorder %s131, 15
        %s133 = scalar_select %p132, %s131, 15
        %s134 = smul.addr %s133, 4
        %s135 = smul.addr %s134, 4
        %s136 = scalar_lea.vmem %s0, %s135
        %s137 = smul.u32 8, %s9
      $region28: #{cnn_forward.4} parent=23 // pred_fallthru
        _
    $region24: #{cnn_forward.4} parent=5 // pred_fallthru
      _
    %p138 = scmp.le.s32.totalorder 1, %s9
    %p139 = scmp.lt.s32.totalorder %s9, 3
    %p140 = pnand %p138, %p139
    %p141 = pneg %p140
    // Predicated region
    $region29: #{cnn_forward.4} parent=5 // pred_check
      _
    $region30: #{cnn_forward.4} parent=5 // pred_check_branch
      %143 = sbr.rel (%p140) target = $region32
    $region31: #{cnn_forward.4} parent=5 // pred_region
      %s144 = ssub.s32 %s9, 1
      %s145 = smul.u32 8, %s14
      %p146 = scmp.lt.s32.totalorder %s145, 15
      %s147 = scalar_select %p146, %s145, 15
      %s148 = smul.addr %s147, 4
      %s149 = smul.addr %s148, 4
      %s150 = scalar_lea.vmem %s0, %s149
      %p151 = pneg %p35
      %p152 = pneg %p32
      %p153 = pneg %p56
      %p154 = pneg %p53
      %p155 = pneg %p77
      %p156 = pneg %p74
      %p157 = pneg %p103
      %p158 = pneg %p100
      %s159 = smul.u32 2, %s14
      %p160 = scmp.lt.s32.totalorder %s159, 3
      %s161 = scalar_select %p160, %s159, 3
      %s162 = smul.addr %s161, 8
      %s163 = scalar_lea.vmem %s3, %s162
      %s164 = smul.u32 8, %s14
      %p165 = scmp.lt.s32.totalorder %s164, 15
      %s166 = scalar_select %p165, %s164, 15
      %s167 = smul.addr %s166, 4
      %s168 = smul.addr %s167, 4
      %s169 = scalar_lea.vmem %s0, %s168
      %s170 = smul.u32 8, %s14
      %s171 = smul.u32 2, %s14
      %p172 = scmp.lt.s32.totalorder %s171, 3
      %s173 = scalar_select %p172, %s171, 3
      %s174 = smul.addr %s173, 8
      %s175 = scalar_lea.vmem %s3, %s174
      %s176 = smul.u32 2, %s14
      %v178 = vld [vmem:[%s169] sm:$0xff]
      %v179 = vld [vmem:[%s169 + $0x8] sm:$0xff]
      %v180 = vld [vmem:[%s169 + $0x10] sm:$0xff]
      %v181 = vld [vmem:[%s169 + $0x18] sm:$0xff]
      %v182 = vld [vmem:[%s169 + $0x20] sm:$0xff]
      %v183 = vld [vmem:[%s169 + $0x28] sm:$0xff]
      %v184 = vld [vmem:[%s169 + $0x30] sm:$0xff]
      %v185 = vld [vmem:[%s169 + $0x38] sm:$0xff]
      %v186 = vld [vmem:[%s169 + $0x40] sm:$0xff]
      %v187 = vld [vmem:[%s169 + $0x48] sm:$0xff]
      %v188 = vld [vmem:[%s169 + $0x50] sm:$0xff]
      %v189 = vld [vmem:[%s169 + $0x58] sm:$0xff]
      %v190 = vld [vmem:[%s169 + $0x60] sm:$0xff]
      %v191 = vld [vmem:[%s169 + $0x68] sm:$0xff]
      %v192 = vld [vmem:[%s169 + $0x70] sm:$0xff]
      %v193 = vld [vmem:[%s169 + $0x78] sm:$0xff]
      %v194 = vld [vmem:[%s1] sm:$0xf]
      %v195 = vld [vmem:[%s1 + $0x4] sm:$0xf]
      %v196 = vld [vmem:[%s1 + $0x8] sm:$0xf]
      %v197 = vld [vmem:[%s1 + $0xc] sm:$0xf]
      %v198 = vld [vmem:[%s1 + $0x10] sm:$0xf]
      %v199 = vld [vmem:[%s1 + $0x14] sm:$0xf]
      %v200 = vld [vmem:[%s1 + $0x18] sm:$0xf]
      %v201 = vld [vmem:[%s1 + $0x1c] sm:$0xf]
      %v202 = vld [vmem:[%s1 + $0x20] sm:$0xf]
      %v203 = vld [vmem:[%s1 + $0x24] sm:$0xf]
      %v204 = vld [vmem:[%s1 + $0x28] sm:$0xf]
      %v205 = vld [vmem:[%s1 + $0x2c] sm:$0xf]
      %v206 = vld [vmem:[%s1 + $0x30] sm:$0xf]
      %v207 = vld [vmem:[%s1 + $0x34] sm:$0xf]
      %v208 = vld [vmem:[%s1 + $0x38] sm:$0xf]
      %v209 = vld [vmem:[%s1 + $0x3c] sm:$0xf]
      %v210 = vld [vmem:[%s1 + $0x40] sm:$0xf]
      %v211 = vld [vmem:[%s1 + $0x44] sm:$0xf]
      %v212 = vld [vmem:[%s1 + $0x48] sm:$0xf]
      %v213 = vld [vmem:[%s1 + $0x4c] sm:$0xf]
      %v214 = vld [vmem:[%s1 + $0x50] sm:$0xf]
      %v215 = vld [vmem:[%s1 + $0x54] sm:$0xf]
      %v216 = vld [vmem:[%s1 + $0x58] sm:$0xf]
      %v217 = vld [vmem:[%s1 + $0x5c] sm:$0xf]
      %v218 = vld [vmem:[%s1 + $0x60] sm:$0xf]
      %v219 = vld [vmem:[%s1 + $0x64] sm:$0xf]
      %v220 = vld [vmem:[%s1 + $0x68] sm:$0xf]
      %v221 = vld [vmem:[%s1 + $0x6c] sm:$0xf]
      %v222 = vld [vmem:[%s1 + $0x70] sm:$0xf]
      %v223 = vld [vmem:[%s1 + $0x74] sm:$0xf]
      %v224 = vld [vmem:[%s1 + $0x78] sm:$0xf]
      %v225 = vld [vmem:[%s1 + $0x7c] sm:$0xf]
      %v226 = vld [vmem:[%s1 + $0x80] sm:$0xf]
      %v227 = vld [vmem:[%s1 + $0x84] sm:$0xf]
      %v228 = vld [vmem:[%s1 + $0x88] sm:$0xf]
      %v229 = vld [vmem:[%s1 + $0x8c] sm:$0xf]
      %v230 = vld [vmem:[%s1 + $0x90] sm:$0xf]
      %v231 = vld [vmem:[%s1 + $0x94] sm:$0xf]
      %v232 = vld [vmem:[%s1 + $0x98] sm:$0xf]
      %v233 = vld [vmem:[%s1 + $0x9c] sm:$0xf]
      %v234 = vld [vmem:[%s1 + $0xa0] sm:$0xf]
      %v235 = vld [vmem:[%s1 + $0xa4] sm:$0xf]
      %v236 = vld [vmem:[%s1 + $0xa8] sm:$0xf]
      %v237 = vld [vmem:[%s1 + $0xac] sm:$0xf]
      %v238 = vld [vmem:[%s1 + $0xb0] sm:$0xf]
      %v239 = vld [vmem:[%s1 + $0xb4] sm:$0xf]
      %v240 = vld [vmem:[%s1 + $0xb8] sm:$0xf]
      %v241 = vld [vmem:[%s1 + $0xbc] sm:$0xf]
      %v242 = vld [vmem:[%s1 + $0xc0] sm:$0xf]
      %v243 = vld [vmem:[%s1 + $0xc4] sm:$0xf]
      %v244 = vld [vmem:[%s1 + $0xc8] sm:$0xf]
      %v245 = vld [vmem:[%s1 + $0xcc] sm:$0xf]
      %v246 = vld [vmem:[%s1 + $0xd0] sm:$0xf]
      %v247 = vld [vmem:[%s1 + $0xd4] sm:$0xf]
      %v248 = vld [vmem:[%s1 + $0xd8] sm:$0xf]
      %v249 = vld [vmem:[%s1 + $0xdc] sm:$0xf]
      %v250 = vld [vmem:[%s1 + $0xe0] sm:$0xf]
      %v251 = vld [vmem:[%s1 + $0xe4] sm:$0xf]
      %v252 = vld [vmem:[%s1 + $0xe8] sm:$0xf]
      %v253 = vld [vmem:[%s1 + $0xec] sm:$0xf]
      %v254 = vld [vmem:[%s1 + $0xf0] sm:$0xf]
      %v255 = vld [vmem:[%s1 + $0xf4] sm:$0xf]
      %v256 = vld [vmem:[%s1 + $0xf8] sm:$0xf]
      %v257 = vld [vmem:[%s1 + $0xfc] sm:$0xf]
      %v274 = vunpack.c.l.b16 %v178
      %v275 = vunpack.c.h.b16 %v178
      %v276 = vunpack.c.l.b16 %v179
      %v277 = vunpack.c.h.b16 %v179
      %v278 = vunpack.c.l.b16 %v180
      %v279 = vunpack.c.h.b16 %v180
      %v280 = vunpack.c.l.b16 %v181
      %v281 = vunpack.c.h.b16 %v181
      %v282 = vunpack.c.l.b16 %v182
      %v283 = vunpack.c.h.b16 %v182
      %v284 = vunpack.c.l.b16 %v183
      %v285 = vunpack.c.h.b16 %v183
      %v286 = vunpack.c.l.b16 %v184
      %v287 = vunpack.c.h.b16 %v184
      %v288 = vunpack.c.l.b16 %v185
      %v289 = vunpack.c.h.b16 %v185
      %v290 = vunpack.c.l.b16 %v186
      %v291 = vunpack.c.h.b16 %v186
      %v292 = vunpack.c.l.b16 %v187
      %v293 = vunpack.c.h.b16 %v187
      %v294 = vunpack.c.l.b16 %v188
      %v295 = vunpack.c.h.b16 %v188
      %v296 = vunpack.c.l.b16 %v189
      %v297 = vunpack.c.h.b16 %v189
      %v298 = vunpack.c.l.b16 %v190
      %v299 = vunpack.c.h.b16 %v190
      %v300 = vunpack.c.l.b16 %v191
      %v301 = vunpack.c.h.b16 %v191
      %v302 = vunpack.c.l.b16 %v192
      %v303 = vunpack.c.h.b16 %v192
      %v304 = vunpack.c.l.b16 %v193
      %v305 = vunpack.c.h.b16 %v193
      %v306 = vpack.c.b16 %v278, %v274
      %v307 = vpack.c.b16 %v279, %v275
      %v308 = vpack.c.b16 %v280, %v276
      %v309 = vpack.c.b16 %v281, %v277
      %v310 = vpack.c.b16 %v286, %v282
      %v311 = vpack.c.b16 %v287, %v283
      %v312 = vpack.c.b16 %v288, %v284
      %v313 = vpack.c.b16 %v289, %v285
      %v314 = vpack.c.b16 %v294, %v290
      %v315 = vpack.c.b16 %v295, %v291
      %v316 = vpack.c.b16 %v296, %v292
      %v317 = vpack.c.b16 %v297, %v293
      %v318 = vpack.c.b16 %v302, %v298
      %v319 = vpack.c.b16 %v303, %v299
      %v320 = vpack.c.b16 %v304, %v300
      %v321 = vpack.c.b16 %v305, %v301
      %v402 = vunpack.c.l.b16 %v194
      %v403 = vunpack.c.l.b16 %v195
      %v404 = vunpack.c.l.b16 %v196
      %v405 = vunpack.c.l.b16 %v197
      %v406 = vunpack.c.l.b16 %v198
      %v407 = vunpack.c.l.b16 %v199
      %v408 = vunpack.c.l.b16 %v200
      %v409 = vunpack.c.l.b16 %v201
      %v410 = vunpack.c.l.b16 %v202
      %v411 = vunpack.c.l.b16 %v203
      %v412 = vunpack.c.l.b16 %v204
      %v413 = vunpack.c.l.b16 %v205
      %v414 = vunpack.c.l.b16 %v206
      %v415 = vunpack.c.l.b16 %v207
      %v416 = vunpack.c.l.b16 %v208
      %v417 = vunpack.c.l.b16 %v209
      %v418 = vunpack.c.l.b16 %v210
      %v419 = vunpack.c.l.b16 %v211
      %v420 = vunpack.c.l.b16 %v212
      %v421 = vunpack.c.l.b16 %v213
      %v422 = vunpack.c.l.b16 %v214
      %v423 = vunpack.c.l.b16 %v215
      %v424 = vunpack.c.l.b16 %v216
      %v425 = vunpack.c.l.b16 %v217
      %v426 = vunpack.c.l.b16 %v218
      %v427 = vunpack.c.l.b16 %v219
      %v428 = vunpack.c.l.b16 %v220
      %v429 = vunpack.c.l.b16 %v221
      %v430 = vunpack.c.l.b16 %v222
      %v431 = vunpack.c.l.b16 %v223
      %v432 = vunpack.c.l.b16 %v224
      %v433 = vunpack.c.l.b16 %v225
      %v434 = vunpack.c.l.b16 %v226
      %v435 = vunpack.c.l.b16 %v227
      %v436 = vunpack.c.l.b16 %v228
      %v437 = vunpack.c.l.b16 %v229
      %v438 = vunpack.c.l.b16 %v230
      %v439 = vunpack.c.l.b16 %v231
      %v440 = vunpack.c.l.b16 %v232
      %v441 = vunpack.c.l.b16 %v233
      %v442 = vunpack.c.l.b16 %v234
      %v443 = vunpack.c.l.b16 %v235
      %v444 = vunpack.c.l.b16 %v236
      %v445 = vunpack.c.l.b16 %v237
      %v446 = vunpack.c.l.b16 %v238
      %v447 = vunpack.c.l.b16 %v239
      %v448 = vunpack.c.l.b16 %v240
      %v449 = vunpack.c.l.b16 %v241
      %v450 = vunpack.c.l.b16 %v242
      %v451 = vunpack.c.l.b16 %v243
      %v452 = vunpack.c.l.b16 %v244
      %v453 = vunpack.c.l.b16 %v245
      %v454 = vunpack.c.l.b16 %v246
      %v455 = vunpack.c.l.b16 %v247
      %v456 = vunpack.c.l.b16 %v248
      %v457 = vunpack.c.l.b16 %v249
      %v458 = vunpack.c.l.b16 %v250
      %v459 = vunpack.c.l.b16 %v251
      %v460 = vunpack.c.l.b16 %v252
      %v461 = vunpack.c.l.b16 %v253
      %v462 = vunpack.c.l.b16 %v254
      %v463 = vunpack.c.l.b16 %v255
      %v464 = vunpack.c.l.b16 %v256
      %v465 = vunpack.c.l.b16 %v257
      %v466 = vpack.c.b16 %v403, %v402
      %v467 = vpack.c.b16 %v405, %v404
      %v468 = vpack.c.b16 %v407, %v406
      %v469 = vpack.c.b16 %v409, %v408
      %v470 = vpack.c.b16 %v411, %v410
      %v471 = vpack.c.b16 %v413, %v412
      %v472 = vpack.c.b16 %v415, %v414
      %v473 = vpack.c.b16 %v417, %v416
      %v474 = vpack.c.b16 %v419, %v418
      %v475 = vpack.c.b16 %v421, %v420
      %v476 = vpack.c.b16 %v423, %v422
      %v477 = vpack.c.b16 %v425, %v424
      %v478 = vpack.c.b16 %v427, %v426
      %v479 = vpack.c.b16 %v429, %v428
      %v480 = vpack.c.b16 %v431, %v430
      %v481 = vpack.c.b16 %v433, %v432
      %v482 = vpack.c.b16 %v435, %v434
      %v483 = vpack.c.b16 %v437, %v436
      %v484 = vpack.c.b16 %v439, %v438
      %v485 = vpack.c.b16 %v441, %v440
      %v486 = vpack.c.b16 %v443, %v442
      %v487 = vpack.c.b16 %v445, %v444
      %v488 = vpack.c.b16 %v447, %v446
      %v489 = vpack.c.b16 %v449, %v448
      %v490 = vpack.c.b16 %v451, %v450
      %v491 = vpack.c.b16 %v453, %v452
      %v492 = vpack.c.b16 %v455, %v454
      %v493 = vpack.c.b16 %v457, %v456
      %v494 = vpack.c.b16 %v459, %v458
      %v495 = vpack.c.b16 %v461, %v460
      %v496 = vpack.c.b16 %v463, %v462
      %v497 = vpack.c.b16 %v465, %v464
      %530 = vmatprep.subr.bf16.mxu0 0
      %531 = vmatpush1.bf16.msra.mxu0 %v473
      %532 = vmatprep.subr.bf16.mxu0 0
      %533 = vmatpush1.bf16.msra.mxu0 %v472
      %534 = vmatprep.subr.bf16.mxu0 0
      %535 = vmatpush1.bf16.msra.mxu0 %v471
      %536 = vmatprep.subr.bf16.mxu0 0
      %537 = vmatpush1.bf16.msra.mxu0 %v470
      %538 = vmatprep.subr.bf16.mxu0 0
      %539 = vmatpush1.bf16.msra.mxu0 %v469
      %540 = vmatprep.subr.bf16.mxu0 0
      %541 = vmatpush1.bf16.msra.mxu0 %v468
      %542 = vmatprep.subr.bf16.mxu0 0
      %543 = vmatpush1.bf16.msra.mxu0 %v467
      %544 = vmatprep.subr.bf16.mxu0 0
      %545 = vmatpush1.bf16.msra.mxu0 %v466
      %546 = vmatprep.subr.bf16.mxu0 0
      %547 = vmatpush2.bf16.msra.mxu0 %v481
      %548 = vmatprep.subr.bf16.mxu0 0
      %549 = vmatpush2.bf16.msra.mxu0 %v480
      %550 = vmatprep.subr.bf16.mxu0 0
      %551 = vmatpush2.bf16.msra.mxu0 %v479
      %552 = vmatprep.subr.bf16.mxu0 0
      %553 = vmatpush2.bf16.msra.mxu0 %v478
      %554 = vmatprep.subr.bf16.mxu0 0
      %555 = vmatpush2.bf16.msra.mxu0 %v477
      %556 = vmatprep.subr.bf16.mxu0 0
      %557 = vmatpush2.bf16.msra.mxu0 %v476
      %558 = vmatprep.subr.bf16.mxu0 0
      %559 = vmatpush2.bf16.msra.mxu0 %v475
      %560 = vmatprep.subr.bf16.mxu0 0
      %561 = vmatpush2.bf16.msra.mxu0 %v474
      %562 = vmatprep.mubr.bf16.mxu0 %v307
      %563 = vmatmul.mubr.bf16.gmra.mxu0 %v306
      %v564 = vpop.f32.mrf.mxu0
      %v565 = vadd.f32 0.0, %v564
      %v566 = vpop.f32.mrf.mxu0
      %v567 = vpop.f32.mrf.mxu0
      %v568 = vadd.f32 0.0, %v567
      %v569 = vpop.f32.mrf.mxu0
      %570 = vmatprep.mubr.bf16.mxu0 %v311
      %571 = vmatmul.mubr.bf16.gmra.mxu0 %v310
      %v572 = vpop.f32.mrf.mxu0
      %v573 = vadd.f32 0.0, %v572
      %v574 = vpop.f32.mrf.mxu0
      %v575 = vpop.f32.mrf.mxu0
      %v576 = vadd.f32 0.0, %v575
      %v577 = vpop.f32.mrf.mxu0
      %578 = vmatprep.mubr.bf16.mxu0 %v315
      %579 = vmatmul.mubr.bf16.gmra.mxu0 %v314
      %v580 = vpop.f32.mrf.mxu0
      %v581 = vadd.f32 0.0, %v580
      %v582 = vpop.f32.mrf.mxu0
      %v583 = vpop.f32.mrf.mxu0
      %v584 = vadd.f32 0.0, %v583
      %v585 = vpop.f32.mrf.mxu0
      %586 = vmatprep.mubr.bf16.mxu0 %v319
      %587 = vmatmul.mubr.bf16.gmra.mxu0 %v318
      %v588 = vpop.f32.mrf.mxu0
      %v589 = vadd.f32 0.0, %v588
      %v590 = vpop.f32.mrf.mxu0
      %v591 = vpop.f32.mrf.mxu0
      %v592 = vadd.f32 0.0, %v591
      %v593 = vpop.f32.mrf.mxu0
      %594 = vdwg.mxu0
      %595 = vmatprep.subr.bf16.mxu0 0
      %596 = vmatpush1.bf16.msra.mxu0 %v489
      %597 = vmatprep.subr.bf16.mxu0 0
      %598 = vmatpush1.bf16.msra.mxu0 %v488
      %599 = vmatprep.subr.bf16.mxu0 0
      %600 = vmatpush1.bf16.msra.mxu0 %v487
      %601 = vmatprep.subr.bf16.mxu0 0
      %602 = vmatpush1.bf16.msra.mxu0 %v486
      %603 = vmatprep.subr.bf16.mxu0 0
      %604 = vmatpush1.bf16.msra.mxu0 %v485
      %605 = vmatprep.subr.bf16.mxu0 0
      %606 = vmatpush1.bf16.msra.mxu0 %v484
      %607 = vmatprep.subr.bf16.mxu0 0
      %608 = vmatpush1.bf16.msra.mxu0 %v483
      %609 = vmatprep.subr.bf16.mxu0 0
      %610 = vmatpush1.bf16.msra.mxu0 %v482
      %611 = vmatprep.subr.bf16.mxu0 0
      %612 = vmatpush2.bf16.msra.mxu0 %v497
      %613 = vmatprep.subr.bf16.mxu0 0
      %614 = vmatpush2.bf16.msra.mxu0 %v496
      %615 = vmatprep.subr.bf16.mxu0 0
      %616 = vmatpush2.bf16.msra.mxu0 %v495
      %617 = vmatprep.subr.bf16.mxu0 0
      %618 = vmatpush2.bf16.msra.mxu0 %v494
      %619 = vmatprep.subr.bf16.mxu0 0
      %620 = vmatpush2.bf16.msra.mxu0 %v493
      %621 = vmatprep.subr.bf16.mxu0 0
      %622 = vmatpush2.bf16.msra.mxu0 %v492
      %623 = vmatprep.subr.bf16.mxu0 0
      %624 = vmatpush2.bf16.msra.mxu0 %v491
      %625 = vmatprep.subr.bf16.mxu0 0
      %626 = vmatpush2.bf16.msra.mxu0 %v490
      %627 = vmatprep.mubr.bf16.mxu0 %v309
      %628 = vmatmul.mubr.bf16.gmra.mxu0 %v308
      %v629 = vpop.f32.mrf.mxu0
      %v630 = vadd.f32 %v565, %v629
      %v631 = vpop.f32.mrf.mxu0
      %v632 = vpop.f32.mrf.mxu0
      %v633 = vadd.f32 %v568, %v632
      %v634 = vpop.f32.mrf.mxu0
      %635 = vmatprep.mubr.bf16.mxu0 %v313
      %636 = vmatmul.mubr.bf16.gmra.mxu0 %v312
      %v637 = vpop.f32.mrf.mxu0
      %v638 = vadd.f32 %v573, %v637
      %v639 = vpop.f32.mrf.mxu0
      %v640 = vpop.f32.mrf.mxu0
      %v641 = vadd.f32 %v576, %v640
      %v642 = vpop.f32.mrf.mxu0
      %643 = vmatprep.mubr.bf16.mxu0 %v317
      %644 = vmatmul.mubr.bf16.gmra.mxu0 %v316
      %v645 = vpop.f32.mrf.mxu0
      %v646 = vadd.f32 %v581, %v645
      %v647 = vpop.f32.mrf.mxu0
      %v648 = vpop.f32.mrf.mxu0
      %v649 = vadd.f32 %v584, %v648
      %v650 = vpop.f32.mrf.mxu0
      %651 = vmatprep.mubr.bf16.mxu0 %v321
      %652 = vmatmul.mubr.bf16.gmra.mxu0 %v320
      %v653 = vpop.f32.mrf.mxu0
      %v654 = vadd.f32 %v589, %v653
      %v655 = vpop.f32.mrf.mxu0
      %v656 = vpop.f32.mrf.mxu0
      %v657 = vadd.f32 %v592, %v656
      %v658 = vpop.f32.mrf.mxu0
      %659 = vdwg.mxu0
      %v660 = vmax.f32 %v630, %v638
      %v661 = vmax.f32 %v633, %v641
      %v662 = vmax.f32 %v646, %v654
      %v663 = vmax.f32 %v649, %v657
      %v664 = vmax.f32 %v660, %v662
      %v665 = vmax.f32 %v661, %v663
      %v666 = vld [vmem:[%s2] sm:$0x1]
      %v668 = vlaneseq
      %v669 = vshrl.u32 %v668, 7
      %v670 = vsub.s32 0, %v669
      %v671 = vrot.slane %v666, %v670
      %v673 = vadd.f32 %v664, %v671
      %v674 = vadd.f32 %v665, %v671
      %v675 = vmax.f32 %v673, 0.0
      %v676 = vmax.f32 %v674, 0.0
      %677 = vst [vmem:[%s175] sm:$0xff] %v675
      %678 = vst [vmem:[%s175 + $0x8] sm:$0xff] %v676
      %s679 = smul.u32 2, %s14
      %p680 = scmp.lt.s32.totalorder %s679, 3
      %s681 = scalar_select %p680, %s679, 3
      %s682 = smul.addr %s681, 8
      %s683 = scalar_lea.vmem %s3, %s682
      // Predicated region
      $region33: #{cnn_forward.4} parent=31 // pred_check
        %p684 = pneg %p100
      $region34: #{cnn_forward.4} parent=31 // pred_check_branch
        %686 = sbr.rel (%p684) target = $region36
      $region35: #{cnn_forward.4} parent=31 // pred_region
        %s687 = smul.u32 2, %s14
      $region36: #{cnn_forward.4} parent=31 // pred_fallthru
        _
    $region32: #{cnn_forward.4} parent=5 // pred_fallthru
      _
    %p688 = scmp.le.s32.totalorder 2, %s9
    // Predicated region
    $region37: #{cnn_forward.4} parent=5 // pred_check
      %p689 = pneg %p688
    $region38: #{cnn_forward.4} parent=5 // pred_check_branch
      %691 = sbr.rel (%p689) target = $region40
    $region39: #{cnn_forward.4} parent=5 // pred_region
      %s692 = ssub.s32 %s9, 2
      // Predicated region
      $region41: #{cnn_forward.4} parent=39 // pred_check
        %p693 = pneg %p106
      $region42: #{cnn_forward.4} parent=39 // pred_check_branch
        %695 = sbr.rel (%p693) target = $region44
      $region43: #{cnn_forward.4} parent=39 // pred_region
        %s696 = smul.u32 2, %s15
        %p697 = scmp.lt.s32.totalorder %s696, 3
        %s698 = scalar_select %p697, %s696, 3
        %s699 = smul.addr %s698, 8
        %s700 = scalar_lea.vmem %s3, %s699
      $region44: #{cnn_forward.4} parent=39 // pred_fallthru
        _
    $region40: #{cnn_forward.4} parent=5 // pred_fallthru
      _
  $region6: #{cnn_forward.4} parent=0 // loop_footer
    %s13 = sadd.s32 1, %s9
  $region7: #{cnn_forward.4} parent=0 // loop_footer_branch
    %8 = sbr.rel target = $region3
  $region8: #{cnn_forward.4} parent=0 // loop_exit
    _

// kernel: cnn_forward.5
$region0: #{cnn_forward.5}
  #allocation0 [shape = 'u32[]', space=smem, size = 0x4, offset = 0x4, fixed_abs, tag = 'smem constant byte address 0x4 - core index']
  #allocation1 [shape = 'u32[144,128]{1,0:T(1,128)}', space=vmem, size = 0x12000, scoped, tag = 'internal scratch']
  %s0 = inlined_call_operand.vmem [shape: bf16[128,512], index: 0, kind: input, shape index: {}]
  %s1 = inlined_call_operand.vmem [shape: bf16[512,128], index: 1, kind: input, shape index: {}]
  %s2 = inlined_call_operand.vmem [shape: f32[1,128], index: 2, kind: input, shape index: {}]
  %s3 = inlined_call_operand.vmem [shape: bf16[2048,128], index: 3, kind: input, shape index: {}]
  %s4 = inlined_call_operand.vmem [shape: f32[1,128], index: 4, kind: input, shape index: {}]
  %s5 = inlined_call_operand.vmem [shape: f32[8,128], index: 5, kind: output, shape index: {}]
  %s6 = sld [smem:[#allocation0]]
  $region30: #{cnn_forward.5} parent=0
    _
  %s8 = ssub.s32 1, %s6
  %s9 = scalar_select 0, %s8, %s6
  // Predicated region
  $region2: #{cnn_forward.5} parent=0 // pred_check
    _
  $region3: #{cnn_forward.5} parent=0 // pred_check_branch
    %11 = sbr.rel (0) target = $region5
  $region4: #{cnn_forward.5} parent=0 // pred_region
    _
  $region5: #{cnn_forward.5} parent=0 // pred_fallthru
    _
  // Predicated region
  $region6: #{cnn_forward.5} parent=0 // pred_check
    _
  $region7: #{cnn_forward.5} parent=0 // pred_check_branch
    %13 = sbr.rel (0) target = $region9
  $region8: #{cnn_forward.5} parent=0 // pred_region
    _
  $region9: #{cnn_forward.5} parent=0 // pred_fallthru
    _
  // Predicated region
  $region10: #{cnn_forward.5} parent=0 // pred_check
    _
  $region11: #{cnn_forward.5} parent=0 // pred_check_branch
    %15 = sbr.rel (0) target = $region13
  $region12: #{cnn_forward.5} parent=0 // pred_region
    _
  $region13: #{cnn_forward.5} parent=0 // pred_fallthru
    _
  // Predicated region
  $region14: #{cnn_forward.5} parent=0 // pred_check
    _
  $region15: #{cnn_forward.5} parent=0 // pred_check_branch
    %17 = sbr.rel (0) target = $region17
  $region16: #{cnn_forward.5} parent=0 // pred_region
    _
  $region17: #{cnn_forward.5} parent=0 // pred_fallthru
    _
  // Predicated region
  $region18: #{cnn_forward.5} parent=0 // pred_check
    _
  $region19: #{cnn_forward.5} parent=0 // pred_check_branch
    %19 = sbr.rel (0) target = $region21
  $region20: #{cnn_forward.5} parent=0 // pred_region
    _
  $region21: #{cnn_forward.5} parent=0 // pred_fallthru
    _
  %v21 = vld [vmem:[%s0] sm:$0xff]
  %v22 = vld [vmem:[%s0 + $0x8] sm:$0xff]
  %v23 = vld [vmem:[%s0 + $0x10] sm:$0xff]
  %v24 = vld [vmem:[%s0 + $0x18] sm:$0xff]
  %v25 = vld [vmem:[%s0 + $0x20] sm:$0xff]
  %v26 = vld [vmem:[%s0 + $0x28] sm:$0xff]
  %v27 = vld [vmem:[%s0 + $0x30] sm:$0xff]
  %v28 = vld [vmem:[%s0 + $0x38] sm:$0xff]
  %v29 = vld [vmem:[%s0 + $0x40] sm:$0xff]
  %v30 = vld [vmem:[%s0 + $0x48] sm:$0xff]
  %v31 = vld [vmem:[%s0 + $0x50] sm:$0xff]
  %v32 = vld [vmem:[%s0 + $0x58] sm:$0xff]
  %v33 = vld [vmem:[%s0 + $0x60] sm:$0xff]
  %v34 = vld [vmem:[%s0 + $0x68] sm:$0xff]
  %v35 = vld [vmem:[%s0 + $0x70] sm:$0xff]
  %v36 = vld [vmem:[%s0 + $0x78] sm:$0xff]
  %v37 = vld [vmem:[%s0 + $0x80] sm:$0xff]
  %v38 = vld [vmem:[%s0 + $0x88] sm:$0xff]
  %v39 = vld [vmem:[%s0 + $0x90] sm:$0xff]
  %v40 = vld [vmem:[%s0 + $0x98] sm:$0xff]
  %v41 = vld [vmem:[%s0 + $0xa0] sm:$0xff]
  %v42 = vld [vmem:[%s0 + $0xa8] sm:$0xff]
  %v43 = vld [vmem:[%s0 + $0xb0] sm:$0xff]
  %v44 = vld [vmem:[%s0 + $0xb8] sm:$0xff]
  %v45 = vld [vmem:[%s0 + $0xc0] sm:$0xff]
  %v46 = vld [vmem:[%s0 + $0xc8] sm:$0xff]
  %v47 = vld [vmem:[%s0 + $0xd0] sm:$0xff]
  %v48 = vld [vmem:[%s0 + $0xd8] sm:$0xff]
  %v49 = vld [vmem:[%s0 + $0xe0] sm:$0xff]
  %v50 = vld [vmem:[%s0 + $0xe8] sm:$0xff]
  %v51 = vld [vmem:[%s0 + $0xf0] sm:$0xff]
  %v52 = vld [vmem:[%s0 + $0xf8] sm:$0xff]
  %v53 = vld [vmem:[%s1] sm:$0xf]
  %v54 = vld [vmem:[%s1 + $0x4] sm:$0xf]
  %v55 = vld [vmem:[%s1 + $0x8] sm:$0xf]
  %v56 = vld [vmem:[%s1 + $0xc] sm:$0xf]
  %v57 = vld [vmem:[%s1 + $0x10] sm:$0xf]
  %v58 = vld [vmem:[%s1 + $0x14] sm:$0xf]
  %v59 = vld [vmem:[%s1 + $0x18] sm:$0xf]
  %v60 = vld [vmem:[%s1 + $0x1c] sm:$0xf]
  %v61 = vld [vmem:[%s1 + $0x20] sm:$0xf]
  %v62 = vld [vmem:[%s1 + $0x24] sm:$0xf]
  %v63 = vld [vmem:[%s1 + $0x28] sm:$0xf]
  %v64 = vld [vmem:[%s1 + $0x2c] sm:$0xf]
  %v65 = vld [vmem:[%s1 + $0x30] sm:$0xf]
  %v66 = vld [vmem:[%s1 + $0x34] sm:$0xf]
  %v67 = vld [vmem:[%s1 + $0x38] sm:$0xf]
  %v68 = vld [vmem:[%s1 + $0x3c] sm:$0xf]
  %v69 = vld [vmem:[%s1 + $0x40] sm:$0xf]
  %v70 = vld [vmem:[%s1 + $0x44] sm:$0xf]
  %v71 = vld [vmem:[%s1 + $0x48] sm:$0xf]
  %v72 = vld [vmem:[%s1 + $0x4c] sm:$0xf]
  %v73 = vld [vmem:[%s1 + $0x50] sm:$0xf]
  %v74 = vld [vmem:[%s1 + $0x54] sm:$0xf]
  %v75 = vld [vmem:[%s1 + $0x58] sm:$0xf]
  %v76 = vld [vmem:[%s1 + $0x5c] sm:$0xf]
  %v77 = vld [vmem:[%s1 + $0x60] sm:$0xf]
  %v78 = vld [vmem:[%s1 + $0x64] sm:$0xf]
  %v79 = vld [vmem:[%s1 + $0x68] sm:$0xf]
  %v80 = vld [vmem:[%s1 + $0x6c] sm:$0xf]
  %v81 = vld [vmem:[%s1 + $0x70] sm:$0xf]
  %v82 = vld [vmem:[%s1 + $0x74] sm:$0xf]
  %v83 = vld [vmem:[%s1 + $0x78] sm:$0xf]
  %v84 = vld [vmem:[%s1 + $0x7c] sm:$0xf]
  %v85 = vld [vmem:[%s1 + $0x80] sm:$0xf]
  %v86 = vld [vmem:[%s1 + $0x84] sm:$0xf]
  %v87 = vld [vmem:[%s1 + $0x88] sm:$0xf]
  %v88 = vld [vmem:[%s1 + $0x8c] sm:$0xf]
  %v89 = vld [vmem:[%s1 + $0x90] sm:$0xf]
  %v90 = vld [vmem:[%s1 + $0x94] sm:$0xf]
  %v91 = vld [vmem:[%s1 + $0x98] sm:$0xf]
  %v92 = vld [vmem:[%s1 + $0x9c] sm:$0xf]
  %v93 = vld [vmem:[%s1 + $0xa0] sm:$0xf]
  %v94 = vld [vmem:[%s1 + $0xa4] sm:$0xf]
  %v95 = vld [vmem:[%s1 + $0xa8] sm:$0xf]
  %v96 = vld [vmem:[%s1 + $0xac] sm:$0xf]
  %v97 = vld [vmem:[%s1 + $0xb0] sm:$0xf]
  %v98 = vld [vmem:[%s1 + $0xb4] sm:$0xf]
  %v99 = vld [vmem:[%s1 + $0xb8] sm:$0xf]
  %v100 = vld [vmem:[%s1 + $0xbc] sm:$0xf]
  %v101 = vld [vmem:[%s1 + $0xc0] sm:$0xf]
  %v102 = vld [vmem:[%s1 + $0xc4] sm:$0xf]
  %v103 = vld [vmem:[%s1 + $0xc8] sm:$0xf]
  %v104 = vld [vmem:[%s1 + $0xcc] sm:$0xf]
  %v105 = vld [vmem:[%s1 + $0xd0] sm:$0xf]
  %v106 = vld [vmem:[%s1 + $0xd4] sm:$0xf]
  %v107 = vld [vmem:[%s1 + $0xd8] sm:$0xf]
  %v108 = vld [vmem:[%s1 + $0xdc] sm:$0xf]
  %v109 = vld [vmem:[%s1 + $0xe0] sm:$0xf]
  %v110 = vld [vmem:[%s1 + $0xe4] sm:$0xf]
  %v111 = vld [vmem:[%s1 + $0xe8] sm:$0xf]
  %v112 = vld [vmem:[%s1 + $0xec] sm:$0xf]
  %v113 = vld [vmem:[%s1 + $0xf0] sm:$0xf]
  %v114 = vld [vmem:[%s1 + $0xf4] sm:$0xf]
  %v115 = vld [vmem:[%s1 + $0xf8] sm:$0xf]
  %v116 = vld [vmem:[%s1 + $0xfc] sm:$0xf]
  %v117 = vld [vmem:[%s2] sm:$0x1]
  %v119 = vlaneseq
  %v120 = vshrl.u32 %v119, 7
  %v121 = vsub.s32 0, %v120
  %v122 = vrot.slane %v117, %v121
  %v156 = vunpack.c.l.b16 %v21
  %v157 = vunpack.c.h.b16 %v21
  %v158 = vunpack.c.l.b16 %v22
  %v159 = vunpack.c.h.b16 %v22
  %v160 = vunpack.c.l.b16 %v23
  %v161 = vunpack.c.h.b16 %v23
  %v162 = vunpack.c.l.b16 %v24
  %v163 = vunpack.c.h.b16 %v24
  %v164 = vunpack.c.l.b16 %v25
  %v165 = vunpack.c.h.b16 %v25
  %v166 = vunpack.c.l.b16 %v26
  %v167 = vunpack.c.h.b16 %v26
  %v168 = vunpack.c.l.b16 %v27
  %v169 = vunpack.c.h.b16 %v27
  %v170 = vunpack.c.l.b16 %v28
  %v171 = vunpack.c.h.b16 %v28
  %v172 = vunpack.c.l.b16 %v29
  %v173 = vunpack.c.h.b16 %v29
  %v174 = vunpack.c.l.b16 %v30
  %v175 = vunpack.c.h.b16 %v30
  %v176 = vunpack.c.l.b16 %v31
  %v177 = vunpack.c.h.b16 %v31
  %v178 = vunpack.c.l.b16 %v32
  %v179 = vunpack.c.h.b16 %v32
  %v180 = vunpack.c.l.b16 %v33
  %v181 = vunpack.c.h.b16 %v33
  %v182 = vunpack.c.l.b16 %v34
  %v183 = vunpack.c.h.b16 %v34
  %v184 = vunpack.c.l.b16 %v35
  %v185 = vunpack.c.h.b16 %v35
  %v186 = vunpack.c.l.b16 %v36
  %v187 = vunpack.c.h.b16 %v36
  %v188 = vunpack.c.l.b16 %v37
  %v189 = vunpack.c.h.b16 %v37
  %v190 = vunpack.c.l.b16 %v38
  %v191 = vunpack.c.h.b16 %v38
  %v192 = vunpack.c.l.b16 %v39
  %v193 = vunpack.c.h.b16 %v39
  %v194 = vunpack.c.l.b16 %v40
  %v195 = vunpack.c.h.b16 %v40
  %v196 = vunpack.c.l.b16 %v41
  %v197 = vunpack.c.h.b16 %v41
  %v198 = vunpack.c.l.b16 %v42
  %v199 = vunpack.c.h.b16 %v42
  %v200 = vunpack.c.l.b16 %v43
  %v201 = vunpack.c.h.b16 %v43
  %v202 = vunpack.c.l.b16 %v44
  %v203 = vunpack.c.h.b16 %v44
  %v204 = vunpack.c.l.b16 %v45
  %v205 = vunpack.c.h.b16 %v45
  %v206 = vunpack.c.l.b16 %v46
  %v207 = vunpack.c.h.b16 %v46
  %v208 = vunpack.c.l.b16 %v47
  %v209 = vunpack.c.h.b16 %v47
  %v210 = vunpack.c.l.b16 %v48
  %v211 = vunpack.c.h.b16 %v48
  %v212 = vunpack.c.l.b16 %v49
  %v213 = vunpack.c.h.b16 %v49
  %v214 = vunpack.c.l.b16 %v50
  %v215 = vunpack.c.h.b16 %v50
  %v216 = vunpack.c.l.b16 %v51
  %v217 = vunpack.c.h.b16 %v51
  %v218 = vunpack.c.l.b16 %v52
  %v219 = vunpack.c.h.b16 %v52
  %v220 = vpack.c.b16 %v160, %v156
  %v221 = vpack.c.b16 %v161, %v157
  %v222 = vpack.c.b16 %v162, %v158
  %v223 = vpack.c.b16 %v163, %v159
  %v224 = vpack.c.b16 %v168, %v164
  %v225 = vpack.c.b16 %v169, %v165
  %v226 = vpack.c.b16 %v170, %v166
  %v227 = vpack.c.b16 %v171, %v167
  %v228 = vpack.c.b16 %v176, %v172
  %v229 = vpack.c.b16 %v177, %v173
  %v230 = vpack.c.b16 %v178, %v174
  %v231 = vpack.c.b16 %v179, %v175
  %v232 = vpack.c.b16 %v184, %v180
  %v233 = vpack.c.b16 %v185, %v181
  %v234 = vpack.c.b16 %v186, %v182
  %v235 = vpack.c.b16 %v187, %v183
  %v236 = vpack.c.b16 %v192, %v188
  %v237 = vpack.c.b16 %v193, %v189
  %v238 = vpack.c.b16 %v194, %v190
  %v239 = vpack.c.b16 %v195, %v191
  %v240 = vpack.c.b16 %v200, %v196
  %v241 = vpack.c.b16 %v201, %v197
  %v242 = vpack.c.b16 %v202, %v198
  %v243 = vpack.c.b16 %v203, %v199
  %v244 = vpack.c.b16 %v208, %v204
  %v245 = vpack.c.b16 %v209, %v205
  %v246 = vpack.c.b16 %v210, %v206
  %v247 = vpack.c.b16 %v211, %v207
  %v248 = vpack.c.b16 %v216, %v212
  %v249 = vpack.c.b16 %v217, %v213
  %v250 = vpack.c.b16 %v218, %v214
  %v251 = vpack.c.b16 %v219, %v215
  %v348 = vunpack.c.l.b16 %v53
  %v349 = vunpack.c.l.b16 %v54
  %v350 = vunpack.c.l.b16 %v55
  %v351 = vunpack.c.l.b16 %v56
  %v352 = vunpack.c.l.b16 %v57
  %v353 = vunpack.c.l.b16 %v58
  %v354 = vunpack.c.l.b16 %v59
  %v355 = vunpack.c.l.b16 %v60
  %v356 = vunpack.c.l.b16 %v61
  %v357 = vunpack.c.l.b16 %v62
  %v358 = vunpack.c.l.b16 %v63
  %v359 = vunpack.c.l.b16 %v64
  %v360 = vunpack.c.l.b16 %v65
  %v361 = vunpack.c.l.b16 %v66
  %v362 = vunpack.c.l.b16 %v67
  %v363 = vunpack.c.l.b16 %v68
  %v364 = vunpack.c.l.b16 %v69
  %v365 = vunpack.c.l.b16 %v70
  %v366 = vunpack.c.l.b16 %v71
  %v367 = vunpack.c.l.b16 %v72
  %v368 = vunpack.c.l.b16 %v73
  %v369 = vunpack.c.l.b16 %v74
  %v370 = vunpack.c.l.b16 %v75
  %v371 = vunpack.c.l.b16 %v76
  %v372 = vunpack.c.l.b16 %v77
  %v373 = vunpack.c.l.b16 %v78
  %v374 = vunpack.c.l.b16 %v79
  %v375 = vunpack.c.l.b16 %v80
  %v376 = vunpack.c.l.b16 %v81
  %v377 = vunpack.c.l.b16 %v82
  %v378 = vunpack.c.l.b16 %v83
  %v379 = vunpack.c.l.b16 %v84
  %v380 = vunpack.c.l.b16 %v85
  %v381 = vunpack.c.l.b16 %v86
  %v382 = vunpack.c.l.b16 %v87
  %v383 = vunpack.c.l.b16 %v88
  %v384 = vunpack.c.l.b16 %v89
  %v385 = vunpack.c.l.b16 %v90
  %v386 = vunpack.c.l.b16 %v91
  %v387 = vunpack.c.l.b16 %v92
  %v388 = vunpack.c.l.b16 %v93
  %v389 = vunpack.c.l.b16 %v94
  %v390 = vunpack.c.l.b16 %v95
  %v391 = vunpack.c.l.b16 %v96
  %v392 = vunpack.c.l.b16 %v97
  %v393 = vunpack.c.l.b16 %v98
  %v394 = vunpack.c.l.b16 %v99
  %v395 = vunpack.c.l.b16 %v100
  %v396 = vunpack.c.l.b16 %v101
  %v397 = vunpack.c.l.b16 %v102
  %v398 = vunpack.c.l.b16 %v103
  %v399 = vunpack.c.l.b16 %v104
  %v400 = vunpack.c.l.b16 %v105
  %v401 = vunpack.c.l.b16 %v106
  %v402 = vunpack.c.l.b16 %v107
  %v403 = vunpack.c.l.b16 %v108
  %v404 = vunpack.c.l.b16 %v109
  %v405 = vunpack.c.l.b16 %v110
  %v406 = vunpack.c.l.b16 %v111
  %v407 = vunpack.c.l.b16 %v112
  %v408 = vunpack.c.l.b16 %v113
  %v409 = vunpack.c.l.b16 %v114
  %v410 = vunpack.c.l.b16 %v115
  %v411 = vunpack.c.l.b16 %v116
  %v412 = vpack.c.b16 %v349, %v348
  %v413 = vpack.c.b16 %v351, %v350
  %v414 = vpack.c.b16 %v353, %v352
  %v415 = vpack.c.b16 %v355, %v354
  %v416 = vpack.c.b16 %v357, %v356
  %v417 = vpack.c.b16 %v359, %v358
  %v418 = vpack.c.b16 %v361, %v360
  %v419 = vpack.c.b16 %v363, %v362
  %v420 = vpack.c.b16 %v365, %v364
  %v421 = vpack.c.b16 %v367, %v366
  %v422 = vpack.c.b16 %v369, %v368
  %v423 = vpack.c.b16 %v371, %v370
  %v424 = vpack.c.b16 %v373, %v372
  %v425 = vpack.c.b16 %v375, %v374
  %v426 = vpack.c.b16 %v377, %v376
  %v427 = vpack.c.b16 %v379, %v378
  %v428 = vpack.c.b16 %v381, %v380
  %v429 = vpack.c.b16 %v383, %v382
  %v430 = vpack.c.b16 %v385, %v384
  %v431 = vpack.c.b16 %v387, %v386
  %v432 = vpack.c.b16 %v389, %v388
  %v433 = vpack.c.b16 %v391, %v390
  %v434 = vpack.c.b16 %v393, %v392
  %v435 = vpack.c.b16 %v395, %v394
  %v436 = vpack.c.b16 %v397, %v396
  %v437 = vpack.c.b16 %v399, %v398
  %v438 = vpack.c.b16 %v401, %v400
  %v439 = vpack.c.b16 %v403, %v402
  %v440 = vpack.c.b16 %v405, %v404
  %v441 = vpack.c.b16 %v407, %v406
  %v442 = vpack.c.b16 %v409, %v408
  %v443 = vpack.c.b16 %v411, %v410
  %476 = vmatprep.subr.bf16.mxu0 0
  %477 = vmatpush1.bf16.msra.mxu0 %v419
  %478 = vmatprep.subr.bf16.mxu0 0
  %479 = vmatpush1.bf16.msra.mxu0 %v418
  %480 = vmatprep.subr.bf16.mxu0 0
  %481 = vmatpush1.bf16.msra.mxu0 %v417
  %482 = vmatprep.subr.bf16.mxu0 0
  %483 = vmatpush1.bf16.msra.mxu0 %v416
  %484 = vmatprep.subr.bf16.mxu0 0
  %485 = vmatpush1.bf16.msra.mxu0 %v415
  %486 = vmatprep.subr.bf16.mxu0 0
  %487 = vmatpush1.bf16.msra.mxu0 %v414
  %488 = vmatprep.subr.bf16.mxu0 0
  %489 = vmatpush1.bf16.msra.mxu0 %v413
  %490 = vmatprep.subr.bf16.mxu0 0
  %491 = vmatpush1.bf16.msra.mxu0 %v412
  %492 = vmatprep.subr.bf16.mxu0 0
  %493 = vmatpush2.bf16.msra.mxu0 %v427
  %494 = vmatprep.subr.bf16.mxu0 0
  %495 = vmatpush2.bf16.msra.mxu0 %v426
  %496 = vmatprep.subr.bf16.mxu0 0
  %497 = vmatpush2.bf16.msra.mxu0 %v425
  %498 = vmatprep.subr.bf16.mxu0 0
  %499 = vmatpush2.bf16.msra.mxu0 %v424
  %500 = vmatprep.subr.bf16.mxu0 0
  %501 = vmatpush2.bf16.msra.mxu0 %v423
  %502 = vmatprep.subr.bf16.mxu0 0
  %503 = vmatpush2.bf16.msra.mxu0 %v422
  %504 = vmatprep.subr.bf16.mxu0 0
  %505 = vmatpush2.bf16.msra.mxu0 %v421
  %506 = vmatprep.subr.bf16.mxu0 0
  %507 = vmatpush2.bf16.msra.mxu0 %v420
  %508 = vmatprep.mubr.bf16.mxu0 %v221
  %509 = vmatmul.mubr.bf16.gmra.mxu0 %v220
  %v510 = vpop.f32.mrf.mxu0
  %v511 = vadd.f32 %v122, %v510
  %v512 = vpop.f32.mrf.mxu0
  %v513 = vpop.f32.mrf.mxu0
  %v514 = vadd.f32 %v122, %v513
  %v515 = vpop.f32.mrf.mxu0
  %516 = vmatprep.mubr.bf16.mxu0 %v225
  %517 = vmatmul.mubr.bf16.gmra.mxu0 %v224
  %v518 = vpop.f32.mrf.mxu0
  %v519 = vadd.f32 %v122, %v518
  %v520 = vpop.f32.mrf.mxu0
  %v521 = vpop.f32.mrf.mxu0
  %v522 = vadd.f32 %v122, %v521
  %v523 = vpop.f32.mrf.mxu0
  %524 = vmatprep.mubr.bf16.mxu0 %v229
  %525 = vmatmul.mubr.bf16.gmra.mxu0 %v228
  %v526 = vpop.f32.mrf.mxu0
  %v527 = vadd.f32 %v122, %v526
  %v528 = vpop.f32.mrf.mxu0
  %v529 = vpop.f32.mrf.mxu0
  %v530 = vadd.f32 %v122, %v529
  %v531 = vpop.f32.mrf.mxu0
  %532 = vmatprep.mubr.bf16.mxu0 %v233
  %533 = vmatmul.mubr.bf16.gmra.mxu0 %v232
  %v534 = vpop.f32.mrf.mxu0
  %v535 = vadd.f32 %v122, %v534
  %v536 = vpop.f32.mrf.mxu0
  %v537 = vpop.f32.mrf.mxu0
  %v538 = vadd.f32 %v122, %v537
  %v539 = vpop.f32.mrf.mxu0
  %540 = vmatprep.mubr.bf16.mxu0 %v237
  %541 = vmatmul.mubr.bf16.gmra.mxu0 %v236
  %v542 = vpop.f32.mrf.mxu0
  %v543 = vadd.f32 %v122, %v542
  %v544 = vpop.f32.mrf.mxu0
  %v545 = vpop.f32.mrf.mxu0
  %v546 = vadd.f32 %v122, %v545
  %v547 = vpop.f32.mrf.mxu0
  %548 = vmatprep.mubr.bf16.mxu0 %v241
  %549 = vmatmul.mubr.bf16.gmra.mxu0 %v240
  %v550 = vpop.f32.mrf.mxu0
  %v551 = vadd.f32 %v122, %v550
  %v552 = vpop.f32.mrf.mxu0
  %v553 = vpop.f32.mrf.mxu0
  %v554 = vadd.f32 %v122, %v553
  %v555 = vpop.f32.mrf.mxu0
  %556 = vmatprep.mubr.bf16.mxu0 %v245
  %557 = vmatmul.mubr.bf16.gmra.mxu0 %v244
  %v558 = vpop.f32.mrf.mxu0
  %v559 = vadd.f32 %v122, %v558
  %v560 = vpop.f32.mrf.mxu0
  %v561 = vpop.f32.mrf.mxu0
  %v562 = vadd.f32 %v122, %v561
  %v563 = vpop.f32.mrf.mxu0
  %564 = vmatprep.mubr.bf16.mxu0 %v249
  %565 = vmatmul.mubr.bf16.gmra.mxu0 %v248
  %v566 = vpop.f32.mrf.mxu0
  %v567 = vadd.f32 %v122, %v566
  %v568 = vpop.f32.mrf.mxu0
  %v569 = vpop.f32.mrf.mxu0
  %v570 = vadd.f32 %v122, %v569
  %v571 = vpop.f32.mrf.mxu0
  %572 = vdwg.mxu0
  %573 = vmatprep.subr.bf16.mxu0 0
  %574 = vmatpush1.bf16.msra.mxu0 %v435
  %575 = vmatprep.subr.bf16.mxu0 0
  %576 = vmatpush1.bf16.msra.mxu0 %v434
  %577 = vmatprep.subr.bf16.mxu0 0
  %578 = vmatpush1.bf16.msra.mxu0 %v433
  %579 = vmatprep.subr.bf16.mxu0 0
  %580 = vmatpush1.bf16.msra.mxu0 %v432
  %581 = vmatprep.subr.bf16.mxu0 0
  %582 = vmatpush1.bf16.msra.mxu0 %v431
  %583 = vmatprep.subr.bf16.mxu0 0
  %584 = vmatpush1.bf16.msra.mxu0 %v430
  %585 = vmatprep.subr.bf16.mxu0 0
  %586 = vmatpush1.bf16.msra.mxu0 %v429
  %587 = vmatprep.subr.bf16.mxu0 0
  %588 = vmatpush1.bf16.msra.mxu0 %v428
  %589 = vmatprep.subr.bf16.mxu0 0
  %590 = vmatpush2.bf16.msra.mxu0 %v443
  %591 = vmatprep.subr.bf16.mxu0 0
  %592 = vmatpush2.bf16.msra.mxu0 %v442
  %593 = vmatprep.subr.bf16.mxu0 0
  %594 = vmatpush2.bf16.msra.mxu0 %v441
  %595 = vmatprep.subr.bf16.mxu0 0
  %596 = vmatpush2.bf16.msra.mxu0 %v440
  %597 = vmatprep.subr.bf16.mxu0 0
  %598 = vmatpush2.bf16.msra.mxu0 %v439
  %599 = vmatprep.subr.bf16.mxu0 0
  %600 = vmatpush2.bf16.msra.mxu0 %v438
  %601 = vmatprep.subr.bf16.mxu0 0
  %602 = vmatpush2.bf16.msra.mxu0 %v437
  %603 = vmatprep.subr.bf16.mxu0 0
  %604 = vmatpush2.bf16.msra.mxu0 %v436
  %605 = vmatprep.mubr.bf16.mxu0 %v223
  %606 = vmatmul.mubr.bf16.gmra.mxu0 %v222
  %v607 = vpop.f32.mrf.mxu0
  %v608 = vadd.f32 %v511, %v607
  %v609 = vpop.f32.mrf.mxu0
  %v610 = vpop.f32.mrf.mxu0
  %v611 = vadd.f32 %v514, %v610
  %v612 = vpop.f32.mrf.mxu0
  %613 = vmatprep.mubr.bf16.mxu0 %v227
  %614 = vmatmul.mubr.bf16.gmra.mxu0 %v226
  %v615 = vpop.f32.mrf.mxu0
  %v616 = vadd.f32 %v519, %v615
  %v617 = vpop.f32.mrf.mxu0
  %v618 = vpop.f32.mrf.mxu0
  %v619 = vadd.f32 %v522, %v618
  %v620 = vpop.f32.mrf.mxu0
  %621 = vmatprep.mubr.bf16.mxu0 %v231
  %622 = vmatmul.mubr.bf16.gmra.mxu0 %v230
  %v623 = vpop.f32.mrf.mxu0
  %v624 = vadd.f32 %v527, %v623
  %v625 = vpop.f32.mrf.mxu0
  %v626 = vpop.f32.mrf.mxu0
  %v627 = vadd.f32 %v530, %v626
  %v628 = vpop.f32.mrf.mxu0
  %629 = vmatprep.mubr.bf16.mxu0 %v235
  %630 = vmatmul.mubr.bf16.gmra.mxu0 %v234
  %v631 = vpop.f32.mrf.mxu0
  %v632 = vadd.f32 %v535, %v631
  %v633 = vpop.f32.mrf.mxu0
  %v634 = vpop.f32.mrf.mxu0
  %v635 = vadd.f32 %v538, %v634
  %v636 = vpop.f32.mrf.mxu0
  %637 = vmatprep.mubr.bf16.mxu0 %v239
  %638 = vmatmul.mubr.bf16.gmra.mxu0 %v238
  %v639 = vpop.f32.mrf.mxu0
  %v640 = vadd.f32 %v543, %v639
  %v641 = vpop.f32.mrf.mxu0
  %v642 = vpop.f32.mrf.mxu0
  %v643 = vadd.f32 %v546, %v642
  %v644 = vpop.f32.mrf.mxu0
  %645 = vmatprep.mubr.bf16.mxu0 %v243
  %646 = vmatmul.mubr.bf16.gmra.mxu0 %v242
  %v647 = vpop.f32.mrf.mxu0
  %v648 = vadd.f32 %v551, %v647
  %v649 = vpop.f32.mrf.mxu0
  %v650 = vpop.f32.mrf.mxu0
  %v651 = vadd.f32 %v554, %v650
  %v652 = vpop.f32.mrf.mxu0
  %653 = vmatprep.mubr.bf16.mxu0 %v247
  %654 = vmatmul.mubr.bf16.gmra.mxu0 %v246
  %v655 = vpop.f32.mrf.mxu0
  %v656 = vadd.f32 %v559, %v655
  %v657 = vpop.f32.mrf.mxu0
  %v658 = vpop.f32.mrf.mxu0
  %v659 = vadd.f32 %v562, %v658
  %v660 = vpop.f32.mrf.mxu0
  %661 = vmatprep.mubr.bf16.mxu0 %v251
  %662 = vmatmul.mubr.bf16.gmra.mxu0 %v250
  %v663 = vpop.f32.mrf.mxu0
  %v664 = vadd.f32 %v567, %v663
  %v665 = vpop.f32.mrf.mxu0
  %v666 = vpop.f32.mrf.mxu0
  %v667 = vadd.f32 %v570, %v666
  %v668 = vpop.f32.mrf.mxu0
  %669 = vdwg.mxu0
  %v670 = vmax.f32 %v608, 0.0
  %v671 = vmax.f32 %v611, 0.0
  %v672 = vmax.f32 %v616, 0.0
  %v673 = vmax.f32 %v619, 0.0
  %v674 = vmax.f32 %v624, 0.0
  %v675 = vmax.f32 %v627, 0.0
  %v676 = vmax.f32 %v632, 0.0
  %v677 = vmax.f32 %v635, 0.0
  %v678 = vmax.f32 %v640, 0.0
  %v679 = vmax.f32 %v643, 0.0
  %v680 = vmax.f32 %v648, 0.0
  %v681 = vmax.f32 %v651, 0.0
  %v682 = vmax.f32 %v656, 0.0
  %v683 = vmax.f32 %v659, 0.0
  %v684 = vmax.f32 %v664, 0.0
  %v685 = vmax.f32 %v667, 0.0
  %v686 = vpack.c.bf16 %v670, %v670
  %v687 = vld [vmem:[%s3] sm:$0xf]
  %v688 = vld [vmem:[%s3 + $0x4] sm:$0xf]
  %v689 = vld [vmem:[%s3 + $0x8] sm:$0xf]
  %v690 = vld [vmem:[%s3 + $0xc] sm:$0xf]
  %v691 = vld [vmem:[%s3 + $0x10] sm:$0xf]
  %v692 = vld [vmem:[%s3 + $0x14] sm:$0xf]
  %v693 = vld [vmem:[%s3 + $0x18] sm:$0xf]
  %v694 = vld [vmem:[%s3 + $0x1c] sm:$0xf]
  %v695 = vld [vmem:[%s3 + $0x20] sm:$0xf]
  %v696 = vld [vmem:[%s3 + $0x24] sm:$0xf]
  %v697 = vld [vmem:[%s3 + $0x28] sm:$0xf]
  %v698 = vld [vmem:[%s3 + $0x2c] sm:$0xf]
  %v699 = vld [vmem:[%s3 + $0x30] sm:$0xf]
  %v700 = vld [vmem:[%s3 + $0x34] sm:$0xf]
  %v701 = vld [vmem:[%s3 + $0x38] sm:$0xf]
  %v702 = vld [vmem:[%s3 + $0x3c] sm:$0xf]
  %v703 = vpack.c.bf16 %v671, %v671
  %v704 = vld [vmem:[%s3 + $0x40] sm:$0xf]
  %v705 = vld [vmem:[%s3 + $0x44] sm:$0xf]
  %v706 = vld [vmem:[%s3 + $0x48] sm:$0xf]
  %v707 = vld [vmem:[%s3 + $0x4c] sm:$0xf]
  %v708 = vld [vmem:[%s3 + $0x50] sm:$0xf]
  %v709 = vld [vmem:[%s3 + $0x54] sm:$0xf]
  %v710 = vld [vmem:[%s3 + $0x58] sm:$0xf]
  %v711 = vld [vmem:[%s3 + $0x5c] sm:$0xf]
  %v712 = vld [vmem:[%s3 + $0x60] sm:$0xf]
  %v713 = vld [vmem:[%s3 + $0x64] sm:$0xf]
  %v714 = vld [vmem:[%s3 + $0x68] sm:$0xf]
  %v715 = vld [vmem:[%s3 + $0x6c] sm:$0xf]
  %v716 = vld [vmem:[%s3 + $0x70] sm:$0xf]
  %v717 = vld [vmem:[%s3 + $0x74] sm:$0xf]
  %v718 = vld [vmem:[%s3 + $0x78] sm:$0xf]
  %v719 = vld [vmem:[%s3 + $0x7c] sm:$0xf]
  %v736 = vunpack.c.l.b16 %v704
  %v737 = vunpack.c.l.b16 %v705
  %v738 = vunpack.c.l.b16 %v706
  %v739 = vunpack.c.l.b16 %v707
  %v740 = vunpack.c.l.b16 %v708
  %v741 = vunpack.c.l.b16 %v709
  %v742 = vunpack.c.l.b16 %v710
  %v743 = vunpack.c.l.b16 %v711
  %v744 = vunpack.c.l.b16 %v712
  %v745 = vunpack.c.l.b16 %v713
  %v746 = vunpack.c.l.b16 %v714
  %v747 = vunpack.c.l.b16 %v715
  %v748 = vunpack.c.l.b16 %v716
  %v749 = vunpack.c.l.b16 %v717
  %v750 = vunpack.c.l.b16 %v718
  %v751 = vunpack.c.l.b16 %v719
  %v752 = vpack.c.b16 %v737, %v736
  %v753 = vpack.c.b16 %v739, %v738
  %v754 = vpack.c.b16 %v741, %v740
  %v755 = vpack.c.b16 %v743, %v742
  %v756 = vpack.c.b16 %v745, %v744
  %v757 = vpack.c.b16 %v747, %v746
  %v758 = vpack.c.b16 %v749, %v748
  %v759 = vpack.c.b16 %v751, %v750
  %768 = vmatprep.subr.bf16.mxu0 0
  %769 = vmatpush1.bf16.msra.mxu0 %v759
  %770 = vmatprep.subr.bf16.mxu0 0
  %771 = vmatpush1.bf16.msra.mxu0 %v758
  %772 = vmatprep.subr.bf16.mxu0 0
  %773 = vmatpush1.bf16.msra.mxu0 %v757
  %774 = vmatprep.subr.bf16.mxu0 0
  %775 = vmatpush1.bf16.msra.mxu0 %v756
  %776 = vmatprep.subr.bf16.mxu0 0
  %777 = vmatpush1.bf16.msra.mxu0 %v755
  %778 = vmatprep.subr.bf16.mxu0 0
  %779 = vmatpush1.bf16.msra.mxu0 %v754
  %780 = vmatprep.subr.bf16.mxu0 0
  %781 = vmatpush1.bf16.msra.mxu0 %v753
  %782 = vmatprep.subr.bf16.mxu0 0
  %783 = vmatpush1.bf16.msra.mxu0 %v752
  %784 = vmatprep.subr.bf16.mxu0 0
  %785 = vmatpush2.bf16.msra.mxu0 0
  %786 = vmatprep.subr.bf16.mxu0 0
  %787 = vmatpush2.bf16.msra.mxu0 0
  %788 = vmatprep.subr.bf16.mxu0 0
  %789 = vmatpush2.bf16.msra.mxu0 0
  %790 = vmatprep.subr.bf16.mxu0 0
  %791 = vmatpush2.bf16.msra.mxu0 0
  %792 = vmatprep.subr.bf16.mxu0 0
  %793 = vmatpush2.bf16.msra.mxu0 0
  %794 = vmatprep.subr.bf16.mxu0 0
  %795 = vmatpush2.bf16.msra.mxu0 0
  %796 = vmatprep.subr.bf16.mxu0 0
  %797 = vmatpush2.bf16.msra.mxu0 0
  %798 = vmatprep.subr.bf16.mxu0 0
  %799 = vmatpush2.bf16.msra.mxu0 0
  %800 = vmatprep.mubr.bf16.mxu0 0
  %801 = vmatmul.mubr.bf16.gmra.mxu0 %v703
  %v802 = vpop.f32.mrf.mxu0
  %v803 = vadd.f32 0.0, %v802
  %v804 = vpop.f32.mrf.mxu0
  %v805 = vpop.f32.mrf.mxu0
  %v806 = vpop.f32.mrf.mxu0
  %807 = vdwg.mxu0
  %v824 = vunpack.c.l.b16 %v687
  %v825 = vunpack.c.l.b16 %v688
  %v826 = vunpack.c.l.b16 %v689
  %v827 = vunpack.c.l.b16 %v690
  %v828 = vunpack.c.l.b16 %v691
  %v829 = vunpack.c.l.b16 %v692
  %v830 = vunpack.c.l.b16 %v693
  %v831 = vunpack.c.l.b16 %v694
  %v832 = vunpack.c.l.b16 %v695
  %v833 = vunpack.c.l.b16 %v696
  %v834 = vunpack.c.l.b16 %v697
  %v835 = vunpack.c.l.b16 %v698
  %v836 = vunpack.c.l.b16 %v699
  %v837 = vunpack.c.l.b16 %v700
  %v838 = vunpack.c.l.b16 %v701
  %v839 = vunpack.c.l.b16 %v702
  %v840 = vpack.c.b16 %v825, %v824
  %v841 = vpack.c.b16 %v827, %v826
  %v842 = vpack.c.b16 %v829, %v828
  %v843 = vpack.c.b16 %v831, %v830
  %v844 = vpack.c.b16 %v833, %v832
  %v845 = vpack.c.b16 %v835, %v834
  %v846 = vpack.c.b16 %v837, %v836
  %v847 = vpack.c.b16 %v839, %v838
  %856 = vmatprep.subr.bf16.mxu0 0
  %857 = vmatpush1.bf16.msra.mxu0 %v847
  %858 = vmatprep.subr.bf16.mxu0 0
  %859 = vmatpush1.bf16.msra.mxu0 %v846
  %860 = vmatprep.subr.bf16.mxu0 0
  %861 = vmatpush1.bf16.msra.mxu0 %v845
  %862 = vmatprep.subr.bf16.mxu0 0
  %863 = vmatpush1.bf16.msra.mxu0 %v844
  %864 = vmatprep.subr.bf16.mxu0 0
  %865 = vmatpush1.bf16.msra.mxu0 %v843
  %866 = vmatprep.subr.bf16.mxu0 0
  %867 = vmatpush1.bf16.msra.mxu0 %v842
  %868 = vmatprep.subr.bf16.mxu0 0
  %869 = vmatpush1.bf16.msra.mxu0 %v841
  %870 = vmatprep.subr.bf16.mxu0 0
  %871 = vmatpush1.bf16.msra.mxu0 %v840
  %872 = vmatprep.subr.bf16.mxu0 0
  %873 = vmatpush2.bf16.msra.mxu0 0
  %874 = vmatprep.subr.bf16.mxu0 0
  %875 = vmatpush2.bf16.msra.mxu0 0
  %876 = vmatprep.subr.bf16.mxu0 0
  %877 = vmatpush2.bf16.msra.mxu0 0
  %878 = vmatprep.subr.bf16.mxu0 0
  %879 = vmatpush2.bf16.msra.mxu0 0
  %880 = vmatprep.subr.bf16.mxu0 0
  %881 = vmatpush2.bf16.msra.mxu0 0
  %882 = vmatprep.subr.bf16.mxu0 0
  %883 = vmatpush2.bf16.msra.mxu0 0
  %884 = vmatprep.subr.bf16.mxu0 0
  %885 = vmatpush2.bf16.msra.mxu0 0
  %886 = vmatprep.subr.bf16.mxu0 0
  %887 = vmatpush2.bf16.msra.mxu0 0
  %888 = vmatprep.mubr.bf16.mxu0 0
  %889 = vmatmul.mubr.bf16.gmra.mxu0 %v686
  %v890 = vpop.f32.mrf.mxu0
  %v891 = vadd.f32 %v803, %v890
  %v892 = vpop.f32.mrf.mxu0
  %v893 = vpop.f32.mrf.mxu0
  %v894 = vpop.f32.mrf.mxu0
  %895 = vdwg.mxu0
  %v896 = vpack.c.bf16 %v672, %v672
  %v897 = vld [vmem:[%s3 + $0x80] sm:$0xf]
  %v898 = vld [vmem:[%s3 + $0x84] sm:$0xf]
  %v899 = vld [vmem:[%s3 + $0x88] sm:$0xf]
  %v900 = vld [vmem:[%s3 + $0x8c] sm:$0xf]
  %v901 = vld [vmem:[%s3 + $0x90] sm:$0xf]
  %v902 = vld [vmem:[%s3 + $0x94] sm:$0xf]
  %v903 = vld [vmem:[%s3 + $0x98] sm:$0xf]
  %v904 = vld [vmem:[%s3 + $0x9c] sm:$0xf]
  %v905 = vld [vmem:[%s3 + $0xa0] sm:$0xf]
  %v906 = vld [vmem:[%s3 + $0xa4] sm:$0xf]
  %v907 = vld [vmem:[%s3 + $0xa8] sm:$0xf]
  %v908 = vld [vmem:[%s3 + $0xac] sm:$0xf]
  %v909 = vld [vmem:[%s3 + $0xb0] sm:$0xf]
  %v910 = vld [vmem:[%s3 + $0xb4] sm:$0xf]
  %v911 = vld [vmem:[%s3 + $0xb8] sm:$0xf]
  %v912 = vld [vmem:[%s3 + $0xbc] sm:$0xf]
  %v929 = vunpack.c.l.b16 %v897
  %v930 = vunpack.c.l.b16 %v898
  %v931 = vunpack.c.l.b16 %v899
  %v932 = vunpack.c.l.b16 %v900
  %v933 = vunpack.c.l.b16 %v901
  %v934 = vunpack.c.l.b16 %v902
  %v935 = vunpack.c.l.b16 %v903
  %v936 = vunpack.c.l.b16 %v904
  %v937 = vunpack.c.l.b16 %v905
  %v938 = vunpack.c.l.b16 %v906
  %v939 = vunpack.c.l.b16 %v907
  %v940 = vunpack.c.l.b16 %v908
  %v941 = vunpack.c.l.b16 %v909
  %v942 = vunpack.c.l.b16 %v910
  %v943 = vunpack.c.l.b16 %v911
  %v944 = vunpack.c.l.b16 %v912
  %v945 = vpack.c.b16 %v930, %v929
  %v946 = vpack.c.b16 %v932, %v931
  %v947 = vpack.c.b16 %v934, %v933
  %v948 = vpack.c.b16 %v936, %v935
  %v949 = vpack.c.b16 %v938, %v937
  %v950 = vpack.c.b16 %v940, %v939
  %v951 = vpack.c.b16 %v942, %v941
  %v952 = vpack.c.b16 %v944, %v943
  %961 = vmatprep.subr.bf16.mxu0 0
  %962 = vmatpush1.bf16.msra.mxu0 %v952
  %963 = vmatprep.subr.bf16.mxu0 0
  %964 = vmatpush1.bf16.msra.mxu0 %v951
  %965 = vmatprep.subr.bf16.mxu0 0
  %966 = vmatpush1.bf16.msra.mxu0 %v950
  %967 = vmatprep.subr.bf16.mxu0 0
  %968 = vmatpush1.bf16.msra.mxu0 %v949
  %969 = vmatprep.subr.bf16.mxu0 0
  %970 = vmatpush1.bf16.msra.mxu0 %v948
  %971 = vmatprep.subr.bf16.mxu0 0
  %972 = vmatpush1.bf16.msra.mxu0 %v947
  %973 = vmatprep.subr.bf16.mxu0 0
  %974 = vmatpush1.bf16.msra.mxu0 %v946
  %975 = vmatprep.subr.bf16.mxu0 0
  %976 = vmatpush1.bf16.msra.mxu0 %v945
  %977 = vmatprep.subr.bf16.mxu0 0
  %978 = vmatpush2.bf16.msra.mxu0 0
  %979 = vmatprep.subr.bf16.mxu0 0
  %980 = vmatpush2.bf16.msra.mxu0 0
  %981 = vmatprep.subr.bf16.mxu0 0
  %982 = vmatpush2.bf16.msra.mxu0 0
  %983 = vmatprep.subr.bf16.mxu0 0
  %984 = vmatpush2.bf16.msra.mxu0 0
  %985 = vmatprep.subr.bf16.mxu0 0
  %986 = vmatpush2.bf16.msra.mxu0 0
  %987 = vmatprep.subr.bf16.mxu0 0
  %988 = vmatpush2.bf16.msra.mxu0 0
  %989 = vmatprep.subr.bf16.mxu0 0
  %990 = vmatpush2.bf16.msra.mxu0 0
  %991 = vmatprep.subr.bf16.mxu0 0
  %992 = vmatpush2.bf16.msra.mxu0 0
  %993 = vmatprep.mubr.bf16.mxu0 0
  %994 = vmatmul.mubr.bf16.gmra.mxu0 %v896
  %v995 = vpop.f32.mrf.mxu0
  %v996 = vadd.f32 0.0, %v995
  %v997 = vpop.f32.mrf.mxu0
  %v998 = vpop.f32.mrf.mxu0
  %v999 = vpop.f32.mrf.mxu0
  %1000 = vdwg.mxu0
  %v1001 = vadd.f32 %v891, %v996
  %v1002 = vpack.c.bf16 %v673, %v673
  %v1003 = vld [vmem:[%s3 + $0xc0] sm:$0xf]
  %v1004 = vld [vmem:[%s3 + $0xc4] sm:$0xf]
  %v1005 = vld [vmem:[%s3 + $0xc8] sm:$0xf]
  %v1006 = vld [vmem:[%s3 + $0xcc] sm:$0xf]
  %v1007 = vld [vmem:[%s3 + $0xd0] sm:$0xf]
  %v1008 = vld [vmem:[%s3 + $0xd4] sm:$0xf]
  %v1009 = vld [vmem:[%s3 + $0xd8] sm:$0xf]
  %v1010 = vld [vmem:[%s3 + $0xdc] sm:$0xf]
  %v1011 = vld [vmem:[%s3 + $0xe0] sm:$0xf]
  %v1012 = vld [vmem:[%s3 + $0xe4] sm:$0xf]
  %v1013 = vld [vmem:[%s3 + $0xe8] sm:$0xf]
  %v1014 = vld [vmem:[%s3 + $0xec] sm:$0xf]
  %v1015 = vld [vmem:[%s3 + $0xf0] sm:$0xf]
  %v1016 = vld [vmem:[%s3 + $0xf4] sm:$0xf]
  %v1017 = vld [vmem:[%s3 + $0xf8] sm:$0xf]
  %v1018 = vld [vmem:[%s3 + $0xfc] sm:$0xf]
  %v1035 = vunpack.c.l.b16 %v1003
  %v1036 = vunpack.c.l.b16 %v1004
  %v1037 = vunpack.c.l.b16 %v1005
  %v1038 = vunpack.c.l.b16 %v1006
  %v1039 = vunpack.c.l.b16 %v1007
  %v1040 = vunpack.c.l.b16 %v1008
  %v1041 = vunpack.c.l.b16 %v1009
  %v1042 = vunpack.c.l.b16 %v1010
  %v1043 = vunpack.c.l.b16 %v1011
  %v1044 = vunpack.c.l.b16 %v1012
  %v1045 = vunpack.c.l.b16 %v1013
  %v1046 = vunpack.c.l.b16 %v1014
  %v1047 = vunpack.c.l.b16 %v1015
  %v1048 = vunpack.c.l.b16 %v1016
  %v1049 = vunpack.c.l.b16 %v1017
  %v1050 = vunpack.c.l.b16 %v1018
  %v1051 = vpack.c.b16 %v1036, %v1035
  %v1052 = vpack.c.b16 %v1038, %v1037
  %v1053 = vpack.c.b16 %v1040, %v1039
  %v1054 = vpack.c.b16 %v1042, %v1041
  %v1055 = vpack.c.b16 %v1044, %v1043
  %v1056 = vpack.c.b16 %v1046, %v1045
  %v1057 = vpack.c.b16 %v1048, %v1047
  %v1058 = vpack.c.b16 %v1050, %v1049
  %1067 = vmatprep.subr.bf16.mxu0 0
  %1068 = vmatpush1.bf16.msra.mxu0 %v1058
  %1069 = vmatprep.subr.bf16.mxu0 0
  %1070 = vmatpush1.bf16.msra.mxu0 %v1057
  %1071 = vmatprep.subr.bf16.mxu0 0
  %1072 = vmatpush1.bf16.msra.mxu0 %v1056
  %1073 = vmatprep.subr.bf16.mxu0 0
  %1074 = vmatpush1.bf16.msra.mxu0 %v1055
  %1075 = vmatprep.subr.bf16.mxu0 0
  %1076 = vmatpush1.bf16.msra.mxu0 %v1054
  %1077 = vmatprep.subr.bf16.mxu0 0
  %1078 = vmatpush1.bf16.msra.mxu0 %v1053
  %1079 = vmatprep.subr.bf16.mxu0 0
  %1080 = vmatpush1.bf16.msra.mxu0 %v1052
  %1081 = vmatprep.subr.bf16.mxu0 0
  %1082 = vmatpush1.bf16.msra.mxu0 %v1051
  %1083 = vmatprep.subr.bf16.mxu0 0
  %1084 = vmatpush2.bf16.msra.mxu0 0
  %1085 = vmatprep.subr.bf16.mxu0 0
  %1086 = vmatpush2.bf16.msra.mxu0 0
  %1087 = vmatprep.subr.bf16.mxu0 0
  %1088 = vmatpush2.bf16.msra.mxu0 0
  %1089 = vmatprep.subr.bf16.mxu0 0
  %1090 = vmatpush2.bf16.msra.mxu0 0
  %1091 = vmatprep.subr.bf16.mxu0 0
  %1092 = vmatpush2.bf16.msra.mxu0 0
  %1093 = vmatprep.subr.bf16.mxu0 0
  %1094 = vmatpush2.bf16.msra.mxu0 0
  %1095 = vmatprep.subr.bf16.mxu0 0
  %1096 = vmatpush2.bf16.msra.mxu0 0
  %1097 = vmatprep.subr.bf16.mxu0 0
  %1098 = vmatpush2.bf16.msra.mxu0 0
  %1099 = vmatprep.mubr.bf16.mxu0 0
  %1100 = vmatmul.mubr.bf16.gmra.mxu0 %v1002
  %v1101 = vpop.f32.mrf.mxu0
  %v1102 = vadd.f32 0.0, %v1101
  %v1103 = vpop.f32.mrf.mxu0
  %v1104 = vpop.f32.mrf.mxu0
  %v1105 = vpop.f32.mrf.mxu0
  %1106 = vdwg.mxu0
  %v1107 = vadd.f32 %v1001, %v1102
  %v1108 = vpack.c.bf16 %v674, %v674
  %v1109 = vld [vmem:[%s3 + $0x100] sm:$0xf]
  %v1110 = vld [vmem:[%s3 + $0x104] sm:$0xf]
  %v1111 = vld [vmem:[%s3 + $0x108] sm:$0xf]
  %v1112 = vld [vmem:[%s3 + $0x10c] sm:$0xf]
  %v1113 = vld [vmem:[%s3 + $0x110] sm:$0xf]
  %v1114 = vld [vmem:[%s3 + $0x114] sm:$0xf]
  %v1115 = vld [vmem:[%s3 + $0x118] sm:$0xf]
  %v1116 = vld [vmem:[%s3 + $0x11c] sm:$0xf]
  %v1117 = vld [vmem:[%s3 + $0x120] sm:$0xf]
  %v1118 = vld [vmem:[%s3 + $0x124] sm:$0xf]
  %v1119 = vld [vmem:[%s3 + $0x128] sm:$0xf]
  %v1120 = vld [vmem:[%s3 + $0x12c] sm:$0xf]
  %v1121 = vld [vmem:[%s3 + $0x130] sm:$0xf]
  %v1122 = vld [vmem:[%s3 + $0x134] sm:$0xf]
  %v1123 = vld [vmem:[%s3 + $0x138] sm:$0xf]
  %v1124 = vld [vmem:[%s3 + $0x13c] sm:$0xf]
  %v1141 = vunpack.c.l.b16 %v1109
  %v1142 = vunpack.c.l.b16 %v1110
  %v1143 = vunpack.c.l.b16 %v1111
  %v1144 = vunpack.c.l.b16 %v1112
  %v1145 = vunpack.c.l.b16 %v1113
  %v1146 = vunpack.c.l.b16 %v1114
  %v1147 = vunpack.c.l.b16 %v1115
  %v1148 = vunpack.c.l.b16 %v1116
  %v1149 = vunpack.c.l.b16 %v1117
  %v1150 = vunpack.c.l.b16 %v1118
  %v1151 = vunpack.c.l.b16 %v1119
  %v1152 = vunpack.c.l.b16 %v1120
  %v1153 = vunpack.c.l.b16 %v1121
  %v1154 = vunpack.c.l.b16 %v1122
  %v1155 = vunpack.c.l.b16 %v1123
  %v1156 = vunpack.c.l.b16 %v1124
  %v1157 = vpack.c.b16 %v1142, %v1141
  %v1158 = vpack.c.b16 %v1144, %v1143
  %v1159 = vpack.c.b16 %v1146, %v1145
  %v1160 = vpack.c.b16 %v1148, %v1147
  %v1161 = vpack.c.b16 %v1150, %v1149
  %v1162 = vpack.c.b16 %v1152, %v1151
  %v1163 = vpack.c.b16 %v1154, %v1153
  %v1164 = vpack.c.b16 %v1156, %v1155
  %1173 = vmatprep.subr.bf16.mxu0 0
  %1174 = vmatpush1.bf16.msra.mxu0 %v1164
  %1175 = vmatprep.subr.bf16.mxu0 0
  %1176 = vmatpush1.bf16.msra.mxu0 %v1163
  %1177 = vmatprep.subr.bf16.mxu0 0
  %1178 = vmatpush1.bf16.msra.mxu0 %v1162
  %1179 = vmatprep.subr.bf16.mxu0 0
  %1180 = vmatpush1.bf16.msra.mxu0 %v1161
  %1181 = vmatprep.subr.bf16.mxu0 0
  %1182 = vmatpush1.bf16.msra.mxu0 %v1160
  %1183 = vmatprep.subr.bf16.mxu0 0
  %1184 = vmatpush1.bf16.msra.mxu0 %v1159
  %1185 = vmatprep.subr.bf16.mxu0 0
  %1186 = vmatpush1.bf16.msra.mxu0 %v1158
  %1187 = vmatprep.subr.bf16.mxu0 0
  %1188 = vmatpush1.bf16.msra.mxu0 %v1157
  %1189 = vmatprep.subr.bf16.mxu0 0
  %1190 = vmatpush2.bf16.msra.mxu0 0
  %1191 = vmatprep.subr.bf16.mxu0 0
  %1192 = vmatpush2.bf16.msra.mxu0 0
  %1193 = vmatprep.subr.bf16.mxu0 0
  %1194 = vmatpush2.bf16.msra.mxu0 0
  %1195 = vmatprep.subr.bf16.mxu0 0
  %1196 = vmatpush2.bf16.msra.mxu0 0
  %1197 = vmatprep.subr.bf16.mxu0 0
  %1198 = vmatpush2.bf16.msra.mxu0 0
  %1199 = vmatprep.subr.bf16.mxu0 0
  %1200 = vmatpush2.bf16.msra.mxu0 0
  %1201 = vmatprep.subr.bf16.mxu0 0
  %1202 = vmatpush2.bf16.msra.mxu0 0
  %1203 = vmatprep.subr.bf16.mxu0 0
  %1204 = vmatpush2.bf16.msra.mxu0 0
  %1205 = vmatprep.mubr.bf16.mxu0 0
  %1206 = vmatmul.mubr.bf16.gmra.mxu0 %v1108
  %v1207 = vpop.f32.mrf.mxu0
  %v1208 = vadd.f32 0.0, %v1207
  %v1209 = vpop.f32.mrf.mxu0
  %v1210 = vpop.f32.mrf.mxu0
  %v1211 = vpop.f32.mrf.mxu0
  %1212 = vdwg.mxu0
  %v1213 = vadd.f32 %v1107, %v1208
  %v1214 = vpack.c.bf16 %v675, %v675
  %v1215 = vld [vmem:[%s3 + $0x140] sm:$0xf]
  %v1216 = vld [vmem:[%s3 + $0x144] sm:$0xf]
  %v1217 = vld [vmem:[%s3 + $0x148] sm:$0xf]
  %v1218 = vld [vmem:[%s3 + $0x14c] sm:$0xf]
  %v1219 = vld [vmem:[%s3 + $0x150] sm:$0xf]
  %v1220 = vld [vmem:[%s3 + $0x154] sm:$0xf]
  %v1221 = vld [vmem:[%s3 + $0x158] sm:$0xf]
  %v1222 = vld [vmem:[%s3 + $0x15c] sm:$0xf]
  %v1223 = vld [vmem:[%s3 + $0x160] sm:$0xf]
  %v1224 = vld [vmem:[%s3 + $0x164] sm:$0xf]
  %v1225 = vld [vmem:[%s3 + $0x168] sm:$0xf]
  %v1226 = vld [vmem:[%s3 + $0x16c] sm:$0xf]
  %v1227 = vld [vmem:[%s3 + $0x170] sm:$0xf]
  %v1228 = vld [vmem:[%s3 + $0x174] sm:$0xf]
  %v1229 = vld [vmem:[%s3 + $0x178] sm:$0xf]
  %v1230 = vld [vmem:[%s3 + $0x17c] sm:$0xf]
  %v1247 = vunpack.c.l.b16 %v1215
  %v1248 = vunpack.c.l.b16 %v1216
  %v1249 = vunpack.c.l.b16 %v1217
  %v1250 = vunpack.c.l.b16 %v1218
  %v1251 = vunpack.c.l.b16 %v1219
  %v1252 = vunpack.c.l.b16 %v1220
  %v1253 = vunpack.c.l.b16 %v1221
  %v1254 = vunpack.c.l.b16 %v1222
  %v1255 = vunpack.c.l.b16 %v1223
  %v1256 = vunpack.c.l.b16 %v1224
  %v1257 = vunpack.c.l.b16 %v1225
  %v1258 = vunpack.c.l.b16 %v1226
  %v1259 = vunpack.c.l.b16 %v1227
  %v1260 = vunpack.c.l.b16 %v1228
  %v1261 = vunpack.c.l.b16 %v1229
  %v1262 = vunpack.c.l.b16 %v1230
  %v1263 = vpack.c.b16 %v1248, %v1247
  %v1264 = vpack.c.b16 %v1250, %v1249
  %v1265 = vpack.c.b16 %v1252, %v1251
  %v1266 = vpack.c.b16 %v1254, %v1253
  %v1267 = vpack.c.b16 %v1256, %v1255
  %v1268 = vpack.c.b16 %v1258, %v1257
  %v1269 = vpack.c.b16 %v1260, %v1259
  %v1270 = vpack.c.b16 %v1262, %v1261
  %1279 = vmatprep.subr.bf16.mxu0 0
  %1280 = vmatpush1.bf16.msra.mxu0 %v1270
  %1281 = vmatprep.subr.bf16.mxu0 0
  %1282 = vmatpush1.bf16.msra.mxu0 %v1269
  %1283 = vmatprep.subr.bf16.mxu0 0
  %1284 = vmatpush1.bf16.msra.mxu0 %v1268
  %1285 = vmatprep.subr.bf16.mxu0 0
  %1286 = vmatpush1.bf16.msra.mxu0 %v1267
  %1287 = vmatprep.subr.bf16.mxu0 0
  %1288 = vmatpush1.bf16.msra.mxu0 %v1266
  %1289 = vmatprep.subr.bf16.mxu0 0
  %1290 = vmatpush1.bf16.msra.mxu0 %v1265
  %1291 = vmatprep.subr.bf16.mxu0 0
  %1292 = vmatpush1.bf16.msra.mxu0 %v1264
  %1293 = vmatprep.subr.bf16.mxu0 0
  %1294 = vmatpush1.bf16.msra.mxu0 %v1263
  %1295 = vmatprep.subr.bf16.mxu0 0
  %1296 = vmatpush2.bf16.msra.mxu0 0
  %1297 = vmatprep.subr.bf16.mxu0 0
  %1298 = vmatpush2.bf16.msra.mxu0 0
  %1299 = vmatprep.subr.bf16.mxu0 0
  %1300 = vmatpush2.bf16.msra.mxu0 0
  %1301 = vmatprep.subr.bf16.mxu0 0
  %1302 = vmatpush2.bf16.msra.mxu0 0
  %1303 = vmatprep.subr.bf16.mxu0 0
  %1304 = vmatpush2.bf16.msra.mxu0 0
  %1305 = vmatprep.subr.bf16.mxu0 0
  %1306 = vmatpush2.bf16.msra.mxu0 0
  %1307 = vmatprep.subr.bf16.mxu0 0
  %1308 = vmatpush2.bf16.msra.mxu0 0
  %1309 = vmatprep.subr.bf16.mxu0 0
  %1310 = vmatpush2.bf16.msra.mxu0 0
  %1311 = vmatprep.mubr.bf16.mxu0 0
  %1312 = vmatmul.mubr.bf16.gmra.mxu0 %v1214
  %v1313 = vpop.f32.mrf.mxu0
  %v1314 = vadd.f32 0.0, %v1313
  %v1315 = vpop.f32.mrf.mxu0
  %v1316 = vpop.f32.mrf.mxu0
  %v1317 = vpop.f32.mrf.mxu0
  %1318 = vdwg.mxu0
  %v1319 = vadd.f32 %v1213, %v1314
  %v1320 = vpack.c.bf16 %v676, %v676
  %v1321 = vld [vmem:[%s3 + $0x180] sm:$0xf]
  %v1322 = vld [vmem:[%s3 + $0x184] sm:$0xf]
  %v1323 = vld [vmem:[%s3 + $0x188] sm:$0xf]
  %v1324 = vld [vmem:[%s3 + $0x18c] sm:$0xf]
  %v1325 = vld [vmem:[%s3 + $0x190] sm:$0xf]
  %v1326 = vld [vmem:[%s3 + $0x194] sm:$0xf]
  %v1327 = vld [vmem:[%s3 + $0x198] sm:$0xf]
  %v1328 = vld [vmem:[%s3 + $0x19c] sm:$0xf]
  %v1329 = vld [vmem:[%s3 + $0x1a0] sm:$0xf]
  %v1330 = vld [vmem:[%s3 + $0x1a4] sm:$0xf]
  %v1331 = vld [vmem:[%s3 + $0x1a8] sm:$0xf]
  %v1332 = vld [vmem:[%s3 + $0x1ac] sm:$0xf]
  %v1333 = vld [vmem:[%s3 + $0x1b0] sm:$0xf]
  %v1334 = vld [vmem:[%s3 + $0x1b4] sm:$0xf]
  %v1335 = vld [vmem:[%s3 + $0x1b8] sm:$0xf]
  %v1336 = vld [vmem:[%s3 + $0x1bc] sm:$0xf]
  %v1353 = vunpack.c.l.b16 %v1321
  %v1354 = vunpack.c.l.b16 %v1322
  %v1355 = vunpack.c.l.b16 %v1323
  %v1356 = vunpack.c.l.b16 %v1324
  %v1357 = vunpack.c.l.b16 %v1325
  %v1358 = vunpack.c.l.b16 %v1326
  %v1359 = vunpack.c.l.b16 %v1327
  %v1360 = vunpack.c.l.b16 %v1328
  %v1361 = vunpack.c.l.b16 %v1329
  %v1362 = vunpack.c.l.b16 %v1330
  %v1363 = vunpack.c.l.b16 %v1331
  %v1364 = vunpack.c.l.b16 %v1332
  %v1365 = vunpack.c.l.b16 %v1333
  %v1366 = vunpack.c.l.b16 %v1334
  %v1367 = vunpack.c.l.b16 %v1335
  %v1368 = vunpack.c.l.b16 %v1336
  %v1369 = vpack.c.b16 %v1354, %v1353
  %v1370 = vpack.c.b16 %v1356, %v1355
  %v1371 = vpack.c.b16 %v1358, %v1357
  %v1372 = vpack.c.b16 %v1360, %v1359
  %v1373 = vpack.c.b16 %v1362, %v1361
  %v1374 = vpack.c.b16 %v1364, %v1363
  %v1375 = vpack.c.b16 %v1366, %v1365
  %v1376 = vpack.c.b16 %v1368, %v1367
  %1385 = vmatprep.subr.bf16.mxu0 0
  %1386 = vmatpush1.bf16.msra.mxu0 %v1376
  %1387 = vmatprep.subr.bf16.mxu0 0
  %1388 = vmatpush1.bf16.msra.mxu0 %v1375
  %1389 = vmatprep.subr.bf16.mxu0 0
  %1390 = vmatpush1.bf16.msra.mxu0 %v1374
  %1391 = vmatprep.subr.bf16.mxu0 0
  %1392 = vmatpush1.bf16.msra.mxu0 %v1373
  %1393 = vmatprep.subr.bf16.mxu0 0
  %1394 = vmatpush1.bf16.msra.mxu0 %v1372
  %1395 = vmatprep.subr.bf16.mxu0 0
  %1396 = vmatpush1.bf16.msra.mxu0 %v1371
  %1397 = vmatprep.subr.bf16.mxu0 0
  %1398 = vmatpush1.bf16.msra.mxu0 %v1370
  %1399 = vmatprep.subr.bf16.mxu0 0
  %1400 = vmatpush1.bf16.msra.mxu0 %v1369
  %1401 = vmatprep.subr.bf16.mxu0 0
  %1402 = vmatpush2.bf16.msra.mxu0 0
  %1403 = vmatprep.subr.bf16.mxu0 0
  %1404 = vmatpush2.bf16.msra.mxu0 0
  %1405 = vmatprep.subr.bf16.mxu0 0
  %1406 = vmatpush2.bf16.msra.mxu0 0
  %1407 = vmatprep.subr.bf16.mxu0 0
  %1408 = vmatpush2.bf16.msra.mxu0 0
  %1409 = vmatprep.subr.bf16.mxu0 0
  %1410 = vmatpush2.bf16.msra.mxu0 0
  %1411 = vmatprep.subr.bf16.mxu0 0
  %1412 = vmatpush2.bf16.msra.mxu0 0
  %1413 = vmatprep.subr.bf16.mxu0 0
  %1414 = vmatpush2.bf16.msra.mxu0 0
  %1415 = vmatprep.subr.bf16.mxu0 0
  %1416 = vmatpush2.bf16.msra.mxu0 0
  %1417 = vmatprep.mubr.bf16.mxu0 0
  %1418 = vmatmul.mubr.bf16.gmra.mxu0 %v1320
  %v1419 = vpop.f32.mrf.mxu0
  %v1420 = vadd.f32 0.0, %v1419
  %v1421 = vpop.f32.mrf.mxu0
  %v1422 = vpop.f32.mrf.mxu0
  %v1423 = vpop.f32.mrf.mxu0
  %1424 = vdwg.mxu0
  %v1425 = vadd.f32 %v1319, %v1420
  %v1426 = vpack.c.bf16 %v677, %v677
  %v1427 = vld [vmem:[%s3 + $0x1c0] sm:$0xf]
  %v1428 = vld [vmem:[%s3 + $0x1c4] sm:$0xf]
  %v1429 = vld [vmem:[%s3 + $0x1c8] sm:$0xf]
  %v1430 = vld [vmem:[%s3 + $0x1cc] sm:$0xf]
  %v1431 = vld [vmem:[%s3 + $0x1d0] sm:$0xf]
  %v1432 = vld [vmem:[%s3 + $0x1d4] sm:$0xf]
  %v1433 = vld [vmem:[%s3 + $0x1d8] sm:$0xf]
  %v1434 = vld [vmem:[%s3 + $0x1dc] sm:$0xf]
  %v1435 = vld [vmem:[%s3 + $0x1e0] sm:$0xf]
  %v1436 = vld [vmem:[%s3 + $0x1e4] sm:$0xf]
  %v1437 = vld [vmem:[%s3 + $0x1e8] sm:$0xf]
  %v1438 = vld [vmem:[%s3 + $0x1ec] sm:$0xf]
  %v1439 = vld [vmem:[%s3 + $0x1f0] sm:$0xf]
  %v1440 = vld [vmem:[%s3 + $0x1f4] sm:$0xf]
  %v1441 = vld [vmem:[%s3 + $0x1f8] sm:$0xf]
  %v1442 = vld [vmem:[%s3 + $0x1fc] sm:$0xf]
  %v1459 = vunpack.c.l.b16 %v1427
  %v1460 = vunpack.c.l.b16 %v1428
  %v1461 = vunpack.c.l.b16 %v1429
  %v1462 = vunpack.c.l.b16 %v1430
  %v1463 = vunpack.c.l.b16 %v1431
  %v1464 = vunpack.c.l.b16 %v1432
  %v1465 = vunpack.c.l.b16 %v1433
  %v1466 = vunpack.c.l.b16 %v1434
  %v1467 = vunpack.c.l.b16 %v1435
  %v1468 = vunpack.c.l.b16 %v1436
  %v1469 = vunpack.c.l.b16 %v1437
  %v1470 = vunpack.c.l.b16 %v1438
  %v1471 = vunpack.c.l.b16 %v1439
  %v1472 = vunpack.c.l.b16 %v1440
  %v1473 = vunpack.c.l.b16 %v1441
  %v1474 = vunpack.c.l.b16 %v1442
  %v1475 = vpack.c.b16 %v1460, %v1459
  %v1476 = vpack.c.b16 %v1462, %v1461
  %v1477 = vpack.c.b16 %v1464, %v1463
  %v1478 = vpack.c.b16 %v1466, %v1465
  %v1479 = vpack.c.b16 %v1468, %v1467
  %v1480 = vpack.c.b16 %v1470, %v1469
  %v1481 = vpack.c.b16 %v1472, %v1471
  %v1482 = vpack.c.b16 %v1474, %v1473
  %1491 = vmatprep.subr.bf16.mxu0 0
  %1492 = vmatpush1.bf16.msra.mxu0 %v1482
  %1493 = vmatprep.subr.bf16.mxu0 0
  %1494 = vmatpush1.bf16.msra.mxu0 %v1481
  %1495 = vmatprep.subr.bf16.mxu0 0
  %1496 = vmatpush1.bf16.msra.mxu0 %v1480
  %1497 = vmatprep.subr.bf16.mxu0 0
  %1498 = vmatpush1.bf16.msra.mxu0 %v1479
  %1499 = vmatprep.subr.bf16.mxu0 0
  %1500 = vmatpush1.bf16.msra.mxu0 %v1478
  %1501 = vmatprep.subr.bf16.mxu0 0
  %1502 = vmatpush1.bf16.msra.mxu0 %v1477
  %1503 = vmatprep.subr.bf16.mxu0 0
  %1504 = vmatpush1.bf16.msra.mxu0 %v1476
  %1505 = vmatprep.subr.bf16.mxu0 0
  %1506 = vmatpush1.bf16.msra.mxu0 %v1475
  %1507 = vmatprep.subr.bf16.mxu0 0
  %1508 = vmatpush2.bf16.msra.mxu0 0
  %1509 = vmatprep.subr.bf16.mxu0 0
  %1510 = vmatpush2.bf16.msra.mxu0 0
  %1511 = vmatprep.subr.bf16.mxu0 0
  %1512 = vmatpush2.bf16.msra.mxu0 0
  %1513 = vmatprep.subr.bf16.mxu0 0
  %1514 = vmatpush2.bf16.msra.mxu0 0
  %1515 = vmatprep.subr.bf16.mxu0 0
  %1516 = vmatpush2.bf16.msra.mxu0 0
  %1517 = vmatprep.subr.bf16.mxu0 0
  %1518 = vmatpush2.bf16.msra.mxu0 0
  %1519 = vmatprep.subr.bf16.mxu0 0
  %1520 = vmatpush2.bf16.msra.mxu0 0
  %1521 = vmatprep.subr.bf16.mxu0 0
  %1522 = vmatpush2.bf16.msra.mxu0 0
  %1523 = vmatprep.mubr.bf16.mxu0 0
  %1524 = vmatmul.mubr.bf16.gmra.mxu0 %v1426
  %v1525 = vpop.f32.mrf.mxu0
  %v1526 = vadd.f32 0.0, %v1525
  %v1527 = vpop.f32.mrf.mxu0
  %v1528 = vpop.f32.mrf.mxu0
  %v1529 = vpop.f32.mrf.mxu0
  %1530 = vdwg.mxu0
  %v1531 = vadd.f32 %v1425, %v1526
  %v1532 = vpack.c.bf16 %v678, %v678
  %v1533 = vld [vmem:[%s3 + $0x200] sm:$0xf]
  %v1534 = vld [vmem:[%s3 + $0x204] sm:$0xf]
  %v1535 = vld [vmem:[%s3 + $0x208] sm:$0xf]
  %v1536 = vld [vmem:[%s3 + $0x20c] sm:$0xf]
  %v1537 = vld [vmem:[%s3 + $0x210] sm:$0xf]
  %v1538 = vld [vmem:[%s3 + $0x214] sm:$0xf]
  %v1539 = vld [vmem:[%s3 + $0x218] sm:$0xf]
  %v1540 = vld [vmem:[%s3 + $0x21c] sm:$0xf]
  %v1541 = vld [vmem:[%s3 + $0x220] sm:$0xf]
  %v1542 = vld [vmem:[%s3 + $0x224] sm:$0xf]
  %v1543 = vld [vmem:[%s3 + $0x228] sm:$0xf]
  %v1544 = vld [vmem:[%s3 + $0x22c] sm:$0xf]
  %v1545 = vld [vmem:[%s3 + $0x230] sm:$0xf]
  %v1546 = vld [vmem:[%s3 + $0x234] sm:$0xf]
  %v1547 = vld [vmem:[%s3 + $0x238] sm:$0xf]
  %v1548 = vld [vmem:[%s3 + $0x23c] sm:$0xf]
  %v1565 = vunpack.c.l.b16 %v1533
  %v1566 = vunpack.c.l.b16 %v1534
  %v1567 = vunpack.c.l.b16 %v1535
  %v1568 = vunpack.c.l.b16 %v1536
  %v1569 = vunpack.c.l.b16 %v1537
  %v1570 = vunpack.c.l.b16 %v1538
  %v1571 = vunpack.c.l.b16 %v1539
  %v1572 = vunpack.c.l.b16 %v1540
  %v1573 = vunpack.c.l.b16 %v1541
  %v1574 = vunpack.c.l.b16 %v1542
  %v1575 = vunpack.c.l.b16 %v1543
  %v1576 = vunpack.c.l.b16 %v1544
  %v1577 = vunpack.c.l.b16 %v1545
  %v1578 = vunpack.c.l.b16 %v1546
  %v1579 = vunpack.c.l.b16 %v1547
  %v1580 = vunpack.c.l.b16 %v1548
  %v1581 = vpack.c.b16 %v1566, %v1565
  %v1582 = vpack.c.b16 %v1568, %v1567
  %v1583 = vpack.c.b16 %v1570, %v1569
  %v1584 = vpack.c.b16 %v1572, %v1571
  %v1585 = vpack.c.b16 %v1574, %v1573
  %v1586 = vpack.c.b16 %v1576, %v1575
  %v1587 = vpack.c.b16 %v1578, %v1577
  %v1588 = vpack.c.b16 %v1580, %v1579
  %1597 = vmatprep.subr.bf16.mxu0 0
  %1598 = vmatpush1.bf16.msra.mxu0 %v1588
  %1599 = vmatprep.subr.bf16.mxu0 0
  %1600 = vmatpush1.bf16.msra.mxu0 %v1587
  %1601 = vmatprep.subr.bf16.mxu0 0
  %1602 = vmatpush1.bf16.msra.mxu0 %v1586
  %1603 = vmatprep.subr.bf16.mxu0 0
  %1604 = vmatpush1.bf16.msra.mxu0 %v1585
  %1605 = vmatprep.subr.bf16.mxu0 0
  %1606 = vmatpush1.bf16.msra.mxu0 %v1584
  %1607 = vmatprep.subr.bf16.mxu0 0
  %1608 = vmatpush1.bf16.msra.mxu0 %v1583
  %1609 = vmatprep.subr.bf16.mxu0 0
  %1610 = vmatpush1.bf16.msra.mxu0 %v1582
  %1611 = vmatprep.subr.bf16.mxu0 0
  %1612 = vmatpush1.bf16.msra.mxu0 %v1581
  %1613 = vmatprep.subr.bf16.mxu0 0
  %1614 = vmatpush2.bf16.msra.mxu0 0
  %1615 = vmatprep.subr.bf16.mxu0 0
  %1616 = vmatpush2.bf16.msra.mxu0 0
  %1617 = vmatprep.subr.bf16.mxu0 0
  %1618 = vmatpush2.bf16.msra.mxu0 0
  %1619 = vmatprep.subr.bf16.mxu0 0
  %1620 = vmatpush2.bf16.msra.mxu0 0
  %1621 = vmatprep.subr.bf16.mxu0 0
  %1622 = vmatpush2.bf16.msra.mxu0 0
  %1623 = vmatprep.subr.bf16.mxu0 0
  %1624 = vmatpush2.bf16.msra.mxu0 0
  %1625 = vmatprep.subr.bf16.mxu0 0
  %1626 = vmatpush2.bf16.msra.mxu0 0
  %1627 = vmatprep.subr.bf16.mxu0 0
  %1628 = vmatpush2.bf16.msra.mxu0 0
  %1629 = vmatprep.mubr.bf16.mxu0 0
  %1630 = vmatmul.mubr.bf16.gmra.mxu0 %v1532
  %v1631 = vpop.f32.mrf.mxu0
  %v1632 = vadd.f32 0.0, %v1631
  %v1633 = vpop.f32.mrf.mxu0
  %v1634 = vpop.f32.mrf.mxu0
  %v1635 = vpop.f32.mrf.mxu0
  %1636 = vdwg.mxu0
  %v1637 = vadd.f32 %v1531, %v1632
  %v1638 = vpack.c.bf16 %v679, %v679
  %v1639 = vld [vmem:[%s3 + $0x240] sm:$0xf]
  %v1640 = vld [vmem:[%s3 + $0x244] sm:$0xf]
  %v1641 = vld [vmem:[%s3 + $0x248] sm:$0xf]
  %v1642 = vld [vmem:[%s3 + $0x24c] sm:$0xf]
  %v1643 = vld [vmem:[%s3 + $0x250] sm:$0xf]
  %v1644 = vld [vmem:[%s3 + $0x254] sm:$0xf]
  %v1645 = vld [vmem:[%s3 + $0x258] sm:$0xf]
  %v1646 = vld [vmem:[%s3 + $0x25c] sm:$0xf]
  %v1647 = vld [vmem:[%s3 + $0x260] sm:$0xf]
  %v1648 = vld [vmem:[%s3 + $0x264] sm:$0xf]
  %v1649 = vld [vmem:[%s3 + $0x268] sm:$0xf]
  %v1650 = vld [vmem:[%s3 + $0x26c] sm:$0xf]
  %v1651 = vld [vmem:[%s3 + $0x270] sm:$0xf]
  %v1652 = vld [vmem:[%s3 + $0x274] sm:$0xf]
  %v1653 = vld [vmem:[%s3 + $0x278] sm:$0xf]
  %v1654 = vld [vmem:[%s3 + $0x27c] sm:$0xf]
  %v1671 = vunpack.c.l.b16 %v1639
  %v1672 = vunpack.c.l.b16 %v1640
  %v1673 = vunpack.c.l.b16 %v1641
  %v1674 = vunpack.c.l.b16 %v1642
  %v1675 = vunpack.c.l.b16 %v1643
  %v1676 = vunpack.c.l.b16 %v1644
  %v1677 = vunpack.c.l.b16 %v1645
  %v1678 = vunpack.c.l.b16 %v1646
  %v1679 = vunpack.c.l.b16 %v1647
  %v1680 = vunpack.c.l.b16 %v1648
  %v1681 = vunpack.c.l.b16 %v1649
  %v1682 = vunpack.c.l.b16 %v1650
  %v1683 = vunpack.c.l.b16 %v1651
  %v1684 = vunpack.c.l.b16 %v1652
  %v1685 = vunpack.c.l.b16 %v1653
  %v1686 = vunpack.c.l.b16 %v1654
  %v1687 = vpack.c.b16 %v1672, %v1671
  %v1688 = vpack.c.b16 %v1674, %v1673
  %v1689 = vpack.c.b16 %v1676, %v1675
  %v1690 = vpack.c.b16 %v1678, %v1677
  %v1691 = vpack.c.b16 %v1680, %v1679
  %v1692 = vpack.c.b16 %v1682, %v1681
  %v1693 = vpack.c.b16 %v1684, %v1683
  %v1694 = vpack.c.b16 %v1686, %v1685
  %1703 = vmatprep.subr.bf16.mxu0 0
  %1704 = vmatpush1.bf16.msra.mxu0 %v1694
  %1705 = vmatprep.subr.bf16.mxu0 0
  %1706 = vmatpush1.bf16.msra.mxu0 %v1693
  %1707 = vmatprep.subr.bf16.mxu0 0
  %1708 = vmatpush1.bf16.msra.mxu0 %v1692
  %1709 = vmatprep.subr.bf16.mxu0 0
  %1710 = vmatpush1.bf16.msra.mxu0 %v1691
  %1711 = vmatprep.subr.bf16.mxu0 0
  %1712 = vmatpush1.bf16.msra.mxu0 %v1690
  %1713 = vmatprep.subr.bf16.mxu0 0
  %1714 = vmatpush1.bf16.msra.mxu0 %v1689
  %1715 = vmatprep.subr.bf16.mxu0 0
  %1716 = vmatpush1.bf16.msra.mxu0 %v1688
  %1717 = vmatprep.subr.bf16.mxu0 0
  %1718 = vmatpush1.bf16.msra.mxu0 %v1687
  %1719 = vmatprep.subr.bf16.mxu0 0
  %1720 = vmatpush2.bf16.msra.mxu0 0
  %1721 = vmatprep.subr.bf16.mxu0 0
  %1722 = vmatpush2.bf16.msra.mxu0 0
  %1723 = vmatprep.subr.bf16.mxu0 0
  %1724 = vmatpush2.bf16.msra.mxu0 0
  %1725 = vmatprep.subr.bf16.mxu0 0
  %1726 = vmatpush2.bf16.msra.mxu0 0
  %1727 = vmatprep.subr.bf16.mxu0 0
  %1728 = vmatpush2.bf16.msra.mxu0 0
  %1729 = vmatprep.subr.bf16.mxu0 0
  %1730 = vmatpush2.bf16.msra.mxu0 0
  %1731 = vmatprep.subr.bf16.mxu0 0
  %1732 = vmatpush2.bf16.msra.mxu0 0
  %1733 = vmatprep.subr.bf16.mxu0 0
  %1734 = vmatpush2.bf16.msra.mxu0 0
  %1735 = vmatprep.mubr.bf16.mxu0 0
  %1736 = vmatmul.mubr.bf16.gmra.mxu0 %v1638
  %v1737 = vpop.f32.mrf.mxu0
  %v1738 = vadd.f32 0.0, %v1737
  %v1739 = vpop.f32.mrf.mxu0
  %v1740 = vpop.f32.mrf.mxu0
  %v1741 = vpop.f32.mrf.mxu0
  %1742 = vdwg.mxu0
  %v1743 = vadd.f32 %v1637, %v1738
  %v1744 = vpack.c.bf16 %v680, %v680
  %v1745 = vld [vmem:[%s3 + $0x280] sm:$0xf]
  %v1746 = vld [vmem:[%s3 + $0x284] sm:$0xf]
  %v1747 = vld [vmem:[%s3 + $0x288] sm:$0xf]
  %v1748 = vld [vmem:[%s3 + $0x28c] sm:$0xf]
  %v1749 = vld [vmem:[%s3 + $0x290] sm:$0xf]
  %v1750 = vld [vmem:[%s3 + $0x294] sm:$0xf]
  %v1751 = vld [vmem:[%s3 + $0x298] sm:$0xf]
  %v1752 = vld [vmem:[%s3 + $0x29c] sm:$0xf]
  %v1753 = vld [vmem:[%s3 + $0x2a0] sm:$0xf]
  %v1754 = vld [vmem:[%s3 + $0x2a4] sm:$0xf]
  %v1755 = vld [vmem:[%s3 + $0x2a8] sm:$0xf]
  %v1756 = vld [vmem:[%s3 + $0x2ac] sm:$0xf]
  %v1757 = vld [vmem:[%s3 + $0x2b0] sm:$0xf]
  %v1758 = vld [vmem:[%s3 + $0x2b4] sm:$0xf]
  %v1759 = vld [vmem:[%s3 + $0x2b8] sm:$0xf]
  %v1760 = vld [vmem:[%s3 + $0x2bc] sm:$0xf]
  %v1777 = vunpack.c.l.b16 %v1745
  %v1778 = vunpack.c.l.b16 %v1746
  %v1779 = vunpack.c.l.b16 %v1747
  %v1780 = vunpack.c.l.b16 %v1748
  %v1781 = vunpack.c.l.b16 %v1749
  %v1782 = vunpack.c.l.b16 %v1750
  %v1783 = vunpack.c.l.b16 %v1751
  %v1784 = vunpack.c.l.b16 %v1752
  %v1785 = vunpack.c.l.b16 %v1753
  %v1786 = vunpack.c.l.b16 %v1754
  %v1787 = vunpack.c.l.b16 %v1755
  %v1788 = vunpack.c.l.b16 %v1756
  %v1789 = vunpack.c.l.b16 %v1757
  %v1790 = vunpack.c.l.b16 %v1758
  %v1791 = vunpack.c.l.b16 %v1759
  %v1792 = vunpack.c.l.b16 %v1760
  %v1793 = vpack.c.b16 %v1778, %v1777
  %v1794 = vpack.c.b16 %v1780, %v1779
  %v1795 = vpack.c.b16 %v1782, %v1781
  %v1796 = vpack.c.b16 %v1784, %v1783
  %v1797 = vpack.c.b16 %v1786, %v1785
  %v1798 = vpack.c.b16 %v1788, %v1787
  %v1799 = vpack.c.b16 %v1790, %v1789
  %v1800 = vpack.c.b16 %v1792, %v1791
  %1809 = vmatprep.subr.bf16.mxu0 0
  %1810 = vmatpush1.bf16.msra.mxu0 %v1800
  %1811 = vmatprep.subr.bf16.mxu0 0
  %1812 = vmatpush1.bf16.msra.mxu0 %v1799
  %1813 = vmatprep.subr.bf16.mxu0 0
  %1814 = vmatpush1.bf16.msra.mxu0 %v1798
  %1815 = vmatprep.subr.bf16.mxu0 0
  %1816 = vmatpush1.bf16.msra.mxu0 %v1797
  %1817 = vmatprep.subr.bf16.mxu0 0
  %1818 = vmatpush1.bf16.msra.mxu0 %v1796
  %1819 = vmatprep.subr.bf16.mxu0 0
  %1820 = vmatpush1.bf16.msra.mxu0 %v1795
  %1821 = vmatprep.subr.bf16.mxu0 0
  %1822 = vmatpush1.bf16.msra.mxu0 %v1794
  %1823 = vmatprep.subr.bf16.mxu0 0
  %1824 = vmatpush1.bf16.msra.mxu0 %v1793
  %1825 = vmatprep.subr.bf16.mxu0 0
  %1826 = vmatpush2.bf16.msra.mxu0 0
  %1827 = vmatprep.subr.bf16.mxu0 0
  %1828 = vmatpush2.bf16.msra.mxu0 0
  %1829 = vmatprep.subr.bf16.mxu0 0
  %1830 = vmatpush2.bf16.msra.mxu0 0
  %1831 = vmatprep.subr.bf16.mxu0 0
  %1832 = vmatpush2.bf16.msra.mxu0 0
  %1833 = vmatprep.subr.bf16.mxu0 0
  %1834 = vmatpush2.bf16.msra.mxu0 0
  %1835 = vmatprep.subr.bf16.mxu0 0
  %1836 = vmatpush2.bf16.msra.mxu0 0
  %1837 = vmatprep.subr.bf16.mxu0 0
  %1838 = vmatpush2.bf16.msra.mxu0 0
  %1839 = vmatprep.subr.bf16.mxu0 0
  %1840 = vmatpush2.bf16.msra.mxu0 0
  %1841 = vmatprep.mubr.bf16.mxu0 0
  %1842 = vmatmul.mubr.bf16.gmra.mxu0 %v1744
  %v1843 = vpop.f32.mrf.mxu0
  %v1844 = vadd.f32 0.0, %v1843
  %v1845 = vpop.f32.mrf.mxu0
  %v1846 = vpop.f32.mrf.mxu0
  %v1847 = vpop.f32.mrf.mxu0
  %1848 = vdwg.mxu0
  %v1849 = vadd.f32 %v1743, %v1844
  %v1850 = vpack.c.bf16 %v681, %v681
  %v1851 = vld [vmem:[%s3 + $0x2c0] sm:$0xf]
  %v1852 = vld [vmem:[%s3 + $0x2c4] sm:$0xf]
  %v1853 = vld [vmem:[%s3 + $0x2c8] sm:$0xf]
  %v1854 = vld [vmem:[%s3 + $0x2cc] sm:$0xf]
  %v1855 = vld [vmem:[%s3 + $0x2d0] sm:$0xf]
  %v1856 = vld [vmem:[%s3 + $0x2d4] sm:$0xf]
  %v1857 = vld [vmem:[%s3 + $0x2d8] sm:$0xf]
  %v1858 = vld [vmem:[%s3 + $0x2dc] sm:$0xf]
  %v1859 = vld [vmem:[%s3 + $0x2e0] sm:$0xf]
  %v1860 = vld [vmem:[%s3 + $0x2e4] sm:$0xf]
  %v1861 = vld [vmem:[%s3 + $0x2e8] sm:$0xf]
  %v1862 = vld [vmem:[%s3 + $0x2ec] sm:$0xf]
  %v1863 = vld [vmem:[%s3 + $0x2f0] sm:$0xf]
  %v1864 = vld [vmem:[%s3 + $0x2f4] sm:$0xf]
  %v1865 = vld [vmem:[%s3 + $0x2f8] sm:$0xf]
  %v1866 = vld [vmem:[%s3 + $0x2fc] sm:$0xf]
  %v1883 = vunpack.c.l.b16 %v1851
  %v1884 = vunpack.c.l.b16 %v1852
  %v1885 = vunpack.c.l.b16 %v1853
  %v1886 = vunpack.c.l.b16 %v1854
  %v1887 = vunpack.c.l.b16 %v1855
  %v1888 = vunpack.c.l.b16 %v1856
  %v1889 = vunpack.c.l.b16 %v1857
  %v1890 = vunpack.c.l.b16 %v1858
  %v1891 = vunpack.c.l.b16 %v1859
  %v1892 = vunpack.c.l.b16 %v1860
  %v1893 = vunpack.c.l.b16 %v1861
  %v1894 = vunpack.c.l.b16 %v1862
  %v1895 = vunpack.c.l.b16 %v1863
  %v1896 = vunpack.c.l.b16 %v1864
  %v1897 = vunpack.c.l.b16 %v1865
  %v1898 = vunpack.c.l.b16 %v1866
  %v1899 = vpack.c.b16 %v1884, %v1883
  %v1900 = vpack.c.b16 %v1886, %v1885
  %v1901 = vpack.c.b16 %v1888, %v1887
  %v1902 = vpack.c.b16 %v1890, %v1889
  %v1903 = vpack.c.b16 %v1892, %v1891
  %v1904 = vpack.c.b16 %v1894, %v1893
  %v1905 = vpack.c.b16 %v1896, %v1895
  %v1906 = vpack.c.b16 %v1898, %v1897
  %1915 = vmatprep.subr.bf16.mxu0 0
  %1916 = vmatpush1.bf16.msra.mxu0 %v1906
  %1917 = vmatprep.subr.bf16.mxu0 0
  %1918 = vmatpush1.bf16.msra.mxu0 %v1905
  %1919 = vmatprep.subr.bf16.mxu0 0
  %1920 = vmatpush1.bf16.msra.mxu0 %v1904
  %1921 = vmatprep.subr.bf16.mxu0 0
  %1922 = vmatpush1.bf16.msra.mxu0 %v1903
  %1923 = vmatprep.subr.bf16.mxu0 0
  %1924 = vmatpush1.bf16.msra.mxu0 %v1902
  %1925 = vmatprep.subr.bf16.mxu0 0
  %1926 = vmatpush1.bf16.msra.mxu0 %v1901
  %1927 = vmatprep.subr.bf16.mxu0 0
  %1928 = vmatpush1.bf16.msra.mxu0 %v1900
  %1929 = vmatprep.subr.bf16.mxu0 0
  %1930 = vmatpush1.bf16.msra.mxu0 %v1899
  %1931 = vmatprep.subr.bf16.mxu0 0
  %1932 = vmatpush2.bf16.msra.mxu0 0
  %1933 = vmatprep.subr.bf16.mxu0 0
  %1934 = vmatpush2.bf16.msra.mxu0 0
  %1935 = vmatprep.subr.bf16.mxu0 0
  %1936 = vmatpush2.bf16.msra.mxu0 0
  %1937 = vmatprep.subr.bf16.mxu0 0
  %1938 = vmatpush2.bf16.msra.mxu0 0
  %1939 = vmatprep.subr.bf16.mxu0 0
  %1940 = vmatpush2.bf16.msra.mxu0 0
  %1941 = vmatprep.subr.bf16.mxu0 0
  %1942 = vmatpush2.bf16.msra.mxu0 0
  %1943 = vmatprep.subr.bf16.mxu0 0
  %1944 = vmatpush2.bf16.msra.mxu0 0
  %1945 = vmatprep.subr.bf16.mxu0 0
  %1946 = vmatpush2.bf16.msra.mxu0 0
  %1947 = vmatprep.mubr.bf16.mxu0 0
  %1948 = vmatmul.mubr.bf16.gmra.mxu0 %v1850
  %v1949 = vpop.f32.mrf.mxu0
  %v1950 = vadd.f32 0.0, %v1949
  %v1951 = vpop.f32.mrf.mxu0
  %v1952 = vpop.f32.mrf.mxu0
  %v1953 = vpop.f32.mrf.mxu0
  %1954 = vdwg.mxu0
  %v1955 = vadd.f32 %v1849, %v1950
  %v1956 = vpack.c.bf16 %v682, %v682
  %v1957 = vld [vmem:[%s3 + $0x300] sm:$0xf]
  %v1958 = vld [vmem:[%s3 + $0x304] sm:$0xf]
  %v1959 = vld [vmem:[%s3 + $0x308] sm:$0xf]
  %v1960 = vld [vmem:[%s3 + $0x30c] sm:$0xf]
  %v1961 = vld [vmem:[%s3 + $0x310] sm:$0xf]
  %v1962 = vld [vmem:[%s3 + $0x314] sm:$0xf]
  %v1963 = vld [vmem:[%s3 + $0x318] sm:$0xf]
  %v1964 = vld [vmem:[%s3 + $0x31c] sm:$0xf]
  %v1965 = vld [vmem:[%s3 + $0x320] sm:$0xf]
  %v1966 = vld [vmem:[%s3 + $0x324] sm:$0xf]
  %v1967 = vld [vmem:[%s3 + $0x328] sm:$0xf]
  %v1968 = vld [vmem:[%s3 + $0x32c] sm:$0xf]
  %v1969 = vld [vmem:[%s3 + $0x330] sm:$0xf]
  %v1970 = vld [vmem:[%s3 + $0x334] sm:$0xf]
  %v1971 = vld [vmem:[%s3 + $0x338] sm:$0xf]
  %v1972 = vld [vmem:[%s3 + $0x33c] sm:$0xf]
  %v1989 = vunpack.c.l.b16 %v1957
  %v1990 = vunpack.c.l.b16 %v1958
  %v1991 = vunpack.c.l.b16 %v1959
  %v1992 = vunpack.c.l.b16 %v1960
  %v1993 = vunpack.c.l.b16 %v1961
  %v1994 = vunpack.c.l.b16 %v1962
  %v1995 = vunpack.c.l.b16 %v1963
  %v1996 = vunpack.c.l.b16 %v1964
  %v1997 = vunpack.c.l.b16 %v1965
  %v1998 = vunpack.c.l.b16 %v1966
  %v1999 = vunpack.c.l.b16 %v1967
  %v2000 = vunpack.c.l.b16 %v1968
  %v2001 = vunpack.c.l.b16 %v1969
  %v2002 = vunpack.c.l.b16 %v1970
  %v2003 = vunpack.c.l.b16 %v1971
  %v2004 = vunpack.c.l.b16 %v1972
  %v2005 = vpack.c.b16 %v1990, %v1989
  %v2006 = vpack.c.b16 %v1992, %v1991
  %v2007 = vpack.c.b16 %v1994, %v1993
  %v2008 = vpack.c.b16 %v1996, %v1995
  %v2009 = vpack.c.b16 %v1998, %v1997
  %v2010 = vpack.c.b16 %v2000, %v1999
  %v2011 = vpack.c.b16 %v2002, %v2001
  %v2012 = vpack.c.b16 %v2004, %v2003
  %2021 = vmatprep.subr.bf16.mxu0 0
  %2022 = vmatpush1.bf16.msra.mxu0 %v2012
  %2023 = vmatprep.subr.bf16.mxu0 0
  %2024 = vmatpush1.bf16.msra.mxu0 %v2011
  %2025 = vmatprep.subr.bf16.mxu0 0
  %2026 = vmatpush1.bf16.msra.mxu0 %v2010
  %2027 = vmatprep.subr.bf16.mxu0 0
  %2028 = vmatpush1.bf16.msra.mxu0 %v2009
  %2029 = vmatprep.subr.bf16.mxu0 0
  %2030 = vmatpush1.bf16.msra.mxu0 %v2008
  %2031 = vmatprep.subr.bf16.mxu0 0
  %2032 = vmatpush1.bf16.msra.mxu0 %v2007
  %2033 = vmatprep.subr.bf16.mxu0 0
  %2034 = vmatpush1.bf16.msra.mxu0 %v2006
  %2035 = vmatprep.subr.bf16.mxu0 0
  %2036 = vmatpush1.bf16.msra.mxu0 %v2005
  %2037 = vmatprep.subr.bf16.mxu0 0
  %2038 = vmatpush2.bf16.msra.mxu0 0
  %2039 = vmatprep.subr.bf16.mxu0 0
  %2040 = vmatpush2.bf16.msra.mxu0 0
  %2041 = vmatprep.subr.bf16.mxu0 0
  %2042 = vmatpush2.bf16.msra.mxu0 0
  %2043 = vmatprep.subr.bf16.mxu0 0
  %2044 = vmatpush2.bf16.msra.mxu0 0
  %2045 = vmatprep.subr.bf16.mxu0 0
  %2046 = vmatpush2.bf16.msra.mxu0 0
  %2047 = vmatprep.subr.bf16.mxu0 0
  %2048 = vmatpush2.bf16.msra.mxu0 0
  %2049 = vmatprep.subr.bf16.mxu0 0
  %2050 = vmatpush2.bf16.msra.mxu0 0
  %2051 = vmatprep.subr.bf16.mxu0 0
  %2052 = vmatpush2.bf16.msra.mxu0 0
  %2053 = vmatprep.mubr.bf16.mxu0 0
  %2054 = vmatmul.mubr.bf16.gmra.mxu0 %v1956
  %v2055 = vpop.f32.mrf.mxu0
  %v2056 = vadd.f32 0.0, %v2055
  %v2057 = vpop.f32.mrf.mxu0
  %v2058 = vpop.f32.mrf.mxu0
  %v2059 = vpop.f32.mrf.mxu0
  %2060 = vdwg.mxu0
  %v2061 = vadd.f32 %v1955, %v2056
  %v2062 = vpack.c.bf16 %v683, %v683
  %v2063 = vld [vmem:[%s3 + $0x340] sm:$0xf]
  %v2064 = vld [vmem:[%s3 + $0x344] sm:$0xf]
  %v2065 = vld [vmem:[%s3 + $0x348] sm:$0xf]
  %v2066 = vld [vmem:[%s3 + $0x34c] sm:$0xf]
  %v2067 = vld [vmem:[%s3 + $0x350] sm:$0xf]
  %v2068 = vld [vmem:[%s3 + $0x354] sm:$0xf]
  %v2069 = vld [vmem:[%s3 + $0x358] sm:$0xf]
  %v2070 = vld [vmem:[%s3 + $0x35c] sm:$0xf]
  %v2071 = vld [vmem:[%s3 + $0x360] sm:$0xf]
  %v2072 = vld [vmem:[%s3 + $0x364] sm:$0xf]
  %v2073 = vld [vmem:[%s3 + $0x368] sm:$0xf]
  %v2074 = vld [vmem:[%s3 + $0x36c] sm:$0xf]
  %v2075 = vld [vmem:[%s3 + $0x370] sm:$0xf]
  %v2076 = vld [vmem:[%s3 + $0x374] sm:$0xf]
  %v2077 = vld [vmem:[%s3 + $0x378] sm:$0xf]
  %v2078 = vld [vmem:[%s3 + $0x37c] sm:$0xf]
  %v2095 = vunpack.c.l.b16 %v2063
  %v2096 = vunpack.c.l.b16 %v2064
  %v2097 = vunpack.c.l.b16 %v2065
  %v2098 = vunpack.c.l.b16 %v2066
  %v2099 = vunpack.c.l.b16 %v2067
  %v2100 = vunpack.c.l.b16 %v2068
  %v2101 = vunpack.c.l.b16 %v2069
  %v2102 = vunpack.c.l.b16 %v2070
  %v2103 = vunpack.c.l.b16 %v2071
  %v2104 = vunpack.c.l.b16 %v2072
  %v2105 = vunpack.c.l.b16 %v2073
  %v2106 = vunpack.c.l.b16 %v2074
  %v2107 = vunpack.c.l.b16 %v2075
  %v2108 = vunpack.c.l.b16 %v2076
  %v2109 = vunpack.c.l.b16 %v2077
  %v2110 = vunpack.c.l.b16 %v2078
  %v2111 = vpack.c.b16 %v2096, %v2095
  %v2112 = vpack.c.b16 %v2098, %v2097
  %v2113 = vpack.c.b16 %v2100, %v2099
  %v2114 = vpack.c.b16 %v2102, %v2101
  %v2115 = vpack.c.b16 %v2104, %v2103
  %v2116 = vpack.c.b16 %v2106, %v2105
  %v2117 = vpack.c.b16 %v2108, %v2107
  %v2118 = vpack.c.b16 %v2110, %v2109
  %2127 = vmatprep.subr.bf16.mxu0 0
  %2128 = vmatpush1.bf16.msra.mxu0 %v2118
  %2129 = vmatprep.subr.bf16.mxu0 0
  %2130 = vmatpush1.bf16.msra.mxu0 %v2117
  %2131 = vmatprep.subr.bf16.mxu0 0
  %2132 = vmatpush1.bf16.msra.mxu0 %v2116
  %2133 = vmatprep.subr.bf16.mxu0 0
  %2134 = vmatpush1.bf16.msra.mxu0 %v2115
  %2135 = vmatprep.subr.bf16.mxu0 0
  %2136 = vmatpush1.bf16.msra.mxu0 %v2114
  %2137 = vmatprep.subr.bf16.mxu0 0
  %2138 = vmatpush1.bf16.msra.mxu0 %v2113
  %2139 = vmatprep.subr.bf16.mxu0 0
  %2140 = vmatpush1.bf16.msra.mxu0 %v2112
  %2141 = vmatprep.subr.bf16.mxu0 0
  %2142 = vmatpush1.bf16.msra.mxu0 %v2111
  %2143 = vmatprep.subr.bf16.mxu0 0
  %2144 = vmatpush2.bf16.msra.mxu0 0
  %2145 = vmatprep.subr.bf16.mxu0 0
  %2146 = vmatpush2.bf16.msra.mxu0 0
  %2147 = vmatprep.subr.bf16.mxu0 0
  %2148 = vmatpush2.bf16.msra.mxu0 0
  %2149 = vmatprep.subr.bf16.mxu0 0
  %2150 = vmatpush2.bf16.msra.mxu0 0
  %2151 = vmatprep.subr.bf16.mxu0 0
  %2152 = vmatpush2.bf16.msra.mxu0 0
  %2153 = vmatprep.subr.bf16.mxu0 0
  %2154 = vmatpush2.bf16.msra.mxu0 0
  %2155 = vmatprep.subr.bf16.mxu0 0
  %2156 = vmatpush2.bf16.msra.mxu0 0
  %2157 = vmatprep.subr.bf16.mxu0 0
  %2158 = vmatpush2.bf16.msra.mxu0 0
  %2159 = vmatprep.mubr.bf16.mxu0 0
  %2160 = vmatmul.mubr.bf16.gmra.mxu0 %v2062
  %v2161 = vpop.f32.mrf.mxu0
  %v2162 = vadd.f32 0.0, %v2161
  %v2163 = vpop.f32.mrf.mxu0
  %v2164 = vpop.f32.mrf.mxu0
  %v2165 = vpop.f32.mrf.mxu0
  %2166 = vdwg.mxu0
  %v2167 = vadd.f32 %v2061, %v2162
  %v2168 = vpack.c.bf16 %v684, %v684
  %v2169 = vld [vmem:[%s3 + $0x380] sm:$0xf]
  %v2170 = vld [vmem:[%s3 + $0x384] sm:$0xf]
  %v2171 = vld [vmem:[%s3 + $0x388] sm:$0xf]
  %v2172 = vld [vmem:[%s3 + $0x38c] sm:$0xf]
  %v2173 = vld [vmem:[%s3 + $0x390] sm:$0xf]
  %v2174 = vld [vmem:[%s3 + $0x394] sm:$0xf]
  %v2175 = vld [vmem:[%s3 + $0x398] sm:$0xf]
  %v2176 = vld [vmem:[%s3 + $0x39c] sm:$0xf]
  %v2177 = vld [vmem:[%s3 + $0x3a0] sm:$0xf]
  %v2178 = vld [vmem:[%s3 + $0x3a4] sm:$0xf]
  %v2179 = vld [vmem:[%s3 + $0x3a8] sm:$0xf]
  %v2180 = vld [vmem:[%s3 + $0x3ac] sm:$0xf]
  %v2181 = vld [vmem:[%s3 + $0x3b0] sm:$0xf]
  %v2182 = vld [vmem:[%s3 + $0x3b4] sm:$0xf]
  %v2183 = vld [vmem:[%s3 + $0x3b8] sm:$0xf]
  %v2184 = vld [vmem:[%s3 + $0x3bc] sm:$0xf]
  %v2201 = vunpack.c.l.b16 %v2169
  %v2202 = vunpack.c.l.b16 %v2170
  %v2203 = vunpack.c.l.b16 %v2171
  %v2204 = vunpack.c.l.b16 %v2172
  %v2205 = vunpack.c.l.b16 %v2173
  %v2206 = vunpack.c.l.b16 %v2174
  %v2207 = vunpack.c.l.b16 %v2175
  %v2208 = vunpack.c.l.b16 %v2176
  %v2209 = vunpack.c.l.b16 %v2177
  %v2210 = vunpack.c.l.b16 %v2178
  %v2211 = vunpack.c.l.b16 %v2179
  %v2212 = vunpack.c.l.b16 %v2180
  %v2213 = vunpack.c.l.b16 %v2181
  %v2214 = vunpack.c.l.b16 %v2182
  %v2215 = vunpack.c.l.b16 %v2183
  %v2216 = vunpack.c.l.b16 %v2184
  %v2217 = vpack.c.b16 %v2202, %v2201
  %v2218 = vpack.c.b16 %v2204, %v2203
  %v2219 = vpack.c.b16 %v2206, %v2205
  %v2220 = vpack.c.b16 %v2208, %v2207
  %v2221 = vpack.c.b16 %v2210, %v2209
  %v2222 = vpack.c.b16 %v2212, %v2211
  %v2223 = vpack.c.b16 %v2214, %v2213
  %v2224 = vpack.c.b16 %v2216, %v2215
  %2233 = vmatprep.subr.bf16.mxu0 0
  %2234 = vmatpush1.bf16.msra.mxu0 %v2224
  %2235 = vmatprep.subr.bf16.mxu0 0
  %2236 = vmatpush1.bf16.msra.mxu0 %v2223
  %2237 = vmatprep.subr.bf16.mxu0 0
  %2238 = vmatpush1.bf16.msra.mxu0 %v2222
  %2239 = vmatprep.subr.bf16.mxu0 0
  %2240 = vmatpush1.bf16.msra.mxu0 %v2221
  %2241 = vmatprep.subr.bf16.mxu0 0
  %2242 = vmatpush1.bf16.msra.mxu0 %v2220
  %2243 = vmatprep.subr.bf16.mxu0 0
  %2244 = vmatpush1.bf16.msra.mxu0 %v2219
  %2245 = vmatprep.subr.bf16.mxu0 0
  %2246 = vmatpush1.bf16.msra.mxu0 %v2218
  %2247 = vmatprep.subr.bf16.mxu0 0
  %2248 = vmatpush1.bf16.msra.mxu0 %v2217
  %2249 = vmatprep.subr.bf16.mxu0 0
  %2250 = vmatpush2.bf16.msra.mxu0 0
  %2251 = vmatprep.subr.bf16.mxu0 0
  %2252 = vmatpush2.bf16.msra.mxu0 0
  %2253 = vmatprep.subr.bf16.mxu0 0
  %2254 = vmatpush2.bf16.msra.mxu0 0
  %2255 = vmatprep.subr.bf16.mxu0 0
  %2256 = vmatpush2.bf16.msra.mxu0 0
  %2257 = vmatprep.subr.bf16.mxu0 0
  %2258 = vmatpush2.bf16.msra.mxu0 0
  %2259 = vmatprep.subr.bf16.mxu0 0
  %2260 = vmatpush2.bf16.msra.mxu0 0
  %2261 = vmatprep.subr.bf16.mxu0 0
  %2262 = vmatpush2.bf16.msra.mxu0 0
  %2263 = vmatprep.subr.bf16.mxu0 0
  %2264 = vmatpush2.bf16.msra.mxu0 0
  %2265 = vmatprep.mubr.bf16.mxu0 0
  %2266 = vmatmul.mubr.bf16.gmra.mxu0 %v2168
  %v2267 = vpop.f32.mrf.mxu0
  %v2268 = vadd.f32 0.0, %v2267
  %v2269 = vpop.f32.mrf.mxu0
  %v2270 = vpop.f32.mrf.mxu0
  %v2271 = vpop.f32.mrf.mxu0
  %2272 = vdwg.mxu0
  %v2273 = vadd.f32 %v2167, %v2268
  %v2274 = vpack.c.bf16 %v685, %v685
  %v2275 = vld [vmem:[%s3 + $0x3c0] sm:$0xf]
  %v2276 = vld [vmem:[%s3 + $0x3c4] sm:$0xf]
  %v2277 = vld [vmem:[%s3 + $0x3c8] sm:$0xf]
  %v2278 = vld [vmem:[%s3 + $0x3cc] sm:$0xf]
  %v2279 = vld [vmem:[%s3 + $0x3d0] sm:$0xf]
  %v2280 = vld [vmem:[%s3 + $0x3d4] sm:$0xf]
  %v2281 = vld [vmem:[%s3 + $0x3d8] sm:$0xf]
  %v2282 = vld [vmem:[%s3 + $0x3dc] sm:$0xf]
  %v2283 = vld [vmem:[%s3 + $0x3e0] sm:$0xf]
  %v2284 = vld [vmem:[%s3 + $0x3e4] sm:$0xf]
  %v2285 = vld [vmem:[%s3 + $0x3e8] sm:$0xf]
  %v2286 = vld [vmem:[%s3 + $0x3ec] sm:$0xf]
  %v2287 = vld [vmem:[%s3 + $0x3f0] sm:$0xf]
  %v2288 = vld [vmem:[%s3 + $0x3f4] sm:$0xf]
  %v2289 = vld [vmem:[%s3 + $0x3f8] sm:$0xf]
  %v2290 = vld [vmem:[%s3 + $0x3fc] sm:$0xf]
  %v2307 = vunpack.c.l.b16 %v2275
  %v2308 = vunpack.c.l.b16 %v2276
  %v2309 = vunpack.c.l.b16 %v2277
  %v2310 = vunpack.c.l.b16 %v2278
  %v2311 = vunpack.c.l.b16 %v2279
  %v2312 = vunpack.c.l.b16 %v2280
  %v2313 = vunpack.c.l.b16 %v2281
  %v2314 = vunpack.c.l.b16 %v2282
  %v2315 = vunpack.c.l.b16 %v2283
  %v2316 = vunpack.c.l.b16 %v2284
  %v2317 = vunpack.c.l.b16 %v2285
  %v2318 = vunpack.c.l.b16 %v2286
  %v2319 = vunpack.c.l.b16 %v2287
  %v2320 = vunpack.c.l.b16 %v2288
  %v2321 = vunpack.c.l.b16 %v2289
  %v2322 = vunpack.c.l.b16 %v2290
  %v2323 = vpack.c.b16 %v2308, %v2307
  %v2324 = vpack.c.b16 %v2310, %v2309
  %v2325 = vpack.c.b16 %v2312, %v2311
  %v2326 = vpack.c.b16 %v2314, %v2313
  %v2327 = vpack.c.b16 %v2316, %v2315
  %v2328 = vpack.c.b16 %v2318, %v2317
  %v2329 = vpack.c.b16 %v2320, %v2319
  %v2330 = vpack.c.b16 %v2322, %v2321
  %2339 = vmatprep.subr.bf16.mxu0 0
  %2340 = vmatpush1.bf16.msra.mxu0 %v2330
  %2341 = vmatprep.subr.bf16.mxu0 0
  %2342 = vmatpush1.bf16.msra.mxu0 %v2329
  %2343 = vmatprep.subr.bf16.mxu0 0
  %2344 = vmatpush1.bf16.msra.mxu0 %v2328
  %2345 = vmatprep.subr.bf16.mxu0 0
  %2346 = vmatpush1.bf16.msra.mxu0 %v2327
  %2347 = vmatprep.subr.bf16.mxu0 0
  %2348 = vmatpush1.bf16.msra.mxu0 %v2326
  %2349 = vmatprep.subr.bf16.mxu0 0
  %2350 = vmatpush1.bf16.msra.mxu0 %v2325
  %2351 = vmatprep.subr.bf16.mxu0 0
  %2352 = vmatpush1.bf16.msra.mxu0 %v2324
  %2353 = vmatprep.subr.bf16.mxu0 0
  %2354 = vmatpush1.bf16.msra.mxu0 %v2323
  %2355 = vmatprep.subr.bf16.mxu0 0
  %2356 = vmatpush2.bf16.msra.mxu0 0
  %2357 = vmatprep.subr.bf16.mxu0 0
  %2358 = vmatpush2.bf16.msra.mxu0 0
  %2359 = vmatprep.subr.bf16.mxu0 0
  %2360 = vmatpush2.bf16.msra.mxu0 0
  %2361 = vmatprep.subr.bf16.mxu0 0
  %2362 = vmatpush2.bf16.msra.mxu0 0
  %2363 = vmatprep.subr.bf16.mxu0 0
  %2364 = vmatpush2.bf16.msra.mxu0 0
  %2365 = vmatprep.subr.bf16.mxu0 0
  %2366 = vmatpush2.bf16.msra.mxu0 0
  %2367 = vmatprep.subr.bf16.mxu0 0
  %2368 = vmatpush2.bf16.msra.mxu0 0
  %2369 = vmatprep.subr.bf16.mxu0 0
  %2370 = vmatpush2.bf16.msra.mxu0 0
  %2371 = vmatprep.mubr.bf16.mxu0 0
  %2372 = vmatmul.mubr.bf16.gmra.mxu0 %v2274
  %v2373 = vpop.f32.mrf.mxu0
  %v2374 = vadd.f32 0.0, %v2373
  %v2375 = vpop.f32.mrf.mxu0
  %v2376 = vpop.f32.mrf.mxu0
  %v2377 = vpop.f32.mrf.mxu0
  %2378 = vdwg.mxu0
  %v2379 = vadd.f32 %v2273, %v2374
  %v2380 = vld [vmem:[%s4] sm:$0x1]
  %v2382 = vlaneseq
  %v2383 = vshrl.u32 %v2382, 7
  %v2384 = vsub.s32 0, %v2383
  %v2385 = vrot.slane %v2380, %v2384
  %v2387 = vadd.f32 %v2379, %v2385
  %2388 = vst [vmem:[%s5] sm:$0xff] %v2387
  // Predicated region
  $region22: #{cnn_forward.5} parent=0 // pred_check
    _
  $region23: #{cnn_forward.5} parent=0 // pred_check_branch
    %2390 = sbr.rel (0) target = $region25
  $region24: #{cnn_forward.5} parent=0 // pred_region
    _
  $region25: #{cnn_forward.5} parent=0 // pred_fallthru
    _
  // Predicated region
  $region26: #{cnn_forward.5} parent=0 // pred_check
    _
  $region27: #{cnn_forward.5} parent=0 // pred_check_branch
    %2392 = sbr.rel (0) target = $region29
  $region28: #{cnn_forward.5} parent=0 // pred_region
    _
  $region29: #{cnn_forward.5} parent=0 // pred_fallthru
    _

</llo_original>
